<compile_context>
chip_gen: v6e
topology: v6e:2x2x1
jax: 0.10.0
libtpu: 0.0.40
codegen_flags: <defaults>
</compile_context>

<pallas_src>
import math
from functools import partial

import jax
import jax.numpy as jnp
from jax import lax
from jax.experimental import pallas as pl
from jax.experimental.pallas import tpu as pltpu

_MXU_DTYPE = jnp.bfloat16   # matmul operand dtype (accumulation stays f32)
_LANE = 128                 # TPU lane width (output mel axis padded to this)


def _gelu_exact(x):
    # nn.GELU default (erf form), kept in f32.
    # TODO(synk): tanh-approx GELU would move this onto the idle EUP slot but
    # deviates slightly from nn.GELU exact; keep erf for fidelity.
    return 0.5 * x * (1.0 + lax.erf(x * (1.0 / math.sqrt(2.0))))


# ------------------------------ fused kernel --------------------------------

def _make_fused_kernel(kernels, strides):
    """Whole forward pass for one batch element, activations VMEM-resident."""
    num_layers = len(kernels)

    def kernel(x_ref, w0_ref, g_ref, beta_ref, *rest):
        # rest = (w_1..w_{L-1}, w_projT, b_proj, out, buf_a, buf_b)
        conv_w_refs = rest[:num_layers - 1]
        wp_ref, bp_ref, o_ref, buf_a, buf_b = rest[num_layers - 1:]
        bufs = (buf_a, buf_b)

        rows = x_ref.shape[0]          # L // s0  (layer-0 phases of width s0)
        n = rows - 1                   # frames after layer 0
        c0 = w0_ref.shape[1]
        x = x_ref[...]                 # (rows, s0) f32

        # ---- layer 0: Conv1d(1 -> C, K=10, s=5) ------------------------------
        # patch(t) = [x[5t:5t+5], x[5t+5:5t+10]] = [row t ; row t+1] (k0==2*s0).
        xa = jnp.concatenate([x[:n, :], x[1:, :]], axis=1).astype(_MXU_DTYPE)
        y = jnp.dot(xa, w0_ref[...], preferred_element_type=jnp.float32)  # (n, C)

        # GroupNorm(num_groups == num_channels): per-channel stats over time.
        mean = jnp.mean(y, axis=0, keepdims=True)
        var = jnp.mean(jnp.square(y - mean), axis=0, keepdims=True)
        y = (y - mean) * lax.rsqrt(var + 1e-5)
        y = y * g_ref[...] + beta_ref[...]
        h = _gelu_exact(y)                                   # (n, C) f32
        buf_a[pl.ds(0, n), pl.ds(0, c0)] = h

        # ---- layers 1..: true strided convs, decimated layer-by-layer -------
        for li in range(1, num_layers):
            k_sz, s = kernels[li], strides[li]
            w_ref = conv_w_refs[li - 1]              # (k_sz*Cin, Cout) bf16
            cin = w_ref.shape[0] // k_sz
            cout = w_ref.shape[1]
            n_out = (n - k_sz) // s + 1
            src = bufs[(li - 1) % 2]
            # Tap kk = rows kk, kk+s, kk+2s, ... of the previous activation:
            # one strided VMEM load per tap, lane-concatenated into a single
            # (n_out, k*Cin) operand, cast to bf16 once -> ONE matmul / layer.
            a = jnp.concatenate(
                [src[pl.ds(kk, n_out, s), pl.ds(0, cin)] for kk in range(k_sz)],
                axis=1).astype(_MXU_DTYPE)
            acc = jnp.dot(a, w_ref[...], preferred_element_type=jnp.float32)
            h = _gelu_exact(acc)                             # (n_out, Cout) f32
            n = n_out
            if li < num_layers - 1:
                bufs[li % 2][pl.ds(0, n), pl.ds(0, cout)] = h

        # ---- Linear projection: feats @ Wp^T, emitted as (T, mel_pad) --------
        proj = jnp.dot(h.astype(_MXU_DTYPE), wp_ref[...],
                       preferred_element_type=jnp.float32)
        o_ref[...] = proj + bp_ref[...]

    return kernel


# ------------------------------ JAX wrapper ----------------------------------

def _prepare_kernel_params(params):
    """One-time (eager) conversion of PyTorch-layout params into kernel form."""
    convs = params["convs"]
    kernels = tuple(int(l["w"].shape[-1]) for l in convs)
    strides = tuple(int(l["stride"]) for l in convs)

    w0 = convs[0]["w"]                                   # (C, 1, K0)
    c0 = int(w0.shape[0])
    w0mat = jnp.transpose(w0[:, 0, :], (1, 0)).astype(_MXU_DTYPE)   # (K0, C)
    gamma, beta = convs[0]["gn"]

    conv_ws = []
    for layer in convs[1:]:
        w = layer["w"]                                   # (Cout, Cin, K)
        cout, cin, k = w.shape
        wmat = jnp.transpose(w, (2, 1, 0)).reshape(k * cin, cout)
        conv_ws.append(wmat.astype(_MXU_DTYPE))          # row index = kk*Cin + ci

    mel = int(params["proj_w"].shape[0])
    c_last = int(params["proj_w"].shape[1])
    mel_pad = ((mel + _LANE - 1) // _LANE) * _LANE       # lane-dense output
    wpT = jnp.zeros((c_last, mel_pad), _MXU_DTYPE)
    wpT = wpT.at[:, :mel].set(params["proj_w"].T.astype(_MXU_DTYPE))
    bp = jnp.zeros((1, mel_pad), jnp.float32).at[0, :mel].set(params["proj_b"])

    weights = (w0mat,
               gamma.reshape(1, c0).astype(jnp.float32),
               beta.reshape(1, c0).astype(jnp.float32),
               *conv_ws, wpT, bp)
    return weights, kernels, strides, mel


@partial(jax.jit, static_argnames=("kernels", "strides", "mel_bins"))
def wav2vec2_feature_wrapper_forward(x, weights, *, kernels, strides, mel_bins):
    """x: (B, 1, L) float32 -> (B, 1, mel_bins, T) float32."""
    B, _, L = x.shape
    k0, s0 = kernels[0], strides[0]
    assert k0 == 2 * s0, "layer-0 two-row patch trick assumes kernel == 2*stride"

    n0 = (L - k0) // s0 + 1                    # frames after layer 0
    rows = n0 + 1
    # Free, contiguous reshape of the waveform into stride-s0 phases.
    xr = x.reshape(B, L)[:, :rows * s0].reshape(B, rows, s0)

    t_frames = n0
    for k, s in zip(kernels[1:], strides[1:]):
        t_frames = (t_frames - k) // s + 1
    n1 = (n0 - kernels[1]) // strides[1] + 1 if len(kernels) > 1 else 1

    conv_ws = weights[3:3 + len(kernels) - 1]
    stored_widths = [weights[0].shape[1]] + [w.shape[1] for w in conv_ws[:-1]]
    c_buf = max(stored_widths)
    mel_pad = weights[-1].shape[1]

    kernel = _make_fused_kernel(kernels, strides)
    weight_specs = [pl.BlockSpec(w.shape, lambda b: (0, 0)) for w in weights]

    out = pl.pallas_call(
        kernel,
        out_shape=jax.ShapeDtypeStruct((B, t_frames, mel_pad), jnp.float32),
        grid=(B,),
        in_specs=[pl.BlockSpec((None, rows, s0), lambda b: (b, 0, 0))]
                 + weight_specs,
        out_specs=pl.BlockSpec((None, t_frames, mel_pad), lambda b: (b, 0, 0)),
        scratch_shapes=[pltpu.VMEM((n0, c_buf), jnp.float32),   # layers 0,2,4
                        pltpu.VMEM((n1, c_buf), jnp.float32)],  # layers 1,3,5
        compiler_params=pltpu.CompilerParams(
            dimension_semantics=("parallel",),
            vmem_limit_bytes=48 * 1024 * 1024),
    )(xr, *weights)

    # Drop mel lane padding; projected.permute(0,2,1).unsqueeze(1).
    proj = out[:, :, :mel_bins]
    return jnp.transpose(proj, (0, 2, 1))[:, None, :, :]


# ----------------------- pure-JAX reference (f32) ----------------------------

def reference_forward(x, params):
    h = x                                              # (B, 1, L), Cin = 1
    for layer in params["convs"]:
        h = lax.conv_general_dilated(
            h, layer["w"], window_strides=(layer["stride"],), padding="VALID",
            dimension_numbers=("NCH", "OIH", "NCH"))
        if "gn" in layer:
            gamma, beta = layer["gn"]
            mean = jnp.mean(h, axis=2, keepdims=True)
            var = jnp.mean(jnp.square(h - mean), axis=2, keepdims=True)
            h = (h - mean) * lax.rsqrt(var + 1e-5)
            h = h * gamma[None, :, None] + beta[None, :, None]
        h = _gelu_exact(h)
    feats = jnp.transpose(h, (0, 2, 1))                          # (B, T, C)
    proj = feats @ params["proj_w"].T + params["proj_b"]         # (B, T, mel)
    return jnp.transpose(proj, (0, 2, 1))[:, None, :, :]         # (B,1,mel,T)


# --------------------------- deterministic params ----------------------------
# TODO(synk): Wav2Vec2Model.from_pretrained weight loading is not available
# in-script; synthetic deterministic weights with the same structure are used.

def init_params(key, conv_dims, kernels, strides, mel_bins):
    params = {"convs": []}
    cin = 1
    for i, (cout, k, _s) in enumerate(zip(conv_dims, kernels, strides)):
        key, wk = jax.random.split(key)
        w = jax.random.normal(wk, (cout, cin, k), jnp.float32) / math.sqrt(cin * k)
        layer = {"w": w, "stride": strides[i]}
        if i == 0:  # Wav2Vec2GroupNormConvLayer
            key, gk, bk = jax.random.split(key, 3)
            gamma = 1.0 + 0.1 * jax.random.normal(gk, (cout,), jnp.float32)
            beta = 0.1 * jax.random.normal(bk, (cout,), jnp.float32)
            layer["gn"] = (gamma, beta)
        params["convs"].append(layer)
        cin = cout
    key, pk, bk = jax.random.split(key, 3)
    params["proj_w"] = jax.random.normal(pk, (mel_bins, cin), jnp.float32) / math.sqrt(cin)
    params["proj_b"] = 0.01 * jax.random.normal(bk, (mel_bins,), jnp.float32)
    return params


# ----------------------------------- main -------------------------------------

if __name__ == "__main__":
    B, L = 2, 2000
    mel_bins = 32
    # wav2vec2-base feature-extractor structure with reduced channel width.
    conv_dims = (64, 64, 64, 64, 64, 64, 64)
    kernels = (10, 3, 3, 3, 3, 2, 2)
    strides = (5, 2, 2, 2, 2, 2, 2)

    key = jax.random.PRNGKey(0)
    key, xk = jax.random.split(key)
    x = jax.random.normal(xk, (B, 1, L), jnp.float32)      # raw waveform
    params = init_params(key, conv_dims, kernels, strides, mel_bins)

    # One-time weight packing, hoisted out of the per-call (jitted) path.
    weights, kern_sizes, strds, mel = _prepare_kernel_params(params)

    out = wav2vec2_feature_wrapper_forward(
        x, weights, kernels=kern_sizes, strides=strds, mel_bins=mel)
    out = jax.block_until_ready(out)

    # Expected number of frames after the conv stack.
    T = L
    for k, s in zip(kernels, strides):
        T = (T - k) // s + 1
    assert out.shape == (B, 1, mel_bins, T), out.shape
    assert out.dtype == jnp.float32

    # Numerical check vs. a pure-JAX f32 reference (bf16 matmul operands with
    # f32 accumulation in the kernel -> ~1-2% expected deviation at this depth).
    ref = jax.block_until_ready(reference_forward(x, params))
    err = float(jnp.max(jnp.abs(out - ref)))
    scale = float(jnp.max(jnp.abs(ref)))
    assert err <= 0.03 * scale + 1e-3, (err, scale)

    print("KERNEL_OK")
</pallas_src>

<mosaic_0001>
module attributes {stable_mosaic.version = 11 : i64} {
  func.func @kernel(%arg0: i32, %arg1: memref<1x400x5xf32, #tpu.memory_space<vmem>>, %arg2: memref<10x64xbf16, #tpu.memory_space<vmem>>, %arg3: memref<1x64xf32, #tpu.memory_space<vmem>>, %arg4: memref<1x64xf32, #tpu.memory_space<vmem>>, %arg5: memref<192x64xbf16, #tpu.memory_space<vmem>>, %arg6: memref<192x64xbf16, #tpu.memory_space<vmem>>, %arg7: memref<192x64xbf16, #tpu.memory_space<vmem>>, %arg8: memref<192x64xbf16, #tpu.memory_space<vmem>>, %arg9: memref<128x64xbf16, #tpu.memory_space<vmem>>, %arg10: memref<128x64xbf16, #tpu.memory_space<vmem>>, %arg11: memref<64x128xbf16, #tpu.memory_space<vmem>>, %arg12: memref<1x128xf32, #tpu.memory_space<vmem>>, %arg13: memref<1x6x128xf32, #tpu.memory_space<vmem>>, %arg14: memref<399x64xf32, #tpu.memory_space<vmem>>, %arg15: memref<199x64xf32, #tpu.memory_space<vmem>>) attributes {dimension_semantics = [#tpu.dimension_semantics<parallel>], iteration_bounds = array<i64: 2>, scalar_prefetch = 0 : i64, scratch_operands = 2 : i64, tpu.core_type = #tpu.core_type<tc>, window_params = [{transform_indices = @transform_0, window_bounds = array<i64: 1, 400, 5>}, {pipeline_mode = #tpu.pipeline_mode<synchronous>, transform_indices = @transform_1, window_bounds = array<i64: 10, 64>}, {pipeline_mode = #tpu.pipeline_mode<synchronous>, transform_indices = @transform_2, window_bounds = array<i64: 1, 64>}, {pipeline_mode = #tpu.pipeline_mode<synchronous>, transform_indices = @transform_3, window_bounds = array<i64: 1, 64>}, {pipeline_mode = #tpu.pipeline_mode<synchronous>, transform_indices = @transform_4, window_bounds = array<i64: 192, 64>}, {pipeline_mode = #tpu.pipeline_mode<synchronous>, transform_indices = @transform_5, window_bounds = array<i64: 192, 64>}, {pipeline_mode = #tpu.pipeline_mode<synchronous>, transform_indices = @transform_6, window_bounds = array<i64: 192, 64>}, {pipeline_mode = #tpu.pipeline_mode<synchronous>, transform_indices = @transform_7, window_bounds = array<i64: 192, 64>}, {pipeline_mode = #tpu.pipeline_mode<synchronous>, transform_indices = @transform_8, window_bounds = array<i64: 128, 64>}, {pipeline_mode = #tpu.pipeline_mode<synchronous>, transform_indices = @transform_9, window_bounds = array<i64: 128, 64>}, {pipeline_mode = #tpu.pipeline_mode<synchronous>, transform_indices = @transform_10, window_bounds = array<i64: 64, 128>}, {pipeline_mode = #tpu.pipeline_mode<synchronous>, transform_indices = @transform_11, window_bounds = array<i64: 1, 128>}, {transform_indices = @transform_12, window_bounds = array<i64: 1, 6, 128>}]} {
    %c0 = arith.constant 0 : index
    %c0_0 = arith.constant 0 : index
    %c0_1 = arith.constant 0 : index
    %0 = vector.load %arg1[%c0, %c0_0, %c0_1] : memref<1x400x5xf32, #tpu.memory_space<vmem>>, vector<1x400x5xf32>
    %1 = vector.shape_cast %0 : vector<1x400x5xf32> to vector<400x5xf32>
    %2 = vector.extract_strided_slice %1 {offsets = [0, 0], sizes = [399, 5], strides = [1, 1]} : vector<400x5xf32> to vector<399x5xf32>
    %3 = vector.extract_strided_slice %1 {offsets = [1, 0], sizes = [399, 5], strides = [1, 1]} : vector<400x5xf32> to vector<399x5xf32>
    %4 = tpu.concatenate %2, %3 in 1 : vector<399x5xf32>, vector<399x5xf32> -> vector<399x10xf32>
    %5 = arith.truncf %4 : vector<399x10xf32> to vector<399x10xbf16>
    %c0_2 = arith.constant 0 : index
    %c0_3 = arith.constant 0 : index
    %6 = vector.load %arg2[%c0_2, %c0_3] : memref<10x64xbf16, #tpu.memory_space<vmem>>, vector<10x64xbf16>
    %cst = arith.constant dense<0.000000e+00> : vector<399x64xf32>
    %7 = tpu.matmul %5, %6, %cst {dimension_numbers = #tpu.dot_dimension_numbers<[1], [0], [0], [1], [0, 0, 1, 1], [], []>} : vector<399x10xbf16>, vector<10x64xbf16>, vector<399x64xf32> -> vector<399x64xf32>
    %cst_4 = arith.constant dense<0.000000e+00> : vector<64xf32>
    %8 = vector.multi_reduction <add>, %7, %cst_4 [0] : vector<399x64xf32> to vector<64xf32>
    %9 = vector.shape_cast %8 : vector<64xf32> to vector<1x64xf32>
    %cst_5 = arith.constant 3.990000e+02 : f32
    %10 = vector.broadcast %cst_5 : f32 to vector<1x64xf32>
    %11 = arith.divf %9, %10 : vector<1x64xf32>
    %12 = vector.broadcast %11 : vector<1x64xf32> to vector<399x64xf32>
    %13 = arith.subf %7, %12 : vector<399x64xf32>
    %14 = arith.mulf %13, %13 : vector<399x64xf32>
    %cst_6 = arith.constant dense<0.000000e+00> : vector<64xf32>
    %15 = vector.multi_reduction <add>, %14, %cst_6 [0] : vector<399x64xf32> to vector<64xf32>
    %16 = vector.shape_cast %15 : vector<64xf32> to vector<1x64xf32>
    %cst_7 = arith.constant 3.990000e+02 : f32
    %17 = vector.broadcast %cst_7 : f32 to vector<1x64xf32>
    %18 = arith.divf %16, %17 : vector<1x64xf32>
    %19 = vector.broadcast %11 : vector<1x64xf32> to vector<399x64xf32>
    %20 = arith.subf %7, %19 : vector<399x64xf32>
    %cst_8 = arith.constant 9.99999974E-6 : f32
    %21 = vector.broadcast %cst_8 : f32 to vector<1x64xf32>
    %22 = arith.addf %18, %21 : vector<1x64xf32>
    %23 = math.rsqrt %22 : vector<1x64xf32>
    %24 = vector.broadcast %23 : vector<1x64xf32> to vector<399x64xf32>
    %25 = arith.mulf %20, %24 : vector<399x64xf32>
    %c0_9 = arith.constant 0 : index
    %c0_10 = arith.constant 0 : index
    %26 = vector.load %arg3[%c0_9, %c0_10] : memref<1x64xf32, #tpu.memory_space<vmem>>, vector<1x64xf32>
    %27 = vector.broadcast %26 : vector<1x64xf32> to vector<399x64xf32>
    %28 = arith.mulf %25, %27 : vector<399x64xf32>
    %c0_11 = arith.constant 0 : index
    %c0_12 = arith.constant 0 : index
    %29 = vector.load %arg4[%c0_11, %c0_12] : memref<1x64xf32, #tpu.memory_space<vmem>>, vector<1x64xf32>
    %30 = vector.broadcast %29 : vector<1x64xf32> to vector<399x64xf32>
    %31 = arith.addf %28, %30 : vector<399x64xf32>
    %cst_13 = arith.constant 5.000000e-01 : f32
    %32 = vector.broadcast %cst_13 : f32 to vector<399x64xf32>
    %33 = arith.mulf %32, %31 : vector<399x64xf32>
    %cst_14 = arith.constant 0.707106769 : f32
    %34 = vector.broadcast %cst_14 : f32 to vector<399x64xf32>
    %35 = arith.mulf %31, %34 : vector<399x64xf32>
    %36 = math.erf %35 : vector<399x64xf32>
    %cst_15 = arith.constant 1.000000e+00 : f32
    %37 = vector.broadcast %cst_15 : f32 to vector<399x64xf32>
    %38 = arith.addf %37, %36 : vector<399x64xf32>
    %39 = arith.mulf %33, %38 : vector<399x64xf32>
    %c0_16 = arith.constant 0 : index
    %c0_17 = arith.constant 0 : index
    %40 = vector.load %arg14[%c0_16, %c0_17] : memref<399x64xf32, #tpu.memory_space<vmem>>, vector<399x64xf32>
    tpu.vector_store %arg14[%c0_16, %c0_17], %39 {strides = array<i32>} : memref<399x64xf32, #tpu.memory_space<vmem>>, vector<399x64xf32>,
    %c0_18 = arith.constant 0 : index
    %c0_19 = arith.constant 0 : index
    %41 = tpu.strided_load %arg14[%c0_18, %c0_19] {strides = array<i32: 2, 1>} : memref<399x64xf32, #tpu.memory_space<vmem>>, vector<199x64xf32>
    %c1 = arith.constant 1 : index
    %c0_20 = arith.constant 0 : index
    %42 = tpu.strided_load %arg14[%c1, %c0_20] {strides = array<i32: 2, 1>} : memref<399x64xf32, #tpu.memory_space<vmem>>, vector<199x64xf32>
    %c2 = arith.constant 2 : index
    %c0_21 = arith.constant 0 : index
    %43 = tpu.strided_load %arg14[%c2, %c0_21] {strides = array<i32: 2, 1>} : memref<399x64xf32, #tpu.memory_space<vmem>>, vector<199x64xf32>
    %44 = tpu.concatenate %41, %42, %43 in 1 : vector<199x64xf32>, vector<199x64xf32>, vector<199x64xf32> -> vector<199x192xf32>
    %45 = arith.truncf %44 : vector<199x192xf32> to vector<199x192xbf16>
    %c0_22 = arith.constant 0 : index
    %c0_23 = arith.constant 0 : index
    %46 = vector.load %arg5[%c0_22, %c0_23] : memref<192x64xbf16, #tpu.memory_space<vmem>>, vector<192x64xbf16>
    %cst_24 = arith.constant dense<0.000000e+00> : vector<199x64xf32>
    %47 = tpu.matmul %45, %46, %cst_24 {dimension_numbers = #tpu.dot_dimension_numbers<[1], [0], [0], [1], [0, 0, 1, 1], [], []>} : vector<199x192xbf16>, vector<192x64xbf16>, vector<199x64xf32> -> vector<199x64xf32>
    %cst_25 = arith.constant 5.000000e-01 : f32
    %48 = vector.broadcast %cst_25 : f32 to vector<199x64xf32>
    %49 = arith.mulf %48, %47 : vector<199x64xf32>
    %cst_26 = arith.constant 0.707106769 : f32
    %50 = vector.broadcast %cst_26 : f32 to vector<199x64xf32>
    %51 = arith.mulf %47, %50 : vector<199x64xf32>
    %52 = math.erf %51 : vector<199x64xf32>
    %cst_27 = arith.constant 1.000000e+00 : f32
    %53 = vector.broadcast %cst_27 : f32 to vector<199x64xf32>
    %54 = arith.addf %53, %52 : vector<199x64xf32>
    %55 = arith.mulf %49, %54 : vector<199x64xf32>
    %c0_28 = arith.constant 0 : index
    %c0_29 = arith.constant 0 : index
    %56 = vector.load %arg15[%c0_28, %c0_29] : memref<199x64xf32, #tpu.memory_space<vmem>>, vector<199x64xf32>
    tpu.vector_store %arg15[%c0_28, %c0_29], %55 {strides = array<i32>} : memref<199x64xf32, #tpu.memory_space<vmem>>, vector<199x64xf32>,
    %c0_30 = arith.constant 0 : index
    %c0_31 = arith.constant 0 : index
    %57 = tpu.strided_load %arg15[%c0_30, %c0_31] {strides = array<i32: 2, 1>} : memref<199x64xf32, #tpu.memory_space<vmem>>, vector<99x64xf32>
    %c1_32 = arith.constant 1 : index
    %c0_33 = arith.constant 0 : index
    %58 = tpu.strided_load %arg15[%c1_32, %c0_33] {strides = array<i32: 2, 1>} : memref<199x64xf32, #tpu.memory_space<vmem>>, vector<99x64xf32>
    %c2_34 = arith.constant 2 : index
    %c0_35 = arith.constant 0 : index
    %59 = tpu.strided_load %arg15[%c2_34, %c0_35] {strides = array<i32: 2, 1>} : memref<199x64xf32, #tpu.memory_space<vmem>>, vector<99x64xf32>
    %60 = tpu.concatenate %57, %58, %59 in 1 : vector<99x64xf32>, vector<99x64xf32>, vector<99x64xf32> -> vector<99x192xf32>
    %61 = arith.truncf %60 : vector<99x192xf32> to vector<99x192xbf16>
    %c0_36 = arith.constant 0 : index
    %c0_37 = arith.constant 0 : index
    %62 = vector.load %arg6[%c0_36, %c0_37] : memref<192x64xbf16, #tpu.memory_space<vmem>>, vector<192x64xbf16>
    %cst_38 = arith.constant dense<0.000000e+00> : vector<99x64xf32>
    %63 = tpu.matmul %61, %62, %cst_38 {dimension_numbers = #tpu.dot_dimension_numbers<[1], [0], [0], [1], [0, 0, 1, 1], [], []>} : vector<99x192xbf16>, vector<192x64xbf16>, vector<99x64xf32> -> vector<99x64xf32>
    %cst_39 = arith.constant 5.000000e-01 : f32
    %64 = vector.broadcast %cst_39 : f32 to vector<99x64xf32>
    %65 = arith.mulf %64, %63 : vector<99x64xf32>
    %cst_40 = arith.constant 0.707106769 : f32
    %66 = vector.broadcast %cst_40 : f32 to vector<99x64xf32>
    %67 = arith.mulf %63, %66 : vector<99x64xf32>
    %68 = math.erf %67 : vector<99x64xf32>
    %cst_41 = arith.constant 1.000000e+00 : f32
    %69 = vector.broadcast %cst_41 : f32 to vector<99x64xf32>
    %70 = arith.addf %69, %68 : vector<99x64xf32>
    %71 = arith.mulf %65, %70 : vector<99x64xf32>
    %c0_42 = arith.constant 0 : index
    %c0_43 = arith.constant 0 : index
    %72 = vector.load %arg14[%c0_42, %c0_43] : memref<399x64xf32, #tpu.memory_space<vmem>>, vector<99x64xf32>
    tpu.vector_store %arg14[%c0_42, %c0_43], %71 {strides = array<i32>} : memref<399x64xf32, #tpu.memory_space<vmem>>, vector<99x64xf32>,
    %c0_44 = arith.constant 0 : index
    %c0_45 = arith.constant 0 : index
    %73 = tpu.strided_load %arg14[%c0_44, %c0_45] {strides = array<i32: 2, 1>} : memref<399x64xf32, #tpu.memory_space<vmem>>, vector<49x64xf32>
    %c1_46 = arith.constant 1 : index
    %c0_47 = arith.constant 0 : index
    %74 = tpu.strided_load %arg14[%c1_46, %c0_47] {strides = array<i32: 2, 1>} : memref<399x64xf32, #tpu.memory_space<vmem>>, vector<49x64xf32>
    %c2_48 = arith.constant 2 : index
    %c0_49 = arith.constant 0 : index
    %75 = tpu.strided_load %arg14[%c2_48, %c0_49] {strides = array<i32: 2, 1>} : memref<399x64xf32, #tpu.memory_space<vmem>>, vector<49x64xf32>
    %76 = tpu.concatenate %73, %74, %75 in 1 : vector<49x64xf32>, vector<49x64xf32>, vector<49x64xf32> -> vector<49x192xf32>
    %77 = arith.truncf %76 : vector<49x192xf32> to vector<49x192xbf16>
    %c0_50 = arith.constant 0 : index
    %c0_51 = arith.constant 0 : index
    %78 = vector.load %arg7[%c0_50, %c0_51] : memref<192x64xbf16, #tpu.memory_space<vmem>>, vector<192x64xbf16>
    %cst_52 = arith.constant dense<0.000000e+00> : vector<49x64xf32>
    %79 = tpu.matmul %77, %78, %cst_52 {dimension_numbers = #tpu.dot_dimension_numbers<[1], [0], [0], [1], [0, 0, 1, 1], [], []>} : vector<49x192xbf16>, vector<192x64xbf16>, vector<49x64xf32> -> vector<49x64xf32>
    %cst_53 = arith.constant 5.000000e-01 : f32
    %80 = vector.broadcast %cst_53 : f32 to vector<49x64xf32>
    %81 = arith.mulf %80, %79 : vector<49x64xf32>
    %cst_54 = arith.constant 0.707106769 : f32
    %82 = vector.broadcast %cst_54 : f32 to vector<49x64xf32>
    %83 = arith.mulf %79, %82 : vector<49x64xf32>
    %84 = math.erf %83 : vector<49x64xf32>
    %cst_55 = arith.constant 1.000000e+00 : f32
    %85 = vector.broadcast %cst_55 : f32 to vector<49x64xf32>
    %86 = arith.addf %85, %84 : vector<49x64xf32>
    %87 = arith.mulf %81, %86 : vector<49x64xf32>
    %c0_56 = arith.constant 0 : index
    %c0_57 = arith.constant 0 : index
    %88 = vector.load %arg15[%c0_56, %c0_57] : memref<199x64xf32, #tpu.memory_space<vmem>>, vector<49x64xf32>
    tpu.vector_store %arg15[%c0_56, %c0_57], %87 {strides = array<i32>} : memref<199x64xf32, #tpu.memory_space<vmem>>, vector<49x64xf32>,
    %c0_58 = arith.constant 0 : index
    %c0_59 = arith.constant 0 : index
    %89 = tpu.strided_load %arg15[%c0_58, %c0_59] {strides = array<i32: 2, 1>} : memref<199x64xf32, #tpu.memory_space<vmem>>, vector<24x64xf32>
    %c1_60 = arith.constant 1 : index
    %c0_61 = arith.constant 0 : index
    %90 = tpu.strided_load %arg15[%c1_60, %c0_61] {strides = array<i32: 2, 1>} : memref<199x64xf32, #tpu.memory_space<vmem>>, vector<24x64xf32>
    %c2_62 = arith.constant 2 : index
    %c0_63 = arith.constant 0 : index
    %91 = tpu.strided_load %arg15[%c2_62, %c0_63] {strides = array<i32: 2, 1>} : memref<199x64xf32, #tpu.memory_space<vmem>>, vector<24x64xf32>
    %92 = tpu.concatenate %89, %90, %91 in 1 : vector<24x64xf32>, vector<24x64xf32>, vector<24x64xf32> -> vector<24x192xf32>
    %93 = arith.truncf %92 : vector<24x192xf32> to vector<24x192xbf16>
    %c0_64 = arith.constant 0 : index
    %c0_65 = arith.constant 0 : index
    %94 = vector.load %arg8[%c0_64, %c0_65] : memref<192x64xbf16, #tpu.memory_space<vmem>>, vector<192x64xbf16>
    %cst_66 = arith.constant dense<0.000000e+00> : vector<24x64xf32>
    %95 = tpu.matmul %93, %94, %cst_66 {dimension_numbers = #tpu.dot_dimension_numbers<[1], [0], [0], [1], [0, 0, 1, 1], [], []>} : vector<24x192xbf16>, vector<192x64xbf16>, vector<24x64xf32> -> vector<24x64xf32>
    %cst_67 = arith.constant 5.000000e-01 : f32
    %96 = vector.broadcast %cst_67 : f32 to vector<24x64xf32>
    %97 = arith.mulf %96, %95 : vector<24x64xf32>
    %cst_68 = arith.constant 0.707106769 : f32
    %98 = vector.broadcast %cst_68 : f32 to vector<24x64xf32>
    %99 = arith.mulf %95, %98 : vector<24x64xf32>
    %100 = math.erf %99 : vector<24x64xf32>
    %cst_69 = arith.constant 1.000000e+00 : f32
    %101 = vector.broadcast %cst_69 : f32 to vector<24x64xf32>
    %102 = arith.addf %101, %100 : vector<24x64xf32>
    %103 = arith.mulf %97, %102 : vector<24x64xf32>
    %c0_70 = arith.constant 0 : index
    %c0_71 = arith.constant 0 : index
    %104 = vector.load %arg14[%c0_70, %c0_71] : memref<399x64xf32, #tpu.memory_space<vmem>>, vector<24x64xf32>
    tpu.vector_store %arg14[%c0_70, %c0_71], %103 {strides = array<i32>} : memref<399x64xf32, #tpu.memory_space<vmem>>, vector<24x64xf32>,
    %c0_72 = arith.constant 0 : index
    %c0_73 = arith.constant 0 : index
    %105 = tpu.strided_load %arg14[%c0_72, %c0_73] {strides = array<i32: 2, 1>} : memref<399x64xf32, #tpu.memory_space<vmem>>, vector<12x64xf32>
    %c1_74 = arith.constant 1 : index
    %c0_75 = arith.constant 0 : index
    %106 = tpu.strided_load %arg14[%c1_74, %c0_75] {strides = array<i32: 2, 1>} : memref<399x64xf32, #tpu.memory_space<vmem>>, vector<12x64xf32>
    %107 = tpu.concatenate %105, %106 in 1 : vector<12x64xf32>, vector<12x64xf32> -> vector<12x128xf32>
    %108 = arith.truncf %107 : vector<12x128xf32> to vector<12x128xbf16>
    %c0_76 = arith.constant 0 : index
    %c0_77 = arith.constant 0 : index
    %109 = vector.load %arg9[%c0_76, %c0_77] : memref<128x64xbf16, #tpu.memory_space<vmem>>, vector<128x64xbf16>
    %cst_78 = arith.constant dense<0.000000e+00> : vector<12x64xf32>
    %110 = tpu.matmul %108, %109, %cst_78 {dimension_numbers = #tpu.dot_dimension_numbers<[1], [0], [0], [1], [0, 0, 1, 1], [], []>} : vector<12x128xbf16>, vector<128x64xbf16>, vector<12x64xf32> -> vector<12x64xf32>
    %cst_79 = arith.constant 5.000000e-01 : f32
    %111 = vector.broadcast %cst_79 : f32 to vector<12x64xf32>
    %112 = arith.mulf %111, %110 : vector<12x64xf32>
    %cst_80 = arith.constant 0.707106769 : f32
    %113 = vector.broadcast %cst_80 : f32 to vector<12x64xf32>
    %114 = arith.mulf %110, %113 : vector<12x64xf32>
    %115 = math.erf %114 : vector<12x64xf32>
    %cst_81 = arith.constant 1.000000e+00 : f32
    %116 = vector.broadcast %cst_81 : f32 to vector<12x64xf32>
    %117 = arith.addf %116, %115 : vector<12x64xf32>
    %118 = arith.mulf %112, %117 : vector<12x64xf32>
    %c0_82 = arith.constant 0 : index
    %c0_83 = arith.constant 0 : index
    %119 = vector.load %arg15[%c0_82, %c0_83] : memref<199x64xf32, #tpu.memory_space<vmem>>, vector<12x64xf32>
    tpu.vector_store %arg15[%c0_82, %c0_83], %118 {strides = array<i32>} : memref<199x64xf32, #tpu.memory_space<vmem>>, vector<12x64xf32>,
    %c0_84 = arith.constant 0 : index
    %c0_85 = arith.constant 0 : index
    %120 = tpu.strided_load %arg15[%c0_84, %c0_85] {strides = array<i32: 2, 1>} : memref<199x64xf32, #tpu.memory_space<vmem>>, vector<6x64xf32>
    %c1_86 = arith.constant 1 : index
    %c0_87 = arith.constant 0 : index
    %121 = tpu.strided_load %arg15[%c1_86, %c0_87] {strides = array<i32: 2, 1>} : memref<199x64xf32, #tpu.memory_space<vmem>>, vector<6x64xf32>
    %122 = tpu.concatenate %120, %121 in 1 : vector<6x64xf32>, vector<6x64xf32> -> vector<6x128xf32>
    %123 = arith.truncf %122 : vector<6x128xf32> to vector<6x128xbf16>
    %c0_88 = arith.constant 0 : index
    %c0_89 = arith.constant 0 : index
    %124 = vector.load %arg10[%c0_88, %c0_89] : memref<128x64xbf16, #tpu.memory_space<vmem>>, vector<128x64xbf16>
    %cst_90 = arith.constant dense<0.000000e+00> : vector<6x64xf32>
    %125 = tpu.matmul %123, %124, %cst_90 {dimension_numbers = #tpu.dot_dimension_numbers<[1], [0], [0], [1], [0, 0, 1, 1], [], []>} : vector<6x128xbf16>, vector<128x64xbf16>, vector<6x64xf32> -> vector<6x64xf32>
    %cst_91 = arith.constant 5.000000e-01 : f32
    %126 = vector.broadcast %cst_91 : f32 to vector<6x64xf32>
    %127 = arith.mulf %126, %125 : vector<6x64xf32>
    %cst_92 = arith.constant 0.707106769 : f32
    %128 = vector.broadcast %cst_92 : f32 to vector<6x64xf32>
    %129 = arith.mulf %125, %128 : vector<6x64xf32>
    %130 = math.erf %129 : vector<6x64xf32>
    %cst_93 = arith.constant 1.000000e+00 : f32
    %131 = vector.broadcast %cst_93 : f32 to vector<6x64xf32>
    %132 = arith.addf %131, %130 : vector<6x64xf32>
    %133 = arith.mulf %127, %132 : vector<6x64xf32>
    %134 = arith.truncf %133 : vector<6x64xf32> to vector<6x64xbf16>
    %c0_94 = arith.constant 0 : index
    %c0_95 = arith.constant 0 : index
    %135 = vector.load %arg11[%c0_94, %c0_95] : memref<64x128xbf16, #tpu.memory_space<vmem>>, vector<64x128xbf16>
    %cst_96 = arith.constant dense<0.000000e+00> : vector<6x128xf32>
    %136 = tpu.matmul %134, %135, %cst_96 {dimension_numbers = #tpu.dot_dimension_numbers<[1], [0], [0], [1], [0, 0, 1, 1], [], []>} : vector<6x64xbf16>, vector<64x128xbf16>, vector<6x128xf32> -> vector<6x128xf32>
    %c0_97 = arith.constant 0 : index
    %c0_98 = arith.constant 0 : index
    %137 = vector.load %arg12[%c0_97, %c0_98] : memref<1x128xf32, #tpu.memory_space<vmem>>, vector<1x128xf32>
    %138 = vector.broadcast %137 : vector<1x128xf32> to vector<6x128xf32>
    %139 = arith.addf %136, %138 : vector<6x128xf32>
    %c0_99 = arith.constant 0 : index
    %c0_100 = arith.constant 0 : index
    %c0_101 = arith.constant 0 : index
    %140 = vector.load %arg13[%c0_99, %c0_100, %c0_101] : memref<1x6x128xf32, #tpu.memory_space<vmem>>, vector<1x6x128xf32>
    %141 = vector.shape_cast %140 : vector<1x6x128xf32> to vector<6x128xf32>
    %142 = vector.shape_cast %139 : vector<6x128xf32> to vector<1x6x128xf32>
    tpu.vector_store %arg13[%c0_99, %c0_100, %c0_101], %142 {strides = array<i32>} : memref<1x6x128xf32, #tpu.memory_space<vmem>>, vector<1x6x128xf32>,
    return
  }
  func.func @transform_0(%arg0: i32) -> (i32, i32, i32) {
    %c0_i32 = arith.constant 0 : i32
    %c0_i32_0 = arith.constant 0 : i32
    %c0_i32_1 = arith.constant 0 : i32
    return %arg0, %c0_i32, %c0_i32_0 : i32, i32, i32
  }
  func.func @transform_1(%arg0: i32) -> (i32, i32) {
    %c0_i32 = arith.constant 0 : i32
    %c0_i32_0 = arith.constant 0 : i32
    %c0_i32_1 = arith.constant 0 : i32
    return %c0_i32, %c0_i32_0 : i32, i32
  }
  func.func @transform_2(%arg0: i32) -> (i32, i32) {
    %c0_i32 = arith.constant 0 : i32
    %c0_i32_0 = arith.constant 0 : i32
    %c0_i32_1 = arith.constant 0 : i32
    return %c0_i32, %c0_i32_0 : i32, i32
  }
  func.func @transform_3(%arg0: i32) -> (i32, i32) {
    %c0_i32 = arith.constant 0 : i32
    %c0_i32_0 = arith.constant 0 : i32
    %c0_i32_1 = arith.constant 0 : i32
    return %c0_i32, %c0_i32_0 : i32, i32
  }
  func.func @transform_4(%arg0: i32) -> (i32, i32) {
    %c0_i32 = arith.constant 0 : i32
    %c0_i32_0 = arith.constant 0 : i32
    %c0_i32_1 = arith.constant 0 : i32
    return %c0_i32, %c0_i32_0 : i32, i32
  }
  func.func @transform_5(%arg0: i32) -> (i32, i32) {
    %c0_i32 = arith.constant 0 : i32
    %c0_i32_0 = arith.constant 0 : i32
    %c0_i32_1 = arith.constant 0 : i32
    return %c0_i32, %c0_i32_0 : i32, i32
  }
  func.func @transform_6(%arg0: i32) -> (i32, i32) {
    %c0_i32 = arith.constant 0 : i32
    %c0_i32_0 = arith.constant 0 : i32
    %c0_i32_1 = arith.constant 0 : i32
    return %c0_i32, %c0_i32_0 : i32, i32
  }
  func.func @transform_7(%arg0: i32) -> (i32, i32) {
    %c0_i32 = arith.constant 0 : i32
    %c0_i32_0 = arith.constant 0 : i32
    %c0_i32_1 = arith.constant 0 : i32
    return %c0_i32, %c0_i32_0 : i32, i32
  }
  func.func @transform_8(%arg0: i32) -> (i32, i32) {
    %c0_i32 = arith.constant 0 : i32
    %c0_i32_0 = arith.constant 0 : i32
    %c0_i32_1 = arith.constant 0 : i32
    return %c0_i32, %c0_i32_0 : i32, i32
  }
  func.func @transform_9(%arg0: i32) -> (i32, i32) {
    %c0_i32 = arith.constant 0 : i32
    %c0_i32_0 = arith.constant 0 : i32
    %c0_i32_1 = arith.constant 0 : i32
    return %c0_i32, %c0_i32_0 : i32, i32
  }
  func.func @transform_10(%arg0: i32) -> (i32, i32) {
    %c0_i32 = arith.constant 0 : i32
    %c0_i32_0 = arith.constant 0 : i32
    %c0_i32_1 = arith.constant 0 : i32
    return %c0_i32, %c0_i32_0 : i32, i32
  }
  func.func @transform_11(%arg0: i32) -> (i32, i32) {
    %c0_i32 = arith.constant 0 : i32
    %c0_i32_0 = arith.constant 0 : i32
    %c0_i32_1 = arith.constant 0 : i32
    return %c0_i32, %c0_i32_0 : i32, i32
  }
  func.func @transform_12(%arg0: i32) -> (i32, i32, i32) {
    %c0_i32 = arith.constant 0 : i32
    %c0_i32_0 = arith.constant 0 : i32
    %c0_i32_1 = arith.constant 0 : i32
    return %arg0, %c0_i32, %c0_i32_0 : i32, i32, i32
  }
}

</mosaic_0001>

<llo_original>
// kernel: wav2vec2_feature_wrapper_forward.1
$region0: #{wav2vec2_feature_wrapper_forward.1}
  #allocation0 [shape = 'u32[]', space=smem, size = 0x4, offset = 0x4, fixed_abs, tag = 'smem constant byte address 0x4 - core index']
  #allocation1 [shape = 'u32[144,128]{1,0:T(1,128)}', space=vmem, size = 0x12000, scoped, tag = 'internal scratch']
  #allocation2 [shape = 'f32[399,64]{1,0:T(8,128)}', space=vmem, size = 0x32000, scoped, tag = 'scratch operand']
  #allocation3 [shape = 'f32[199,64]{1,0:T(8,128)}', space=vmem, size = 0x19000, scoped, tag = 'scratch operand']
  %s0 = inlined_call_operand.vmem [shape: f32[2,400,5], index: 0, kind: input, shape index: {}]
  %s1 = inlined_call_operand.vmem [shape: bf16[10,64], index: 1, kind: input, shape index: {}]
  %s2 = inlined_call_operand.vmem [shape: f32[1,64], index: 2, kind: input, shape index: {}]
  %s3 = inlined_call_operand.vmem [shape: f32[1,64], index: 3, kind: input, shape index: {}]
  %s4 = inlined_call_operand.vmem [shape: bf16[192,64], index: 4, kind: input, shape index: {}]
  %s5 = inlined_call_operand.vmem [shape: bf16[192,64], index: 5, kind: input, shape index: {}]
  %s6 = inlined_call_operand.vmem [shape: bf16[192,64], index: 6, kind: input, shape index: {}]
  %s7 = inlined_call_operand.vmem [shape: bf16[192,64], index: 7, kind: input, shape index: {}]
  %s8 = inlined_call_operand.vmem [shape: bf16[128,64], index: 8, kind: input, shape index: {}]
  %s9 = inlined_call_operand.vmem [shape: bf16[128,64], index: 9, kind: input, shape index: {}]
  %s10 = inlined_call_operand.vmem [shape: bf16[64,128], index: 10, kind: input, shape index: {}]
  %s11 = inlined_call_operand.vmem [shape: f32[1,128], index: 11, kind: input, shape index: {}]
  %s12 = inlined_call_operand.vmem [shape: f32[2,6,128], index: 12, kind: output, shape index: {}]
  %s13 = sld [smem:[#allocation0]]
  $region81: #{wav2vec2_feature_wrapper_forward.1} parent=0
    _
  %s15 = ssub.s32 1, %s13
  %s16 = scalar_select 0, %s15, %s13
  loop: start=0, step=1, limit=4
  $region2: #{wav2vec2_feature_wrapper_forward.1} parent=0 // loop_pre_header
    _
  $region3: #{wav2vec2_feature_wrapper_forward.1} parent=0 // loop_header
    %s18 = sphi 0, %s22
    %p19 = scmp.ge.s32.totalorder %s18, 4
    %s28 = sphi 0, %s30
    %s31 = sphi 0, %s28
    %s32 = sphi 0, %s31
    %s48 = sphi 0, %s32
    %s52 = sphi 0, %s52
    %s54 = sphi 0, %s52
    %s55 = sphi 0, %s54
    %s69 = sphi 0, %s55
    %s73 = sphi 0, %s73
    %s75 = sphi 0, %s73
    %s76 = sphi 0, %s75
    %s90 = sphi 0, %s76
    %s94 = sphi 0, %s94
    %s96 = sphi 0, %s94
    %s97 = sphi 0, %s96
    %s111 = sphi 0, %s97
    %s115 = sphi 0, %s115
    %s117 = sphi 0, %s115
    %s118 = sphi 0, %s117
    %s132 = sphi 0, %s118
    %s136 = sphi 0, %s136
    %s138 = sphi 0, %s136
    %s139 = sphi 0, %s138
    %s153 = sphi 0, %s139
    %s157 = sphi 0, %s157
    %s159 = sphi 0, %s157
    %s160 = sphi 0, %s159
    %s174 = sphi 0, %s160
    %s178 = sphi 0, %s178
    %s180 = sphi 0, %s178
    %s181 = sphi 0, %s180
    %s195 = sphi 0, %s181
    %s199 = sphi 0, %s199
    %s201 = sphi 0, %s199
    %s202 = sphi 0, %s201
    %s216 = sphi 0, %s202
    %s220 = sphi 0, %s220
    %s222 = sphi 0, %s220
    %s223 = sphi 0, %s222
    %s237 = sphi 0, %s223
    %s241 = sphi 0, %s241
    %s243 = sphi 0, %s241
    %s244 = sphi 0, %s243
    %s258 = sphi 0, %s244
    %s262 = sphi 0, %s262
    %s264 = sphi 0, %s262
    %s265 = sphi 0, %s264
    %s279 = sphi 0, %s265
    %s285 = sphi 0, %s287
    %s288 = sphi 0, %s285
    %s289 = sphi 0, %s288
    %s305 = sphi 0, %s289
  $region4: #{wav2vec2_feature_wrapper_forward.1} parent=0 // loop_header_branch
    %21 = sbr.rel (%p19) target = $region8
  $region5: #{wav2vec2_feature_wrapper_forward.1} parent=0 // loop_body
    %s23 = ssub.s32 %s18, 1
    %s24 = ssub.s32 %s18, 2
    %s25 = sadd.s32 %s18, 1
    %s26 = ssub.s32 %s18, %s25
    %p27 = scmp.eq.s32.totalorder %s26, 0
    %s29 = sadd.s32 %s28, 1
    %s30 = scalar_select %p27, %s28, %s29
    %p33 = pneg %p27
    %p34 = scmp.eq.s32.totalorder %s18, 1
    %p35 = por %p33, %p34
    %p36 = scmp.ne.s32.totalorder %s28, %s31
    %p37 = scmp.eq.s32.totalorder %s18, 0
    %p38 = por %p36, %p37
    %p39 = scmp.ne.s32.totalorder %s28, %s31
    %p40 = scmp.eq.s32.totalorder %s23, 1
    %p41 = por %p39, %p40
    %p42 = scmp.ne.s32.totalorder %s31, %s32
    %p43 = scmp.eq.s32.totalorder %s23, 0
    %p44 = por %p42, %p43
    %p45 = scmp.ne.s32.totalorder %s31, %s32
    %p46 = scmp.eq.s32.totalorder %s24, 1
    %p47 = por %p45, %p46
    %p49 = scmp.ne.s32.totalorder %s32, %s48
    %p50 = scmp.eq.s32.totalorder %s24, 0
    %p51 = por %p49, %p50
    %s53 = sadd.s32 %s52, 1
    %p56 = scmp.eq.s32.totalorder %s18, 1
    %p57 = scmp.ne.s32.totalorder %s52, %s54
    %p58 = scmp.eq.s32.totalorder %s18, 0
    %p59 = por %p57, %p58
    %p60 = scmp.ne.s32.totalorder %s52, %s54
    %p61 = scmp.eq.s32.totalorder %s23, 1
    %p62 = por %p60, %p61
    %p63 = scmp.ne.s32.totalorder %s54, %s55
    %p64 = scmp.eq.s32.totalorder %s23, 0
    %p65 = por %p63, %p64
    %p66 = scmp.ne.s32.totalorder %s54, %s55
    %p67 = scmp.eq.s32.totalorder %s24, 1
    %p68 = por %p66, %p67
    %p70 = scmp.ne.s32.totalorder %s55, %s69
    %p71 = scmp.eq.s32.totalorder %s24, 0
    %p72 = por %p70, %p71
    %s74 = sadd.s32 %s73, 1
    %p77 = scmp.eq.s32.totalorder %s18, 1
    %p78 = scmp.ne.s32.totalorder %s73, %s75
    %p79 = scmp.eq.s32.totalorder %s18, 0
    %p80 = por %p78, %p79
    %p81 = scmp.ne.s32.totalorder %s73, %s75
    %p82 = scmp.eq.s32.totalorder %s23, 1
    %p83 = por %p81, %p82
    %p84 = scmp.ne.s32.totalorder %s75, %s76
    %p85 = scmp.eq.s32.totalorder %s23, 0
    %p86 = por %p84, %p85
    %p87 = scmp.ne.s32.totalorder %s75, %s76
    %p88 = scmp.eq.s32.totalorder %s24, 1
    %p89 = por %p87, %p88
    %p91 = scmp.ne.s32.totalorder %s76, %s90
    %p92 = scmp.eq.s32.totalorder %s24, 0
    %p93 = por %p91, %p92
    %s95 = sadd.s32 %s94, 1
    %p98 = scmp.eq.s32.totalorder %s18, 1
    %p99 = scmp.ne.s32.totalorder %s94, %s96
    %p100 = scmp.eq.s32.totalorder %s18, 0
    %p101 = por %p99, %p100
    %p102 = scmp.ne.s32.totalorder %s94, %s96
    %p103 = scmp.eq.s32.totalorder %s23, 1
    %p104 = por %p102, %p103
    %p105 = scmp.ne.s32.totalorder %s96, %s97
    %p106 = scmp.eq.s32.totalorder %s23, 0
    %p107 = por %p105, %p106
    %p108 = scmp.ne.s32.totalorder %s96, %s97
    %p109 = scmp.eq.s32.totalorder %s24, 1
    %p110 = por %p108, %p109
    %p112 = scmp.ne.s32.totalorder %s97, %s111
    %p113 = scmp.eq.s32.totalorder %s24, 0
    %p114 = por %p112, %p113
    %s116 = sadd.s32 %s115, 1
    %p119 = scmp.eq.s32.totalorder %s18, 1
    %p120 = scmp.ne.s32.totalorder %s115, %s117
    %p121 = scmp.eq.s32.totalorder %s18, 0
    %p122 = por %p120, %p121
    %p123 = scmp.ne.s32.totalorder %s115, %s117
    %p124 = scmp.eq.s32.totalorder %s23, 1
    %p125 = por %p123, %p124
    %p126 = scmp.ne.s32.totalorder %s117, %s118
    %p127 = scmp.eq.s32.totalorder %s23, 0
    %p128 = por %p126, %p127
    %p129 = scmp.ne.s32.totalorder %s117, %s118
    %p130 = scmp.eq.s32.totalorder %s24, 1
    %p131 = por %p129, %p130
    %p133 = scmp.ne.s32.totalorder %s118, %s132
    %p134 = scmp.eq.s32.totalorder %s24, 0
    %p135 = por %p133, %p134
    %s137 = sadd.s32 %s136, 1
    %p140 = scmp.eq.s32.totalorder %s18, 1
    %p141 = scmp.ne.s32.totalorder %s136, %s138
    %p142 = scmp.eq.s32.totalorder %s18, 0
    %p143 = por %p141, %p142
    %p144 = scmp.ne.s32.totalorder %s136, %s138
    %p145 = scmp.eq.s32.totalorder %s23, 1
    %p146 = por %p144, %p145
    %p147 = scmp.ne.s32.totalorder %s138, %s139
    %p148 = scmp.eq.s32.totalorder %s23, 0
    %p149 = por %p147, %p148
    %p150 = scmp.ne.s32.totalorder %s138, %s139
    %p151 = scmp.eq.s32.totalorder %s24, 1
    %p152 = por %p150, %p151
    %p154 = scmp.ne.s32.totalorder %s139, %s153
    %p155 = scmp.eq.s32.totalorder %s24, 0
    %p156 = por %p154, %p155
    %s158 = sadd.s32 %s157, 1
    %p161 = scmp.eq.s32.totalorder %s18, 1
    %p162 = scmp.ne.s32.totalorder %s157, %s159
    %p163 = scmp.eq.s32.totalorder %s18, 0
    %p164 = por %p162, %p163
    %p165 = scmp.ne.s32.totalorder %s157, %s159
    %p166 = scmp.eq.s32.totalorder %s23, 1
    %p167 = por %p165, %p166
    %p168 = scmp.ne.s32.totalorder %s159, %s160
    %p169 = scmp.eq.s32.totalorder %s23, 0
    %p170 = por %p168, %p169
    %p171 = scmp.ne.s32.totalorder %s159, %s160
    %p172 = scmp.eq.s32.totalorder %s24, 1
    %p173 = por %p171, %p172
    %p175 = scmp.ne.s32.totalorder %s160, %s174
    %p176 = scmp.eq.s32.totalorder %s24, 0
    %p177 = por %p175, %p176
    %s179 = sadd.s32 %s178, 1
    %p182 = scmp.eq.s32.totalorder %s18, 1
    %p183 = scmp.ne.s32.totalorder %s178, %s180
    %p184 = scmp.eq.s32.totalorder %s18, 0
    %p185 = por %p183, %p184
    %p186 = scmp.ne.s32.totalorder %s178, %s180
    %p187 = scmp.eq.s32.totalorder %s23, 1
    %p188 = por %p186, %p187
    %p189 = scmp.ne.s32.totalorder %s180, %s181
    %p190 = scmp.eq.s32.totalorder %s23, 0
    %p191 = por %p189, %p190
    %p192 = scmp.ne.s32.totalorder %s180, %s181
    %p193 = scmp.eq.s32.totalorder %s24, 1
    %p194 = por %p192, %p193
    %p196 = scmp.ne.s32.totalorder %s181, %s195
    %p197 = scmp.eq.s32.totalorder %s24, 0
    %p198 = por %p196, %p197
    %s200 = sadd.s32 %s199, 1
    %p203 = scmp.eq.s32.totalorder %s18, 1
    %p204 = scmp.ne.s32.totalorder %s199, %s201
    %p205 = scmp.eq.s32.totalorder %s18, 0
    %p206 = por %p204, %p205
    %p207 = scmp.ne.s32.totalorder %s199, %s201
    %p208 = scmp.eq.s32.totalorder %s23, 1
    %p209 = por %p207, %p208
    %p210 = scmp.ne.s32.totalorder %s201, %s202
    %p211 = scmp.eq.s32.totalorder %s23, 0
    %p212 = por %p210, %p211
    %p213 = scmp.ne.s32.totalorder %s201, %s202
    %p214 = scmp.eq.s32.totalorder %s24, 1
    %p215 = por %p213, %p214
    %p217 = scmp.ne.s32.totalorder %s202, %s216
    %p218 = scmp.eq.s32.totalorder %s24, 0
    %p219 = por %p217, %p218
    %s221 = sadd.s32 %s220, 1
    %p224 = scmp.eq.s32.totalorder %s18, 1
    %p225 = scmp.ne.s32.totalorder %s220, %s222
    %p226 = scmp.eq.s32.totalorder %s18, 0
    %p227 = por %p225, %p226
    %p228 = scmp.ne.s32.totalorder %s220, %s222
    %p229 = scmp.eq.s32.totalorder %s23, 1
    %p230 = por %p228, %p229
    %p231 = scmp.ne.s32.totalorder %s222, %s223
    %p232 = scmp.eq.s32.totalorder %s23, 0
    %p233 = por %p231, %p232
    %p234 = scmp.ne.s32.totalorder %s222, %s223
    %p235 = scmp.eq.s32.totalorder %s24, 1
    %p236 = por %p234, %p235
    %p238 = scmp.ne.s32.totalorder %s223, %s237
    %p239 = scmp.eq.s32.totalorder %s24, 0
    %p240 = por %p238, %p239
    %s242 = sadd.s32 %s241, 1
    %p245 = scmp.eq.s32.totalorder %s18, 1
    %p246 = scmp.ne.s32.totalorder %s241, %s243
    %p247 = scmp.eq.s32.totalorder %s18, 0
    %p248 = por %p246, %p247
    %p249 = scmp.ne.s32.totalorder %s241, %s243
    %p250 = scmp.eq.s32.totalorder %s23, 1
    %p251 = por %p249, %p250
    %p252 = scmp.ne.s32.totalorder %s243, %s244
    %p253 = scmp.eq.s32.totalorder %s23, 0
    %p254 = por %p252, %p253
    %p255 = scmp.ne.s32.totalorder %s243, %s244
    %p256 = scmp.eq.s32.totalorder %s24, 1
    %p257 = por %p255, %p256
    %p259 = scmp.ne.s32.totalorder %s244, %s258
    %p260 = scmp.eq.s32.totalorder %s24, 0
    %p261 = por %p259, %p260
    %s263 = sadd.s32 %s262, 1
    %p266 = scmp.eq.s32.totalorder %s18, 1
    %p267 = scmp.ne.s32.totalorder %s262, %s264
    %p268 = scmp.eq.s32.totalorder %s18, 0
    %p269 = por %p267, %p268
    %p270 = scmp.ne.s32.totalorder %s262, %s264
    %p271 = scmp.eq.s32.totalorder %s23, 1
    %p272 = por %p270, %p271
    %p273 = scmp.ne.s32.totalorder %s264, %s265
    %p274 = scmp.eq.s32.totalorder %s23, 0
    %p275 = por %p273, %p274
    %p276 = scmp.ne.s32.totalorder %s264, %s265
    %p277 = scmp.eq.s32.totalorder %s24, 1
    %p278 = por %p276, %p277
    %p280 = scmp.ne.s32.totalorder %s265, %s279
    %p281 = scmp.eq.s32.totalorder %s24, 0
    %p282 = por %p280, %p281
    %s283 = ssub.s32 %s18, %s25
    %p284 = scmp.eq.s32.totalorder %s283, 0
    %s286 = sadd.s32 %s285, 1
    %s287 = scalar_select %p284, %s285, %s286
    %p290 = pneg %p284
    %p291 = scmp.eq.s32.totalorder %s18, 1
    %p292 = por %p290, %p291
    %p293 = scmp.ne.s32.totalorder %s285, %s288
    %p294 = scmp.eq.s32.totalorder %s18, 0
    %p295 = por %p293, %p294
    %p296 = scmp.ne.s32.totalorder %s285, %s288
    %p297 = scmp.eq.s32.totalorder %s23, 1
    %p298 = por %p296, %p297
    %p299 = scmp.ne.s32.totalorder %s288, %s289
    %p300 = scmp.eq.s32.totalorder %s23, 0
    %p301 = por %p299, %p300
    %p302 = scmp.ne.s32.totalorder %s288, %s289
    %p303 = scmp.eq.s32.totalorder %s24, 1
    %p304 = por %p302, %p303
    %p306 = scmp.ne.s32.totalorder %s289, %s305
    %p307 = scmp.eq.s32.totalorder %s24, 0
    %p308 = por %p306, %p307
    %p309 = scmp.le.s32.totalorder 1, %s18
    %p310 = scmp.lt.s32.totalorder %s18, 3
    %p311 = pnand %p309, %p310
    %p312 = pneg %p311
    // Predicated region
    $region9: #{wav2vec2_feature_wrapper_forward.1} parent=5 // pred_check
      _
    $region10: #{wav2vec2_feature_wrapper_forward.1} parent=5 // pred_check_branch
      %314 = sbr.rel (%p311) target = $region12
    $region11: #{wav2vec2_feature_wrapper_forward.1} parent=5 // pred_region
      %s315 = ssub.s32 %s18, 1
      // Predicated region
      $region13: #{wav2vec2_feature_wrapper_forward.1} parent=11 // pred_check
        %p316 = pneg %p65
      $region14: #{wav2vec2_feature_wrapper_forward.1} parent=11 // pred_check_branch
        %318 = sbr.rel (%p316) target = $region16
      $region15: #{wav2vec2_feature_wrapper_forward.1} parent=11 // pred_region
        _
      $region16: #{wav2vec2_feature_wrapper_forward.1} parent=11 // pred_fallthru
        _
      // Predicated region
      $region17: #{wav2vec2_feature_wrapper_forward.1} parent=11 // pred_check
        %p319 = pneg %p86
      $region18: #{wav2vec2_feature_wrapper_forward.1} parent=11 // pred_check_branch
        %321 = sbr.rel (%p319) target = $region20
      $region19: #{wav2vec2_feature_wrapper_forward.1} parent=11 // pred_region
        _
      $region20: #{wav2vec2_feature_wrapper_forward.1} parent=11 // pred_fallthru
        _
      // Predicated region
      $region21: #{wav2vec2_feature_wrapper_forward.1} parent=11 // pred_check
        %p322 = pneg %p107
      $region22: #{wav2vec2_feature_wrapper_forward.1} parent=11 // pred_check_branch
        %324 = sbr.rel (%p322) target = $region24
      $region23: #{wav2vec2_feature_wrapper_forward.1} parent=11 // pred_region
        _
      $region24: #{wav2vec2_feature_wrapper_forward.1} parent=11 // pred_fallthru
        _
      // Predicated region
      $region25: #{wav2vec2_feature_wrapper_forward.1} parent=11 // pred_check
        %p325 = pneg %p128
      $region26: #{wav2vec2_feature_wrapper_forward.1} parent=11 // pred_check_branch
        %327 = sbr.rel (%p325) target = $region28
      $region27: #{wav2vec2_feature_wrapper_forward.1} parent=11 // pred_region
        _
      $region28: #{wav2vec2_feature_wrapper_forward.1} parent=11 // pred_fallthru
        _
      // Predicated region
      $region29: #{wav2vec2_feature_wrapper_forward.1} parent=11 // pred_check
        %p328 = pneg %p149
      $region30: #{wav2vec2_feature_wrapper_forward.1} parent=11 // pred_check_branch
        %330 = sbr.rel (%p328) target = $region32
      $region31: #{wav2vec2_feature_wrapper_forward.1} parent=11 // pred_region
        _
      $region32: #{wav2vec2_feature_wrapper_forward.1} parent=11 // pred_fallthru
        _
      // Predicated region
      $region33: #{wav2vec2_feature_wrapper_forward.1} parent=11 // pred_check
        %p331 = pneg %p170
      $region34: #{wav2vec2_feature_wrapper_forward.1} parent=11 // pred_check_branch
        %333 = sbr.rel (%p331) target = $region36
      $region35: #{wav2vec2_feature_wrapper_forward.1} parent=11 // pred_region
        _
      $region36: #{wav2vec2_feature_wrapper_forward.1} parent=11 // pred_fallthru
        _
      // Predicated region
      $region37: #{wav2vec2_feature_wrapper_forward.1} parent=11 // pred_check
        %p334 = pneg %p191
      $region38: #{wav2vec2_feature_wrapper_forward.1} parent=11 // pred_check_branch
        %336 = sbr.rel (%p334) target = $region40
      $region39: #{wav2vec2_feature_wrapper_forward.1} parent=11 // pred_region
        _
      $region40: #{wav2vec2_feature_wrapper_forward.1} parent=11 // pred_fallthru
        _
      // Predicated region
      $region41: #{wav2vec2_feature_wrapper_forward.1} parent=11 // pred_check
        %p337 = pneg %p212
      $region42: #{wav2vec2_feature_wrapper_forward.1} parent=11 // pred_check_branch
        %339 = sbr.rel (%p337) target = $region44
      $region43: #{wav2vec2_feature_wrapper_forward.1} parent=11 // pred_region
        _
      $region44: #{wav2vec2_feature_wrapper_forward.1} parent=11 // pred_fallthru
        _
      // Predicated region
      $region45: #{wav2vec2_feature_wrapper_forward.1} parent=11 // pred_check
        %p340 = pneg %p233
      $region46: #{wav2vec2_feature_wrapper_forward.1} parent=11 // pred_check_branch
        %342 = sbr.rel (%p340) target = $region48
      $region47: #{wav2vec2_feature_wrapper_forward.1} parent=11 // pred_region
        _
      $region48: #{wav2vec2_feature_wrapper_forward.1} parent=11 // pred_fallthru
        _
      // Predicated region
      $region49: #{wav2vec2_feature_wrapper_forward.1} parent=11 // pred_check
        %p343 = pneg %p254
      $region50: #{wav2vec2_feature_wrapper_forward.1} parent=11 // pred_check_branch
        %345 = sbr.rel (%p343) target = $region52
      $region51: #{wav2vec2_feature_wrapper_forward.1} parent=11 // pred_region
        _
      $region52: #{wav2vec2_feature_wrapper_forward.1} parent=11 // pred_fallthru
        _
      // Predicated region
      $region53: #{wav2vec2_feature_wrapper_forward.1} parent=11 // pred_check
        %p346 = pneg %p275
      $region54: #{wav2vec2_feature_wrapper_forward.1} parent=11 // pred_check_branch
        %348 = sbr.rel (%p346) target = $region56
      $region55: #{wav2vec2_feature_wrapper_forward.1} parent=11 // pred_region
        _
      $region56: #{wav2vec2_feature_wrapper_forward.1} parent=11 // pred_fallthru
        _
    $region12: #{wav2vec2_feature_wrapper_forward.1} parent=5 // pred_fallthru
      _
    %p349 = scmp.lt.s32.totalorder %s18, 2
    // Predicated region
    $region57: #{wav2vec2_feature_wrapper_forward.1} parent=5 // pred_check
      %p350 = pneg %p349
    $region58: #{wav2vec2_feature_wrapper_forward.1} parent=5 // pred_check_branch
      %352 = sbr.rel (%p350) target = $region60
    $region59: #{wav2vec2_feature_wrapper_forward.1} parent=5 // pred_region
      // Predicated region
      $region61: #{wav2vec2_feature_wrapper_forward.1} parent=59 // pred_check
        %p353 = pneg %p38
      $region62: #{wav2vec2_feature_wrapper_forward.1} parent=59 // pred_check_branch
        %355 = sbr.rel (%p353) target = $region64
      $region63: #{wav2vec2_feature_wrapper_forward.1} parent=59 // pred_region
        %p356 = scmp.lt.s32.totalorder %s18, 1
        %s357 = scalar_select %p356, %s18, 1
        %s358 = smul.addr %s357, 50
        %s359 = smul.addr %s358, 8
        %s360 = scalar_lea.vmem %s0, %s359
      $region64: #{wav2vec2_feature_wrapper_forward.1} parent=59 // pred_fallthru
        _
    $region60: #{wav2vec2_feature_wrapper_forward.1} parent=5 // pred_fallthru
      _
    %p361 = scmp.le.s32.totalorder 1, %s18
    %p362 = scmp.lt.s32.totalorder %s18, 3
    %p363 = pnand %p361, %p362
    %p364 = pneg %p363
    // Predicated region
    $region65: #{wav2vec2_feature_wrapper_forward.1} parent=5 // pred_check
      _
    $region66: #{wav2vec2_feature_wrapper_forward.1} parent=5 // pred_check_branch
      %366 = sbr.rel (%p363) target = $region68
    $region67: #{wav2vec2_feature_wrapper_forward.1} parent=5 // pred_region
      %s367 = ssub.s32 %s18, 1
      %p368 = scmp.lt.s32.totalorder %s23, 1
      %s369 = scalar_select %p368, %s23, 1
      %s370 = smul.addr %s369, 50
      %s371 = smul.addr %s370, 8
      %s372 = scalar_lea.vmem %s0, %s371
      %p373 = pneg %p44
      %p374 = pneg %p41
      %p375 = pneg %p65
      %p376 = pneg %p62
      %p377 = pneg %p86
      %p378 = pneg %p83
      %p379 = pneg %p107
      %p380 = pneg %p104
      %p381 = pneg %p128
      %p382 = pneg %p125
      %p383 = pneg %p149
      %p384 = pneg %p146
      %p385 = pneg %p170
      %p386 = pneg %p167
      %p387 = pneg %p191
      %p388 = pneg %p188
      %p389 = pneg %p212
      %p390 = pneg %p209
      %p391 = pneg %p233
      %p392 = pneg %p230
      %p393 = pneg %p254
      %p394 = pneg %p251
      %p395 = pneg %p275
      %p396 = pneg %p272
      %p397 = pneg %p301
      %p398 = pneg %p298
      %p399 = scmp.lt.s32.totalorder %s23, 1
      %s400 = scalar_select %p399, %s23, 1
      %s401 = smul.addr %s400, 8
      %s402 = scalar_lea.vmem %s12, %s401
      %p403 = scmp.lt.s32.totalorder %s23, 1
      %s404 = scalar_select %p403, %s23, 1
      %s405 = smul.addr %s404, 50
      %s406 = smul.addr %s405, 8
      %s407 = scalar_lea.vmem %s0, %s406
      %p408 = scmp.lt.s32.totalorder %s23, 1
      %s409 = scalar_select %p408, %s23, 1
      %s410 = smul.addr %s409, 8
      %s411 = scalar_lea.vmem %s12, %s410
      %v413 = vld [vmem:[%s407] sm:$0xff]
      %v414 = vld [vmem:[%s407 + $0x8] sm:$0xff]
      %v415 = vld [vmem:[%s407 + $0x10] sm:$0xff]
      %v416 = vld [vmem:[%s407 + $0x18] sm:$0xff]
      %v417 = vld [vmem:[%s407 + $0x20] sm:$0xff]
      %v418 = vld [vmem:[%s407 + $0x28] sm:$0xff]
      %v419 = vld [vmem:[%s407 + $0x30] sm:$0xff]
      %v420 = vld [vmem:[%s407 + $0x38] sm:$0xff]
      %v421 = vld [vmem:[%s407 + $0x40] sm:$0xff]
      %v422 = vld [vmem:[%s407 + $0x48] sm:$0xff]
      %v423 = vld [vmem:[%s407 + $0x50] sm:$0xff]
      %v424 = vld [vmem:[%s407 + $0x58] sm:$0xff]
      %v425 = vld [vmem:[%s407 + $0x60] sm:$0xff]
      %v426 = vld [vmem:[%s407 + $0x68] sm:$0xff]
      %v427 = vld [vmem:[%s407 + $0x70] sm:$0xff]
      %v428 = vld [vmem:[%s407 + $0x78] sm:$0xff]
      %v429 = vld [vmem:[%s407 + $0x80] sm:$0xff]
      %v430 = vld [vmem:[%s407 + $0x88] sm:$0xff]
      %v431 = vld [vmem:[%s407 + $0x90] sm:$0xff]
      %v432 = vld [vmem:[%s407 + $0x98] sm:$0xff]
      %v433 = vld [vmem:[%s407 + $0xa0] sm:$0xff]
      %v434 = vld [vmem:[%s407 + $0xa8] sm:$0xff]
      %v435 = vld [vmem:[%s407 + $0xb0] sm:$0xff]
      %v436 = vld [vmem:[%s407 + $0xb8] sm:$0xff]
      %v437 = vld [vmem:[%s407 + $0xc0] sm:$0xff]
      %v438 = vld [vmem:[%s407 + $0xc8] sm:$0xff]
      %v439 = vld [vmem:[%s407 + $0xd0] sm:$0xff]
      %v440 = vld [vmem:[%s407 + $0xd8] sm:$0xff]
      %v441 = vld [vmem:[%s407 + $0xe0] sm:$0xff]
      %v442 = vld [vmem:[%s407 + $0xe8] sm:$0xff]
      %v443 = vld [vmem:[%s407 + $0xf0] sm:$0xff]
      %v444 = vld [vmem:[%s407 + $0xf8] sm:$0xff]
      %v445 = vld [vmem:[%s407 + $0x100] sm:$0xff]
      %v446 = vld [vmem:[%s407 + $0x108] sm:$0xff]
      %v447 = vld [vmem:[%s407 + $0x110] sm:$0xff]
      %v448 = vld [vmem:[%s407 + $0x118] sm:$0xff]
      %v449 = vld [vmem:[%s407 + $0x120] sm:$0xff]
      %v450 = vld [vmem:[%s407 + $0x128] sm:$0xff]
      %v451 = vld [vmem:[%s407 + $0x130] sm:$0xff]
      %v452 = vld [vmem:[%s407 + $0x138] sm:$0xff]
      %v453 = vld [vmem:[%s407 + $0x140] sm:$0xff]
      %v454 = vld [vmem:[%s407 + $0x148] sm:$0xff]
      %v455 = vld [vmem:[%s407 + $0x150] sm:$0xff]
      %v456 = vld [vmem:[%s407 + $0x158] sm:$0xff]
      %v457 = vld [vmem:[%s407 + $0x160] sm:$0xff]
      %v458 = vld [vmem:[%s407 + $0x168] sm:$0xff]
      %v459 = vld [vmem:[%s407 + $0x170] sm:$0xff]
      %v460 = vld [vmem:[%s407 + $0x178] sm:$0xff]
      %v461 = vld [vmem:[%s407 + $0x180] sm:$0xff]
      %v462 = vld [vmem:[%s407 + $0x188] sm:$0xff]
      %vm513 = vcmask 1046528
      %v514 = vrot.slane %v413, 1
      %v515 = vrot.slane %v414, 1
      %v516 = vsel %vm513, %v514, %v515
      %v517 = vrot.slane %v415, 1
      %v518 = vsel %vm513, %v515, %v517
      %v519 = vrot.slane %v416, 1
      %v520 = vsel %vm513, %v517, %v519
      %v521 = vrot.slane %v417, 1
      %v522 = vsel %vm513, %v519, %v521
      %v523 = vrot.slane %v418, 1
      %v524 = vsel %vm513, %v521, %v523
      %v525 = vrot.slane %v419, 1
      %v526 = vsel %vm513, %v523, %v525
      %v527 = vrot.slane %v420, 1
      %v528 = vsel %vm513, %v525, %v527
      %v529 = vrot.slane %v421, 1
      %v530 = vsel %vm513, %v527, %v529
      %v531 = vrot.slane %v422, 1
      %v532 = vsel %vm513, %v529, %v531
      %v533 = vrot.slane %v423, 1
      %v534 = vsel %vm513, %v531, %v533
      %v535 = vrot.slane %v424, 1
      %v536 = vsel %vm513, %v533, %v535
      %v537 = vrot.slane %v425, 1
      %v538 = vsel %vm513, %v535, %v537
      %v539 = vrot.slane %v426, 1
      %v540 = vsel %vm513, %v537, %v539
      %v541 = vrot.slane %v427, 1
      %v542 = vsel %vm513, %v539, %v541
      %v543 = vrot.slane %v428, 1
      %v544 = vsel %vm513, %v541, %v543
      %v545 = vrot.slane %v429, 1
      %v546 = vsel %vm513, %v543, %v545
      %v547 = vrot.slane %v430, 1
      %v548 = vsel %vm513, %v545, %v547
      %v549 = vrot.slane %v431, 1
      %v550 = vsel %vm513, %v547, %v549
      %v551 = vrot.slane %v432, 1
      %v552 = vsel %vm513, %v549, %v551
      %v553 = vrot.slane %v433, 1
      %v554 = vsel %vm513, %v551, %v553
      %v555 = vrot.slane %v434, 1
      %v556 = vsel %vm513, %v553, %v555
      %v557 = vrot.slane %v435, 1
      %v558 = vsel %vm513, %v555, %v557
      %v559 = vrot.slane %v436, 1
      %v560 = vsel %vm513, %v557, %v559
      %v561 = vrot.slane %v437, 1
      %v562 = vsel %vm513, %v559, %v561
      %v563 = vrot.slane %v438, 1
      %v564 = vsel %vm513, %v561, %v563
      %v565 = vrot.slane %v439, 1
      %v566 = vsel %vm513, %v563, %v565
      %v567 = vrot.slane %v440, 1
      %v568 = vsel %vm513, %v565, %v567
      %v569 = vrot.slane %v441, 1
      %v570 = vsel %vm513, %v567, %v569
      %v571 = vrot.slane %v442, 1
      %v572 = vsel %vm513, %v569, %v571
      %v573 = vrot.slane %v443, 1
      %v574 = vsel %vm513, %v571, %v573
      %v575 = vrot.slane %v444, 1
      %v576 = vsel %vm513, %v573, %v575
      %v577 = vrot.slane %v445, 1
      %v578 = vsel %vm513, %v575, %v577
      %v579 = vrot.slane %v446, 1
      %v580 = vsel %vm513, %v577, %v579
      %v581 = vrot.slane %v447, 1
      %v582 = vsel %vm513, %v579, %v581
      %v583 = vrot.slane %v448, 1
      %v584 = vsel %vm513, %v581, %v583
      %v585 = vrot.slane %v449, 1
      %v586 = vsel %vm513, %v583, %v585
      %v587 = vrot.slane %v450, 1
      %v588 = vsel %vm513, %v585, %v587
      %v589 = vrot.slane %v451, 1
      %v590 = vsel %vm513, %v587, %v589
      %v591 = vrot.slane %v452, 1
      %v592 = vsel %vm513, %v589, %v591
      %v593 = vrot.slane %v453, 1
      %v594 = vsel %vm513, %v591, %v593
      %v595 = vrot.slane %v454, 1
      %v596 = vsel %vm513, %v593, %v595
      %v597 = vrot.slane %v455, 1
      %v598 = vsel %vm513, %v595, %v597
      %v599 = vrot.slane %v456, 1
      %v600 = vsel %vm513, %v597, %v599
      %v601 = vrot.slane %v457, 1
      %v602 = vsel %vm513, %v599, %v601
      %v603 = vrot.slane %v458, 1
      %v604 = vsel %vm513, %v601, %v603
      %v605 = vrot.slane %v459, 1
      %v606 = vsel %vm513, %v603, %v605
      %v607 = vrot.slane %v460, 1
      %v608 = vsel %vm513, %v605, %v607
      %v609 = vrot.slane %v461, 1
      %v610 = vsel %vm513, %v607, %v609
      %v611 = vrot.slane %v462, 1
      %v612 = vsel %vm513, %v609, %v611
      %613 = vrot.lane.b32.xlu0 %v516, 5
      %v614 = vpop.permute.xlu0 %613
      %615 = vrot.lane.b32.xlu0 %v518, 5
      %v616 = vpop.permute.xlu0 %615
      %617 = vrot.lane.b32.xlu0 %v520, 5
      %v618 = vpop.permute.xlu0 %617
      %619 = vrot.lane.b32.xlu0 %v522, 5
      %v620 = vpop.permute.xlu0 %619
      %621 = vrot.lane.b32.xlu0 %v524, 5
      %v622 = vpop.permute.xlu0 %621
      %623 = vrot.lane.b32.xlu0 %v526, 5
      %v624 = vpop.permute.xlu0 %623
      %625 = vrot.lane.b32.xlu0 %v528, 5
      %v626 = vpop.permute.xlu0 %625
      %627 = vrot.lane.b32.xlu0 %v530, 5
      %v628 = vpop.permute.xlu0 %627
      %629 = vrot.lane.b32.xlu0 %v532, 5
      %v630 = vpop.permute.xlu0 %629
      %631 = vrot.lane.b32.xlu0 %v534, 5
      %v632 = vpop.permute.xlu0 %631
      %633 = vrot.lane.b32.xlu0 %v536, 5
      %v634 = vpop.permute.xlu0 %633
      %635 = vrot.lane.b32.xlu0 %v538, 5
      %v636 = vpop.permute.xlu0 %635
      %637 = vrot.lane.b32.xlu0 %v540, 5
      %v638 = vpop.permute.xlu0 %637
      %639 = vrot.lane.b32.xlu0 %v542, 5
      %v640 = vpop.permute.xlu0 %639
      %641 = vrot.lane.b32.xlu0 %v544, 5
      %v642 = vpop.permute.xlu0 %641
      %643 = vrot.lane.b32.xlu0 %v546, 5
      %v644 = vpop.permute.xlu0 %643
      %645 = vrot.lane.b32.xlu0 %v548, 5
      %v646 = vpop.permute.xlu0 %645
      %647 = vrot.lane.b32.xlu0 %v550, 5
      %v648 = vpop.permute.xlu0 %647
      %649 = vrot.lane.b32.xlu0 %v552, 5
      %v650 = vpop.permute.xlu0 %649
      %651 = vrot.lane.b32.xlu0 %v554, 5
      %v652 = vpop.permute.xlu0 %651
      %653 = vrot.lane.b32.xlu0 %v556, 5
      %v654 = vpop.permute.xlu0 %653
      %655 = vrot.lane.b32.xlu0 %v558, 5
      %v656 = vpop.permute.xlu0 %655
      %657 = vrot.lane.b32.xlu0 %v560, 5
      %v658 = vpop.permute.xlu0 %657
      %659 = vrot.lane.b32.xlu0 %v562, 5
      %v660 = vpop.permute.xlu0 %659
      %661 = vrot.lane.b32.xlu0 %v564, 5
      %v662 = vpop.permute.xlu0 %661
      %663 = vrot.lane.b32.xlu0 %v566, 5
      %v664 = vpop.permute.xlu0 %663
      %665 = vrot.lane.b32.xlu0 %v568, 5
      %v666 = vpop.permute.xlu0 %665
      %667 = vrot.lane.b32.xlu0 %v570, 5
      %v668 = vpop.permute.xlu0 %667
      %669 = vrot.lane.b32.xlu0 %v572, 5
      %v670 = vpop.permute.xlu0 %669
      %671 = vrot.lane.b32.xlu0 %v574, 5
      %v672 = vpop.permute.xlu0 %671
      %673 = vrot.lane.b32.xlu0 %v576, 5
      %v674 = vpop.permute.xlu0 %673
      %675 = vrot.lane.b32.xlu0 %v578, 5
      %v676 = vpop.permute.xlu0 %675
      %677 = vrot.lane.b32.xlu0 %v580, 5
      %v678 = vpop.permute.xlu0 %677
      %679 = vrot.lane.b32.xlu0 %v582, 5
      %v680 = vpop.permute.xlu0 %679
      %681 = vrot.lane.b32.xlu0 %v584, 5
      %v682 = vpop.permute.xlu0 %681
      %683 = vrot.lane.b32.xlu0 %v586, 5
      %v684 = vpop.permute.xlu0 %683
      %685 = vrot.lane.b32.xlu0 %v588, 5
      %v686 = vpop.permute.xlu0 %685
      %687 = vrot.lane.b32.xlu0 %v590, 5
      %v688 = vpop.permute.xlu0 %687
      %689 = vrot.lane.b32.xlu0 %v592, 5
      %v690 = vpop.permute.xlu0 %689
      %691 = vrot.lane.b32.xlu0 %v594, 5
      %v692 = vpop.permute.xlu0 %691
      %693 = vrot.lane.b32.xlu0 %v596, 5
      %v694 = vpop.permute.xlu0 %693
      %695 = vrot.lane.b32.xlu0 %v598, 5
      %v696 = vpop.permute.xlu0 %695
      %697 = vrot.lane.b32.xlu0 %v600, 5
      %v698 = vpop.permute.xlu0 %697
      %699 = vrot.lane.b32.xlu0 %v602, 5
      %v700 = vpop.permute.xlu0 %699
      %701 = vrot.lane.b32.xlu0 %v604, 5
      %v702 = vpop.permute.xlu0 %701
      %703 = vrot.lane.b32.xlu0 %v606, 5
      %v704 = vpop.permute.xlu0 %703
      %705 = vrot.lane.b32.xlu0 %v608, 5
      %v706 = vpop.permute.xlu0 %705
      %707 = vrot.lane.b32.xlu0 %v610, 5
      %v708 = vpop.permute.xlu0 %707
      %709 = vrot.lane.b32.xlu0 %v612, 5
      %v710 = vpop.permute.xlu0 %709
      %711 = vrot.lane.b32.xlu0 %v611, 5
      %v712 = vpop.permute.xlu0 %711
      %vm763 = vcmask 39936
      %v764 = vsel %vm763, %v413, %v614
      %v765 = vsel %vm763, %v414, %v616
      %v766 = vsel %vm763, %v415, %v618
      %v767 = vsel %vm763, %v416, %v620
      %v768 = vsel %vm763, %v417, %v622
      %v769 = vsel %vm763, %v418, %v624
      %v770 = vsel %vm763, %v419, %v626
      %v771 = vsel %vm763, %v420, %v628
      %v772 = vsel %vm763, %v421, %v630
      %v773 = vsel %vm763, %v422, %v632
      %v774 = vsel %vm763, %v423, %v634
      %v775 = vsel %vm763, %v424, %v636
      %v776 = vsel %vm763, %v425, %v638
      %v777 = vsel %vm763, %v426, %v640
      %v778 = vsel %vm763, %v427, %v642
      %v779 = vsel %vm763, %v428, %v644
      %v780 = vsel %vm763, %v429, %v646
      %v781 = vsel %vm763, %v430, %v648
      %v782 = vsel %vm763, %v431, %v650
      %v783 = vsel %vm763, %v432, %v652
      %v784 = vsel %vm763, %v433, %v654
      %v785 = vsel %vm763, %v434, %v656
      %v786 = vsel %vm763, %v435, %v658
      %v787 = vsel %vm763, %v436, %v660
      %v788 = vsel %vm763, %v437, %v662
      %v789 = vsel %vm763, %v438, %v664
      %v790 = vsel %vm763, %v439, %v666
      %v791 = vsel %vm763, %v440, %v668
      %v792 = vsel %vm763, %v441, %v670
      %v793 = vsel %vm763, %v442, %v672
      %v794 = vsel %vm763, %v443, %v674
      %v795 = vsel %vm763, %v444, %v676
      %v796 = vsel %vm763, %v445, %v678
      %v797 = vsel %vm763, %v446, %v680
      %v798 = vsel %vm763, %v447, %v682
      %v799 = vsel %vm763, %v448, %v684
      %v800 = vsel %vm763, %v449, %v686
      %v801 = vsel %vm763, %v450, %v688
      %v802 = vsel %vm763, %v451, %v690
      %v803 = vsel %vm763, %v452, %v692
      %v804 = vsel %vm763, %v453, %v694
      %v805 = vsel %vm763, %v454, %v696
      %v806 = vsel %vm763, %v455, %v698
      %v807 = vsel %vm763, %v456, %v700
      %v808 = vsel %vm763, %v457, %v702
      %v809 = vsel %vm763, %v458, %v704
      %v810 = vsel %vm763, %v459, %v706
      %v811 = vsel %vm763, %v460, %v708
      %v812 = vsel %vm763, %v461, %v710
      %v813 = vsel %vm763, %v462, %v712
      %v814 = vpack.c.bf16 %v765, %v764
      %v815 = vpack.c.bf16 %v767, %v766
      %v816 = vpack.c.bf16 %v769, %v768
      %v817 = vpack.c.bf16 %v771, %v770
      %v818 = vpack.c.bf16 %v773, %v772
      %v819 = vpack.c.bf16 %v775, %v774
      %v820 = vpack.c.bf16 %v777, %v776
      %v821 = vpack.c.bf16 %v779, %v778
      %v822 = vpack.c.bf16 %v781, %v780
      %v823 = vpack.c.bf16 %v783, %v782
      %v824 = vpack.c.bf16 %v785, %v784
      %v825 = vpack.c.bf16 %v787, %v786
      %v826 = vpack.c.bf16 %v789, %v788
      %v827 = vpack.c.bf16 %v791, %v790
      %v828 = vpack.c.bf16 %v793, %v792
      %v829 = vpack.c.bf16 %v795, %v794
      %v830 = vpack.c.bf16 %v797, %v796
      %v831 = vpack.c.bf16 %v799, %v798
      %v832 = vpack.c.bf16 %v801, %v800
      %v833 = vpack.c.bf16 %v803, %v802
      %v834 = vpack.c.bf16 %v805, %v804
      %v835 = vpack.c.bf16 %v807, %v806
      %v836 = vpack.c.bf16 %v809, %v808
      %v837 = vpack.c.bf16 %v811, %v810
      %v838 = vpack.c.bf16 %v813, %v812
      %v839 = vld [vmem:[%s1] sm:$0xf]
      %v840 = vld [vmem:[%s1 + $0x4] sm:$0x1]
      %v843 = vunpack.c.l.b16 %v839
      %v844 = vunpack.c.l.b16 %v840
      %v845 = vpack.c.b16 %v844, %v843
      %vm846 = vcmask 80896
      %v848 = vsel %vm846, %v814, 0
      %v851 = vsel %vm846, %v815, 0
      %v854 = vsel %vm846, %v816, 0
      %v857 = vsel %vm846, %v817, 0
      %v860 = vsel %vm846, %v818, 0
      %v863 = vsel %vm846, %v819, 0
      %v866 = vsel %vm846, %v820, 0
      %v869 = vsel %vm846, %v821, 0
      %v872 = vsel %vm846, %v822, 0
      %v875 = vsel %vm846, %v823, 0
      %v878 = vsel %vm846, %v824, 0
      %v881 = vsel %vm846, %v825, 0
      %v884 = vsel %vm846, %v826, 0
      %v887 = vsel %vm846, %v827, 0
      %v890 = vsel %vm846, %v828, 0
      %v893 = vsel %vm846, %v829, 0
      %v896 = vsel %vm846, %v830, 0
      %v899 = vsel %vm846, %v831, 0
      %v902 = vsel %vm846, %v832, 0
      %v905 = vsel %vm846, %v833, 0
      %v908 = vsel %vm846, %v834, 0
      %v911 = vsel %vm846, %v835, 0
      %v914 = vsel %vm846, %v836, 0
      %v917 = vsel %vm846, %v837, 0
      %v920 = vsel %vm846, %v838, 0
      %vm922 = vcmask 1044480
      %v924 = vsel %vm922, %v845, 0
      %926 = vmatprep.subr.bf16.mxu0 0
      %927 = vmatpush1.bf16.msra.mxu0 0
      %928 = vmatprep.subr.bf16.mxu0 0
      %929 = vmatpush1.bf16.msra.mxu0 0
      %930 = vmatprep.subr.bf16.mxu0 0
      %931 = vmatpush1.bf16.msra.mxu0 0
      %932 = vmatprep.subr.bf16.mxu0 0
      %933 = vmatpush1.bf16.msra.mxu0 0
      %934 = vmatprep.subr.bf16.mxu0 0
      %935 = vmatpush1.bf16.msra.mxu0 0
      %936 = vmatprep.subr.bf16.mxu0 0
      %937 = vmatpush1.bf16.msra.mxu0 0
      %938 = vmatprep.subr.bf16.mxu0 0
      %939 = vmatpush1.bf16.msra.mxu0 0
      %940 = vmatprep.subr.bf16.mxu0 0
      %941 = vmatpush1.bf16.msra.mxu0 %v924
      %942 = vmatprep.subr.bf16.mxu0 0
      %943 = vmatpush2.bf16.msra.mxu0 0
      %944 = vmatprep.subr.bf16.mxu0 0
      %945 = vmatpush2.bf16.msra.mxu0 0
      %946 = vmatprep.subr.bf16.mxu0 0
      %947 = vmatpush2.bf16.msra.mxu0 0
      %948 = vmatprep.subr.bf16.mxu0 0
      %949 = vmatpush2.bf16.msra.mxu0 0
      %950 = vmatprep.subr.bf16.mxu0 0
      %951 = vmatpush2.bf16.msra.mxu0 0
      %952 = vmatprep.subr.bf16.mxu0 0
      %953 = vmatpush2.bf16.msra.mxu0 0
      %954 = vmatprep.subr.bf16.mxu0 0
      %955 = vmatpush2.bf16.msra.mxu0 0
      %956 = vmatprep.subr.bf16.mxu0 0
      %957 = vmatpush2.bf16.msra.mxu0 0
      %958 = vmatprep.mubr.bf16.mxu0 0
      %959 = vmatmul.mubr.bf16.gmra.mxu0 %v848
      %v960 = vpop.f32.mrf.mxu0
      %v961 = vadd.f32 0.0, %v960
      %v962 = vpop.f32.mrf.mxu0
      %v963 = vpop.f32.mrf.mxu0
      %v964 = vadd.f32 0.0, %v963
      %v965 = vpop.f32.mrf.mxu0
      %966 = vmatprep.mubr.bf16.mxu0 0
      %967 = vmatmul.mubr.bf16.gmra.mxu0 %v851
      %v968 = vpop.f32.mrf.mxu0
      %v969 = vadd.f32 0.0, %v968
      %v970 = vpop.f32.mrf.mxu0
      %v971 = vpop.f32.mrf.mxu0
      %v972 = vadd.f32 0.0, %v971
      %v973 = vpop.f32.mrf.mxu0
      %974 = vmatprep.mubr.bf16.mxu0 0
      %975 = vmatmul.mubr.bf16.gmra.mxu0 %v854
      %v976 = vpop.f32.mrf.mxu0
      %v977 = vadd.f32 0.0, %v976
      %v978 = vpop.f32.mrf.mxu0
      %v979 = vpop.f32.mrf.mxu0
      %v980 = vadd.f32 0.0, %v979
      %v981 = vpop.f32.mrf.mxu0
      %982 = vmatprep.mubr.bf16.mxu0 0
      %983 = vmatmul.mubr.bf16.gmra.mxu0 %v857
      %v984 = vpop.f32.mrf.mxu0
      %v985 = vadd.f32 0.0, %v984
      %v986 = vpop.f32.mrf.mxu0
      %v987 = vpop.f32.mrf.mxu0
      %v988 = vadd.f32 0.0, %v987
      %v989 = vpop.f32.mrf.mxu0
      %990 = vmatprep.mubr.bf16.mxu0 0
      %991 = vmatmul.mubr.bf16.gmra.mxu0 %v860
      %v992 = vpop.f32.mrf.mxu0
      %v993 = vadd.f32 0.0, %v992
      %v994 = vpop.f32.mrf.mxu0
      %v995 = vpop.f32.mrf.mxu0
      %v996 = vadd.f32 0.0, %v995
      %v997 = vpop.f32.mrf.mxu0
      %998 = vmatprep.mubr.bf16.mxu0 0
      %999 = vmatmul.mubr.bf16.gmra.mxu0 %v863
      %v1000 = vpop.f32.mrf.mxu0
      %v1001 = vadd.f32 0.0, %v1000
      %v1002 = vpop.f32.mrf.mxu0
      %v1003 = vpop.f32.mrf.mxu0
      %v1004 = vadd.f32 0.0, %v1003
      %v1005 = vpop.f32.mrf.mxu0
      %1006 = vmatprep.mubr.bf16.mxu0 0
      %1007 = vmatmul.mubr.bf16.gmra.mxu0 %v866
      %v1008 = vpop.f32.mrf.mxu0
      %v1009 = vadd.f32 0.0, %v1008
      %v1010 = vpop.f32.mrf.mxu0
      %v1011 = vpop.f32.mrf.mxu0
      %v1012 = vadd.f32 0.0, %v1011
      %v1013 = vpop.f32.mrf.mxu0
      %1014 = vmatprep.mubr.bf16.mxu0 0
      %1015 = vmatmul.mubr.bf16.gmra.mxu0 %v869
      %v1016 = vpop.f32.mrf.mxu0
      %v1017 = vadd.f32 0.0, %v1016
      %v1018 = vpop.f32.mrf.mxu0
      %v1019 = vpop.f32.mrf.mxu0
      %v1020 = vadd.f32 0.0, %v1019
      %v1021 = vpop.f32.mrf.mxu0
      %1022 = vmatprep.mubr.bf16.mxu0 0
      %1023 = vmatmul.mubr.bf16.gmra.mxu0 %v872
      %v1024 = vpop.f32.mrf.mxu0
      %v1025 = vadd.f32 0.0, %v1024
      %v1026 = vpop.f32.mrf.mxu0
      %v1027 = vpop.f32.mrf.mxu0
      %v1028 = vadd.f32 0.0, %v1027
      %v1029 = vpop.f32.mrf.mxu0
      %1030 = vmatprep.mubr.bf16.mxu0 0
      %1031 = vmatmul.mubr.bf16.gmra.mxu0 %v875
      %v1032 = vpop.f32.mrf.mxu0
      %v1033 = vadd.f32 0.0, %v1032
      %v1034 = vpop.f32.mrf.mxu0
      %v1035 = vpop.f32.mrf.mxu0
      %v1036 = vadd.f32 0.0, %v1035
      %v1037 = vpop.f32.mrf.mxu0
      %1038 = vmatprep.mubr.bf16.mxu0 0
      %1039 = vmatmul.mubr.bf16.gmra.mxu0 %v878
      %v1040 = vpop.f32.mrf.mxu0
      %v1041 = vadd.f32 0.0, %v1040
      %v1042 = vpop.f32.mrf.mxu0
      %v1043 = vpop.f32.mrf.mxu0
      %v1044 = vadd.f32 0.0, %v1043
      %v1045 = vpop.f32.mrf.mxu0
      %1046 = vmatprep.mubr.bf16.mxu0 0
      %1047 = vmatmul.mubr.bf16.gmra.mxu0 %v881
      %v1048 = vpop.f32.mrf.mxu0
      %v1049 = vadd.f32 0.0, %v1048
      %v1050 = vpop.f32.mrf.mxu0
      %v1051 = vpop.f32.mrf.mxu0
      %v1052 = vadd.f32 0.0, %v1051
      %v1053 = vpop.f32.mrf.mxu0
      %1054 = vmatprep.mubr.bf16.mxu0 0
      %1055 = vmatmul.mubr.bf16.gmra.mxu0 %v884
      %v1056 = vpop.f32.mrf.mxu0
      %v1057 = vadd.f32 0.0, %v1056
      %v1058 = vpop.f32.mrf.mxu0
      %v1059 = vpop.f32.mrf.mxu0
      %v1060 = vadd.f32 0.0, %v1059
      %v1061 = vpop.f32.mrf.mxu0
      %1062 = vmatprep.mubr.bf16.mxu0 0
      %1063 = vmatmul.mubr.bf16.gmra.mxu0 %v887
      %v1064 = vpop.f32.mrf.mxu0
      %v1065 = vadd.f32 0.0, %v1064
      %v1066 = vpop.f32.mrf.mxu0
      %v1067 = vpop.f32.mrf.mxu0
      %v1068 = vadd.f32 0.0, %v1067
      %v1069 = vpop.f32.mrf.mxu0
      %1070 = vmatprep.mubr.bf16.mxu0 0
      %1071 = vmatmul.mubr.bf16.gmra.mxu0 %v890
      %v1072 = vpop.f32.mrf.mxu0
      %v1073 = vadd.f32 0.0, %v1072
      %v1074 = vpop.f32.mrf.mxu0
      %v1075 = vpop.f32.mrf.mxu0
      %v1076 = vadd.f32 0.0, %v1075
      %v1077 = vpop.f32.mrf.mxu0
      %1078 = vmatprep.mubr.bf16.mxu0 0
      %1079 = vmatmul.mubr.bf16.gmra.mxu0 %v893
      %v1080 = vpop.f32.mrf.mxu0
      %v1081 = vadd.f32 0.0, %v1080
      %v1082 = vpop.f32.mrf.mxu0
      %v1083 = vpop.f32.mrf.mxu0
      %v1084 = vadd.f32 0.0, %v1083
      %v1085 = vpop.f32.mrf.mxu0
      %1086 = vmatprep.mubr.bf16.mxu0 0
      %1087 = vmatmul.mubr.bf16.gmra.mxu0 %v896
      %v1088 = vpop.f32.mrf.mxu0
      %v1089 = vadd.f32 0.0, %v1088
      %v1090 = vpop.f32.mrf.mxu0
      %v1091 = vpop.f32.mrf.mxu0
      %v1092 = vadd.f32 0.0, %v1091
      %v1093 = vpop.f32.mrf.mxu0
      %1094 = vmatprep.mubr.bf16.mxu0 0
      %1095 = vmatmul.mubr.bf16.gmra.mxu0 %v899
      %v1096 = vpop.f32.mrf.mxu0
      %v1097 = vadd.f32 0.0, %v1096
      %v1098 = vpop.f32.mrf.mxu0
      %v1099 = vpop.f32.mrf.mxu0
      %v1100 = vadd.f32 0.0, %v1099
      %v1101 = vpop.f32.mrf.mxu0
      %1102 = vmatprep.mubr.bf16.mxu0 0
      %1103 = vmatmul.mubr.bf16.gmra.mxu0 %v902
      %v1104 = vpop.f32.mrf.mxu0
      %v1105 = vadd.f32 0.0, %v1104
      %v1106 = vpop.f32.mrf.mxu0
      %v1107 = vpop.f32.mrf.mxu0
      %v1108 = vadd.f32 0.0, %v1107
      %v1109 = vpop.f32.mrf.mxu0
      %1110 = vmatprep.mubr.bf16.mxu0 0
      %1111 = vmatmul.mubr.bf16.gmra.mxu0 %v905
      %v1112 = vpop.f32.mrf.mxu0
      %v1113 = vadd.f32 0.0, %v1112
      %v1114 = vpop.f32.mrf.mxu0
      %v1115 = vpop.f32.mrf.mxu0
      %v1116 = vadd.f32 0.0, %v1115
      %v1117 = vpop.f32.mrf.mxu0
      %1118 = vmatprep.mubr.bf16.mxu0 0
      %1119 = vmatmul.mubr.bf16.gmra.mxu0 %v908
      %v1120 = vpop.f32.mrf.mxu0
      %v1121 = vadd.f32 0.0, %v1120
      %v1122 = vpop.f32.mrf.mxu0
      %v1123 = vpop.f32.mrf.mxu0
      %v1124 = vadd.f32 0.0, %v1123
      %v1125 = vpop.f32.mrf.mxu0
      %1126 = vmatprep.mubr.bf16.mxu0 0
      %1127 = vmatmul.mubr.bf16.gmra.mxu0 %v911
      %v1128 = vpop.f32.mrf.mxu0
      %v1129 = vadd.f32 0.0, %v1128
      %v1130 = vpop.f32.mrf.mxu0
      %v1131 = vpop.f32.mrf.mxu0
      %v1132 = vadd.f32 0.0, %v1131
      %v1133 = vpop.f32.mrf.mxu0
      %1134 = vmatprep.mubr.bf16.mxu0 0
      %1135 = vmatmul.mubr.bf16.gmra.mxu0 %v914
      %v1136 = vpop.f32.mrf.mxu0
      %v1137 = vadd.f32 0.0, %v1136
      %v1138 = vpop.f32.mrf.mxu0
      %v1139 = vpop.f32.mrf.mxu0
      %v1140 = vadd.f32 0.0, %v1139
      %v1141 = vpop.f32.mrf.mxu0
      %1142 = vmatprep.mubr.bf16.mxu0 0
      %1143 = vmatmul.mubr.bf16.gmra.mxu0 %v917
      %v1144 = vpop.f32.mrf.mxu0
      %v1145 = vadd.f32 0.0, %v1144
      %v1146 = vpop.f32.mrf.mxu0
      %v1147 = vpop.f32.mrf.mxu0
      %v1148 = vadd.f32 0.0, %v1147
      %v1149 = vpop.f32.mrf.mxu0
      %1150 = vmatprep.mubr.bf16.mxu0 0
      %1151 = vmatmul.mubr.bf16.gmra.mxu0 %v920
      %v1152 = vpop.f32.mrf.mxu0
      %v1153 = vadd.f32 0.0, %v1152
      %v1154 = vpop.f32.mrf.mxu0
      %v1155 = vpop.f32.mrf.mxu0
      %v1156 = vadd.f32 0.0, %v1155
      %v1157 = vpop.f32.mrf.mxu0
      %1158 = vdwg.mxu0
      %vm1159 = vcmask 523264
      %v1160 = vsel %vm1159, %v961, 0.0
      %v1161 = vsel %vm1159, %v964, 0.0
      %v1162 = vadd.f32 %v1160, %v1161
      %v1163 = vsel %vm1159, %v969, 0.0
      %v1164 = vadd.f32 %v1162, %v1163
      %v1165 = vsel %vm1159, %v972, 0.0
      %v1166 = vadd.f32 %v1164, %v1165
      %v1167 = vsel %vm1159, %v977, 0.0
      %v1168 = vadd.f32 %v1166, %v1167
      %v1169 = vsel %vm1159, %v980, 0.0
      %v1170 = vadd.f32 %v1168, %v1169
      %v1171 = vsel %vm1159, %v985, 0.0
      %v1172 = vadd.f32 %v1170, %v1171
      %v1173 = vsel %vm1159, %v988, 0.0
      %v1174 = vadd.f32 %v1172, %v1173
      %v1175 = vsel %vm1159, %v993, 0.0
      %v1176 = vadd.f32 %v1174, %v1175
      %v1177 = vsel %vm1159, %v996, 0.0
      %v1178 = vadd.f32 %v1176, %v1177
      %v1179 = vsel %vm1159, %v1001, 0.0
      %v1180 = vadd.f32 %v1178, %v1179
      %v1181 = vsel %vm1159, %v1004, 0.0
      %v1182 = vadd.f32 %v1180, %v1181
      %v1183 = vsel %vm1159, %v1009, 0.0
      %v1184 = vadd.f32 %v1182, %v1183
      %v1185 = vsel %vm1159, %v1012, 0.0
      %v1186 = vadd.f32 %v1184, %v1185
      %v1187 = vsel %vm1159, %v1017, 0.0
      %v1188 = vadd.f32 %v1186, %v1187
      %v1189 = vsel %vm1159, %v1020, 0.0
      %v1190 = vadd.f32 %v1188, %v1189
      %v1191 = vsel %vm1159, %v1025, 0.0
      %v1192 = vadd.f32 %v1190, %v1191
      %v1193 = vsel %vm1159, %v1028, 0.0
      %v1194 = vadd.f32 %v1192, %v1193
      %v1195 = vsel %vm1159, %v1033, 0.0
      %v1196 = vadd.f32 %v1194, %v1195
      %v1197 = vsel %vm1159, %v1036, 0.0
      %v1198 = vadd.f32 %v1196, %v1197
      %v1199 = vsel %vm1159, %v1041, 0.0
      %v1200 = vadd.f32 %v1198, %v1199
      %v1201 = vsel %vm1159, %v1044, 0.0
      %v1202 = vadd.f32 %v1200, %v1201
      %v1203 = vsel %vm1159, %v1049, 0.0
      %v1204 = vadd.f32 %v1202, %v1203
      %v1205 = vsel %vm1159, %v1052, 0.0
      %v1206 = vadd.f32 %v1204, %v1205
      %v1207 = vsel %vm1159, %v1057, 0.0
      %v1208 = vadd.f32 %v1206, %v1207
      %v1209 = vsel %vm1159, %v1060, 0.0
      %v1210 = vadd.f32 %v1208, %v1209
      %v1211 = vsel %vm1159, %v1065, 0.0
      %v1212 = vadd.f32 %v1210, %v1211
      %v1213 = vsel %vm1159, %v1068, 0.0
      %v1214 = vadd.f32 %v1212, %v1213
      %v1215 = vsel %vm1159, %v1073, 0.0
      %v1216 = vadd.f32 %v1214, %v1215
      %v1217 = vsel %vm1159, %v1076, 0.0
      %v1218 = vadd.f32 %v1216, %v1217
      %v1219 = vsel %vm1159, %v1081, 0.0
      %v1220 = vadd.f32 %v1218, %v1219
      %v1221 = vsel %vm1159, %v1084, 0.0
      %v1222 = vadd.f32 %v1220, %v1221
      %v1223 = vsel %vm1159, %v1089, 0.0
      %v1224 = vadd.f32 %v1222, %v1223
      %v1225 = vsel %vm1159, %v1092, 0.0
      %v1226 = vadd.f32 %v1224, %v1225
      %v1227 = vsel %vm1159, %v1097, 0.0
      %v1228 = vadd.f32 %v1226, %v1227
      %v1229 = vsel %vm1159, %v1100, 0.0
      %v1230 = vadd.f32 %v1228, %v1229
      %v1231 = vsel %vm1159, %v1105, 0.0
      %v1232 = vadd.f32 %v1230, %v1231
      %v1233 = vsel %vm1159, %v1108, 0.0
      %v1234 = vadd.f32 %v1232, %v1233
      %v1235 = vsel %vm1159, %v1113, 0.0
      %v1236 = vadd.f32 %v1234, %v1235
      %v1237 = vsel %vm1159, %v1116, 0.0
      %v1238 = vadd.f32 %v1236, %v1237
      %v1239 = vsel %vm1159, %v1121, 0.0
      %v1240 = vadd.f32 %v1238, %v1239
      %v1241 = vsel %vm1159, %v1124, 0.0
      %v1242 = vadd.f32 %v1240, %v1241
      %v1243 = vsel %vm1159, %v1129, 0.0
      %v1244 = vadd.f32 %v1242, %v1243
      %v1245 = vsel %vm1159, %v1132, 0.0
      %v1246 = vadd.f32 %v1244, %v1245
      %v1247 = vsel %vm1159, %v1137, 0.0
      %v1248 = vadd.f32 %v1246, %v1247
      %v1249 = vsel %vm1159, %v1140, 0.0
      %v1250 = vadd.f32 %v1248, %v1249
      %v1251 = vsel %vm1159, %v1145, 0.0
      %v1252 = vadd.f32 %v1250, %v1251
      %v1253 = vsel %vm1159, %v1148, 0.0
      %v1254 = vadd.f32 %v1252, %v1253
      %v1255 = vsel %vm1159, %v1153, 0.0
      %v1256 = vadd.f32 %v1254, %v1255
      %vm1257 = vcmask 522240
      %v1258 = vsel %vm1257, %v1156, 0.0
      %v1259 = vadd.f32 %v1256, %v1258
      %v1260 = vrot.slane %v1259, 4
      %v1261 = vadd.f32 %v1259, %v1260
      %v1262 = vrot.slane %v1261, 2
      %v1263 = vadd.f32 %v1261, %v1262
      %v1264 = vrot.slane %v1263, 1
      %v1265 = vadd.f32 %v1263, %v1264
      %v1266 = vrcp.pop 399.0
      %v1267 = vmul.f32 %v1265, %v1266
      %v1268 = vsub.f32 %v961, %v1267
      %v1269 = vsub.f32 %v964, %v1267
      %v1270 = vsub.f32 %v969, %v1267
      %v1271 = vsub.f32 %v972, %v1267
      %v1272 = vsub.f32 %v977, %v1267
      %v1273 = vsub.f32 %v980, %v1267
      %v1274 = vsub.f32 %v985, %v1267
      %v1275 = vsub.f32 %v988, %v1267
      %v1276 = vsub.f32 %v993, %v1267
      %v1277 = vsub.f32 %v996, %v1267
      %v1278 = vsub.f32 %v1001, %v1267
      %v1279 = vsub.f32 %v1004, %v1267
      %v1280 = vsub.f32 %v1009, %v1267
      %v1281 = vsub.f32 %v1012, %v1267
      %v1282 = vsub.f32 %v1017, %v1267
      %v1283 = vsub.f32 %v1020, %v1267
      %v1284 = vsub.f32 %v1025, %v1267
      %v1285 = vsub.f32 %v1028, %v1267
      %v1286 = vsub.f32 %v1033, %v1267
      %v1287 = vsub.f32 %v1036, %v1267
      %v1288 = vsub.f32 %v1041, %v1267
      %v1289 = vsub.f32 %v1044, %v1267
      %v1290 = vsub.f32 %v1049, %v1267
      %v1291 = vsub.f32 %v1052, %v1267
      %v1292 = vsub.f32 %v1057, %v1267
      %v1293 = vsub.f32 %v1060, %v1267
      %v1294 = vsub.f32 %v1065, %v1267
      %v1295 = vsub.f32 %v1068, %v1267
      %v1296 = vsub.f32 %v1073, %v1267
      %v1297 = vsub.f32 %v1076, %v1267
      %v1298 = vsub.f32 %v1081, %v1267
      %v1299 = vsub.f32 %v1084, %v1267
      %v1300 = vsub.f32 %v1089, %v1267
      %v1301 = vsub.f32 %v1092, %v1267
      %v1302 = vsub.f32 %v1097, %v1267
      %v1303 = vsub.f32 %v1100, %v1267
      %v1304 = vsub.f32 %v1105, %v1267
      %v1305 = vsub.f32 %v1108, %v1267
      %v1306 = vsub.f32 %v1113, %v1267
      %v1307 = vsub.f32 %v1116, %v1267
      %v1308 = vsub.f32 %v1121, %v1267
      %v1309 = vsub.f32 %v1124, %v1267
      %v1310 = vsub.f32 %v1129, %v1267
      %v1311 = vsub.f32 %v1132, %v1267
      %v1312 = vsub.f32 %v1137, %v1267
      %v1313 = vsub.f32 %v1140, %v1267
      %v1314 = vsub.f32 %v1145, %v1267
      %v1315 = vsub.f32 %v1148, %v1267
      %v1316 = vsub.f32 %v1153, %v1267
      %v1317 = vsub.f32 %v1156, %v1267
      %v1318 = vmul.f32 %v1268, %v1268
      %v1319 = vmul.f32 %v1269, %v1269
      %v1320 = vmul.f32 %v1270, %v1270
      %v1321 = vmul.f32 %v1271, %v1271
      %v1322 = vmul.f32 %v1272, %v1272
      %v1323 = vmul.f32 %v1273, %v1273
      %v1324 = vmul.f32 %v1274, %v1274
      %v1325 = vmul.f32 %v1275, %v1275
      %v1326 = vmul.f32 %v1276, %v1276
      %v1327 = vmul.f32 %v1277, %v1277
      %v1328 = vmul.f32 %v1278, %v1278
      %v1329 = vmul.f32 %v1279, %v1279
      %v1330 = vmul.f32 %v1280, %v1280
      %v1331 = vmul.f32 %v1281, %v1281
      %v1332 = vmul.f32 %v1282, %v1282
      %v1333 = vmul.f32 %v1283, %v1283
      %v1334 = vmul.f32 %v1284, %v1284
      %v1335 = vmul.f32 %v1285, %v1285
      %v1336 = vmul.f32 %v1286, %v1286
      %v1337 = vmul.f32 %v1287, %v1287
      %v1338 = vmul.f32 %v1288, %v1288
      %v1339 = vmul.f32 %v1289, %v1289
      %v1340 = vmul.f32 %v1290, %v1290
      %v1341 = vmul.f32 %v1291, %v1291
      %v1342 = vmul.f32 %v1292, %v1292
      %v1343 = vmul.f32 %v1293, %v1293
      %v1344 = vmul.f32 %v1294, %v1294
      %v1345 = vmul.f32 %v1295, %v1295
      %v1346 = vmul.f32 %v1296, %v1296
      %v1347 = vmul.f32 %v1297, %v1297
      %v1348 = vmul.f32 %v1298, %v1298
      %v1349 = vmul.f32 %v1299, %v1299
      %v1350 = vmul.f32 %v1300, %v1300
      %v1351 = vmul.f32 %v1301, %v1301
      %v1352 = vmul.f32 %v1302, %v1302
      %v1353 = vmul.f32 %v1303, %v1303
      %v1354 = vmul.f32 %v1304, %v1304
      %v1355 = vmul.f32 %v1305, %v1305
      %v1356 = vmul.f32 %v1306, %v1306
      %v1357 = vmul.f32 %v1307, %v1307
      %v1358 = vmul.f32 %v1308, %v1308
      %v1359 = vmul.f32 %v1309, %v1309
      %v1360 = vmul.f32 %v1310, %v1310
      %v1361 = vmul.f32 %v1311, %v1311
      %v1362 = vmul.f32 %v1312, %v1312
      %v1363 = vmul.f32 %v1313, %v1313
      %v1364 = vmul.f32 %v1314, %v1314
      %v1365 = vmul.f32 %v1315, %v1315
      %v1366 = vmul.f32 %v1316, %v1316
      %v1367 = vmul.f32 %v1317, %v1317
      %v1368 = vsel %vm1159, %v1318, 0.0
      %v1369 = vsel %vm1159, %v1319, 0.0
      %v1370 = vadd.f32 %v1368, %v1369
      %v1371 = vsel %vm1159, %v1320, 0.0
      %v1372 = vadd.f32 %v1370, %v1371
      %v1373 = vsel %vm1159, %v1321, 0.0
      %v1374 = vadd.f32 %v1372, %v1373
      %v1375 = vsel %vm1159, %v1322, 0.0
      %v1376 = vadd.f32 %v1374, %v1375
      %v1377 = vsel %vm1159, %v1323, 0.0
      %v1378 = vadd.f32 %v1376, %v1377
      %v1379 = vsel %vm1159, %v1324, 0.0
      %v1380 = vadd.f32 %v1378, %v1379
      %v1381 = vsel %vm1159, %v1325, 0.0
      %v1382 = vadd.f32 %v1380, %v1381
      %v1383 = vsel %vm1159, %v1326, 0.0
      %v1384 = vadd.f32 %v1382, %v1383
      %v1385 = vsel %vm1159, %v1327, 0.0
      %v1386 = vadd.f32 %v1384, %v1385
      %v1387 = vsel %vm1159, %v1328, 0.0
      %v1388 = vadd.f32 %v1386, %v1387
      %v1389 = vsel %vm1159, %v1329, 0.0
      %v1390 = vadd.f32 %v1388, %v1389
      %v1391 = vsel %vm1159, %v1330, 0.0
      %v1392 = vadd.f32 %v1390, %v1391
      %v1393 = vsel %vm1159, %v1331, 0.0
      %v1394 = vadd.f32 %v1392, %v1393
      %v1395 = vsel %vm1159, %v1332, 0.0
      %v1396 = vadd.f32 %v1394, %v1395
      %v1397 = vsel %vm1159, %v1333, 0.0
      %v1398 = vadd.f32 %v1396, %v1397
      %v1399 = vsel %vm1159, %v1334, 0.0
      %v1400 = vadd.f32 %v1398, %v1399
      %v1401 = vsel %vm1159, %v1335, 0.0
      %v1402 = vadd.f32 %v1400, %v1401
      %v1403 = vsel %vm1159, %v1336, 0.0
      %v1404 = vadd.f32 %v1402, %v1403
      %v1405 = vsel %vm1159, %v1337, 0.0
      %v1406 = vadd.f32 %v1404, %v1405
      %v1407 = vsel %vm1159, %v1338, 0.0
      %v1408 = vadd.f32 %v1406, %v1407
      %v1409 = vsel %vm1159, %v1339, 0.0
      %v1410 = vadd.f32 %v1408, %v1409
      %v1411 = vsel %vm1159, %v1340, 0.0
      %v1412 = vadd.f32 %v1410, %v1411
      %v1413 = vsel %vm1159, %v1341, 0.0
      %v1414 = vadd.f32 %v1412, %v1413
      %v1415 = vsel %vm1159, %v1342, 0.0
      %v1416 = vadd.f32 %v1414, %v1415
      %v1417 = vsel %vm1159, %v1343, 0.0
      %v1418 = vadd.f32 %v1416, %v1417
      %v1419 = vsel %vm1159, %v1344, 0.0
      %v1420 = vadd.f32 %v1418, %v1419
      %v1421 = vsel %vm1159, %v1345, 0.0
      %v1422 = vadd.f32 %v1420, %v1421
      %v1423 = vsel %vm1159, %v1346, 0.0
      %v1424 = vadd.f32 %v1422, %v1423
      %v1425 = vsel %vm1159, %v1347, 0.0
      %v1426 = vadd.f32 %v1424, %v1425
      %v1427 = vsel %vm1159, %v1348, 0.0
      %v1428 = vadd.f32 %v1426, %v1427
      %v1429 = vsel %vm1159, %v1349, 0.0
      %v1430 = vadd.f32 %v1428, %v1429
      %v1431 = vsel %vm1159, %v1350, 0.0
      %v1432 = vadd.f32 %v1430, %v1431
      %v1433 = vsel %vm1159, %v1351, 0.0
      %v1434 = vadd.f32 %v1432, %v1433
      %v1435 = vsel %vm1159, %v1352, 0.0
      %v1436 = vadd.f32 %v1434, %v1435
      %v1437 = vsel %vm1159, %v1353, 0.0
      %v1438 = vadd.f32 %v1436, %v1437
      %v1439 = vsel %vm1159, %v1354, 0.0
      %v1440 = vadd.f32 %v1438, %v1439
      %v1441 = vsel %vm1159, %v1355, 0.0
      %v1442 = vadd.f32 %v1440, %v1441
      %v1443 = vsel %vm1159, %v1356, 0.0
      %v1444 = vadd.f32 %v1442, %v1443
      %v1445 = vsel %vm1159, %v1357, 0.0
      %v1446 = vadd.f32 %v1444, %v1445
      %v1447 = vsel %vm1159, %v1358, 0.0
      %v1448 = vadd.f32 %v1446, %v1447
      %v1449 = vsel %vm1159, %v1359, 0.0
      %v1450 = vadd.f32 %v1448, %v1449
      %v1451 = vsel %vm1159, %v1360, 0.0
      %v1452 = vadd.f32 %v1450, %v1451
      %v1453 = vsel %vm1159, %v1361, 0.0
      %v1454 = vadd.f32 %v1452, %v1453
      %v1455 = vsel %vm1159, %v1362, 0.0
      %v1456 = vadd.f32 %v1454, %v1455
      %v1457 = vsel %vm1159, %v1363, 0.0
      %v1458 = vadd.f32 %v1456, %v1457
      %v1459 = vsel %vm1159, %v1364, 0.0
      %v1460 = vadd.f32 %v1458, %v1459
      %v1461 = vsel %vm1159, %v1365, 0.0
      %v1462 = vadd.f32 %v1460, %v1461
      %v1463 = vsel %vm1159, %v1366, 0.0
      %v1464 = vadd.f32 %v1462, %v1463
      %v1465 = vsel %vm1257, %v1367, 0.0
      %v1466 = vadd.f32 %v1464, %v1465
      %v1467 = vrot.slane %v1466, 4
      %v1468 = vadd.f32 %v1466, %v1467
      %v1469 = vrot.slane %v1468, 2
      %v1470 = vadd.f32 %v1468, %v1469
      %v1471 = vrot.slane %v1470, 1
      %v1472 = vadd.f32 %v1470, %v1471
      %v1473 = vmul.f32 %v1472, %v1266
      %v1474 = vadd.f32 %v1473, 1e-05
      %v1475 = vrsqrt.pop %v1474
      %v1476 = vmul.f32 %v1268, %v1475
      %v1477 = vmul.f32 %v1269, %v1475
      %v1478 = vmul.f32 %v1270, %v1475
      %v1479 = vmul.f32 %v1271, %v1475
      %v1480 = vmul.f32 %v1272, %v1475
      %v1481 = vmul.f32 %v1273, %v1475
      %v1482 = vmul.f32 %v1274, %v1475
      %v1483 = vmul.f32 %v1275, %v1475
      %v1484 = vmul.f32 %v1276, %v1475
      %v1485 = vmul.f32 %v1277, %v1475
      %v1486 = vmul.f32 %v1278, %v1475
      %v1487 = vmul.f32 %v1279, %v1475
      %v1488 = vmul.f32 %v1280, %v1475
      %v1489 = vmul.f32 %v1281, %v1475
      %v1490 = vmul.f32 %v1282, %v1475
      %v1491 = vmul.f32 %v1283, %v1475
      %v1492 = vmul.f32 %v1284, %v1475
      %v1493 = vmul.f32 %v1285, %v1475
      %v1494 = vmul.f32 %v1286, %v1475
      %v1495 = vmul.f32 %v1287, %v1475
      %v1496 = vmul.f32 %v1288, %v1475
      %v1497 = vmul.f32 %v1289, %v1475
      %v1498 = vmul.f32 %v1290, %v1475
      %v1499 = vmul.f32 %v1291, %v1475
      %v1500 = vmul.f32 %v1292, %v1475
      %v1501 = vmul.f32 %v1293, %v1475
      %v1502 = vmul.f32 %v1294, %v1475
      %v1503 = vmul.f32 %v1295, %v1475
      %v1504 = vmul.f32 %v1296, %v1475
      %v1505 = vmul.f32 %v1297, %v1475
      %v1506 = vmul.f32 %v1298, %v1475
      %v1507 = vmul.f32 %v1299, %v1475
      %v1508 = vmul.f32 %v1300, %v1475
      %v1509 = vmul.f32 %v1301, %v1475
      %v1510 = vmul.f32 %v1302, %v1475
      %v1511 = vmul.f32 %v1303, %v1475
      %v1512 = vmul.f32 %v1304, %v1475
      %v1513 = vmul.f32 %v1305, %v1475
      %v1514 = vmul.f32 %v1306, %v1475
      %v1515 = vmul.f32 %v1307, %v1475
      %v1516 = vmul.f32 %v1308, %v1475
      %v1517 = vmul.f32 %v1309, %v1475
      %v1518 = vmul.f32 %v1310, %v1475
      %v1519 = vmul.f32 %v1311, %v1475
      %v1520 = vmul.f32 %v1312, %v1475
      %v1521 = vmul.f32 %v1313, %v1475
      %v1522 = vmul.f32 %v1314, %v1475
      %v1523 = vmul.f32 %v1315, %v1475
      %v1524 = vmul.f32 %v1316, %v1475
      %v1525 = vmul.f32 %v1317, %v1475
      %v1526 = vld [vmem:[%s2] sm:$0x1]
      %v1528 = vlaneseq
      %v1529 = vshrl.u32 %v1528, 7
      %v1530 = vsub.s32 0, %v1529
      %v1531 = vrot.slane %v1526, %v1530
      %v1533 = vmul.f32 %v1476, %v1531
      %v1534 = vmul.f32 %v1477, %v1531
      %v1535 = vmul.f32 %v1478, %v1531
      %v1536 = vmul.f32 %v1479, %v1531
      %v1537 = vmul.f32 %v1480, %v1531
      %v1538 = vmul.f32 %v1481, %v1531
      %v1539 = vmul.f32 %v1482, %v1531
      %v1540 = vmul.f32 %v1483, %v1531
      %v1541 = vmul.f32 %v1484, %v1531
      %v1542 = vmul.f32 %v1485, %v1531
      %v1543 = vmul.f32 %v1486, %v1531
      %v1544 = vmul.f32 %v1487, %v1531
      %v1545 = vmul.f32 %v1488, %v1531
      %v1546 = vmul.f32 %v1489, %v1531
      %v1547 = vmul.f32 %v1490, %v1531
      %v1548 = vmul.f32 %v1491, %v1531
      %v1549 = vmul.f32 %v1492, %v1531
      %v1550 = vmul.f32 %v1493, %v1531
      %v1551 = vmul.f32 %v1494, %v1531
      %v1552 = vmul.f32 %v1495, %v1531
      %v1553 = vmul.f32 %v1496, %v1531
      %v1554 = vmul.f32 %v1497, %v1531
      %v1555 = vmul.f32 %v1498, %v1531
      %v1556 = vmul.f32 %v1499, %v1531
      %v1557 = vmul.f32 %v1500, %v1531
      %v1558 = vmul.f32 %v1501, %v1531
      %v1559 = vmul.f32 %v1502, %v1531
      %v1560 = vmul.f32 %v1503, %v1531
      %v1561 = vmul.f32 %v1504, %v1531
      %v1562 = vmul.f32 %v1505, %v1531
      %v1563 = vmul.f32 %v1506, %v1531
      %v1564 = vmul.f32 %v1507, %v1531
      %v1565 = vmul.f32 %v1508, %v1531
      %v1566 = vmul.f32 %v1509, %v1531
      %v1567 = vmul.f32 %v1510, %v1531
      %v1568 = vmul.f32 %v1511, %v1531
      %v1569 = vmul.f32 %v1512, %v1531
      %v1570 = vmul.f32 %v1513, %v1531
      %v1571 = vmul.f32 %v1514, %v1531
      %v1572 = vmul.f32 %v1515, %v1531
      %v1573 = vmul.f32 %v1516, %v1531
      %v1574 = vmul.f32 %v1517, %v1531
      %v1575 = vmul.f32 %v1518, %v1531
      %v1576 = vmul.f32 %v1519, %v1531
      %v1577 = vmul.f32 %v1520, %v1531
      %v1578 = vmul.f32 %v1521, %v1531
      %v1579 = vmul.f32 %v1522, %v1531
      %v1580 = vmul.f32 %v1523, %v1531
      %v1581 = vmul.f32 %v1524, %v1531
      %v1582 = vmul.f32 %v1525, %v1531
      %v1583 = vld [vmem:[%s3] sm:$0x1]
      %v1585 = vlaneseq
      %v1586 = vshrl.u32 %v1585, 7
      %v1587 = vsub.s32 0, %v1586
      %v1588 = vrot.slane %v1583, %v1587
      %v1590 = vadd.f32 %v1533, %v1588
      %v1591 = vadd.f32 %v1534, %v1588
      %v1592 = vadd.f32 %v1535, %v1588
      %v1593 = vadd.f32 %v1536, %v1588
      %v1594 = vadd.f32 %v1537, %v1588
      %v1595 = vadd.f32 %v1538, %v1588
      %v1596 = vadd.f32 %v1539, %v1588
      %v1597 = vadd.f32 %v1540, %v1588
      %v1598 = vadd.f32 %v1541, %v1588
      %v1599 = vadd.f32 %v1542, %v1588
      %v1600 = vadd.f32 %v1543, %v1588
      %v1601 = vadd.f32 %v1544, %v1588
      %v1602 = vadd.f32 %v1545, %v1588
      %v1603 = vadd.f32 %v1546, %v1588
      %v1604 = vadd.f32 %v1547, %v1588
      %v1605 = vadd.f32 %v1548, %v1588
      %v1606 = vadd.f32 %v1549, %v1588
      %v1607 = vadd.f32 %v1550, %v1588
      %v1608 = vadd.f32 %v1551, %v1588
      %v1609 = vadd.f32 %v1552, %v1588
      %v1610 = vadd.f32 %v1553, %v1588
      %v1611 = vadd.f32 %v1554, %v1588
      %v1612 = vadd.f32 %v1555, %v1588
      %v1613 = vadd.f32 %v1556, %v1588
      %v1614 = vadd.f32 %v1557, %v1588
      %v1615 = vadd.f32 %v1558, %v1588
      %v1616 = vadd.f32 %v1559, %v1588
      %v1617 = vadd.f32 %v1560, %v1588
      %v1618 = vadd.f32 %v1561, %v1588
      %v1619 = vadd.f32 %v1562, %v1588
      %v1620 = vadd.f32 %v1563, %v1588
      %v1621 = vadd.f32 %v1564, %v1588
      %v1622 = vadd.f32 %v1565, %v1588
      %v1623 = vadd.f32 %v1566, %v1588
      %v1624 = vadd.f32 %v1567, %v1588
      %v1625 = vadd.f32 %v1568, %v1588
      %v1626 = vadd.f32 %v1569, %v1588
      %v1627 = vadd.f32 %v1570, %v1588
      %v1628 = vadd.f32 %v1571, %v1588
      %v1629 = vadd.f32 %v1572, %v1588
      %v1630 = vadd.f32 %v1573, %v1588
      %v1631 = vadd.f32 %v1574, %v1588
      %v1632 = vadd.f32 %v1575, %v1588
      %v1633 = vadd.f32 %v1576, %v1588
      %v1634 = vadd.f32 %v1577, %v1588
      %v1635 = vadd.f32 %v1578, %v1588
      %v1636 = vadd.f32 %v1579, %v1588
      %v1637 = vadd.f32 %v1580, %v1588
      %v1638 = vadd.f32 %v1581, %v1588
      %v1639 = vadd.f32 %v1582, %v1588
      %v1640 = vmul.f32 %v1590, 0.5
      %v1641 = vmul.f32 %v1591, 0.5
      %v1642 = vmul.f32 %v1592, 0.5
      %v1643 = vmul.f32 %v1593, 0.5
      %v1644 = vmul.f32 %v1594, 0.5
      %v1645 = vmul.f32 %v1595, 0.5
      %v1646 = vmul.f32 %v1596, 0.5
      %v1647 = vmul.f32 %v1597, 0.5
      %v1648 = vmul.f32 %v1598, 0.5
      %v1649 = vmul.f32 %v1599, 0.5
      %v1650 = vmul.f32 %v1600, 0.5
      %v1651 = vmul.f32 %v1601, 0.5
      %v1652 = vmul.f32 %v1602, 0.5
      %v1653 = vmul.f32 %v1603, 0.5
      %v1654 = vmul.f32 %v1604, 0.5
      %v1655 = vmul.f32 %v1605, 0.5
      %v1656 = vmul.f32 %v1606, 0.5
      %v1657 = vmul.f32 %v1607, 0.5
      %v1658 = vmul.f32 %v1608, 0.5
      %v1659 = vmul.f32 %v1609, 0.5
      %v1660 = vmul.f32 %v1610, 0.5
      %v1661 = vmul.f32 %v1611, 0.5
      %v1662 = vmul.f32 %v1612, 0.5
      %v1663 = vmul.f32 %v1613, 0.5
      %v1664 = vmul.f32 %v1614, 0.5
      %v1665 = vmul.f32 %v1615, 0.5
      %v1666 = vmul.f32 %v1616, 0.5
      %v1667 = vmul.f32 %v1617, 0.5
      %v1668 = vmul.f32 %v1618, 0.5
      %v1669 = vmul.f32 %v1619, 0.5
      %v1670 = vmul.f32 %v1620, 0.5
      %v1671 = vmul.f32 %v1621, 0.5
      %v1672 = vmul.f32 %v1622, 0.5
      %v1673 = vmul.f32 %v1623, 0.5
      %v1674 = vmul.f32 %v1624, 0.5
      %v1675 = vmul.f32 %v1625, 0.5
      %v1676 = vmul.f32 %v1626, 0.5
      %v1677 = vmul.f32 %v1627, 0.5
      %v1678 = vmul.f32 %v1628, 0.5
      %v1679 = vmul.f32 %v1629, 0.5
      %v1680 = vmul.f32 %v1630, 0.5
      %v1681 = vmul.f32 %v1631, 0.5
      %v1682 = vmul.f32 %v1632, 0.5
      %v1683 = vmul.f32 %v1633, 0.5
      %v1684 = vmul.f32 %v1634, 0.5
      %v1685 = vmul.f32 %v1635, 0.5
      %v1686 = vmul.f32 %v1636, 0.5
      %v1687 = vmul.f32 %v1637, 0.5
      %v1688 = vmul.f32 %v1638, 0.5
      %v1689 = vmul.f32 %v1639, 0.5
      %v1690 = vmul.f32 %v1590, 0.70710677
      %v1691 = vmul.f32 %v1591, 0.70710677
      %v1692 = vmul.f32 %v1592, 0.70710677
      %v1693 = vmul.f32 %v1593, 0.70710677
      %v1694 = vmul.f32 %v1594, 0.70710677
      %v1695 = vmul.f32 %v1595, 0.70710677
      %v1696 = vmul.f32 %v1596, 0.70710677
      %v1697 = vmul.f32 %v1597, 0.70710677
      %v1698 = vmul.f32 %v1598, 0.70710677
      %v1699 = vmul.f32 %v1599, 0.70710677
      %v1700 = vmul.f32 %v1600, 0.70710677
      %v1701 = vmul.f32 %v1601, 0.70710677
      %v1702 = vmul.f32 %v1602, 0.70710677
      %v1703 = vmul.f32 %v1603, 0.70710677
      %v1704 = vmul.f32 %v1604, 0.70710677
      %v1705 = vmul.f32 %v1605, 0.70710677
      %v1706 = vmul.f32 %v1606, 0.70710677
      %v1707 = vmul.f32 %v1607, 0.70710677
      %v1708 = vmul.f32 %v1608, 0.70710677
      %v1709 = vmul.f32 %v1609, 0.70710677
      %v1710 = vmul.f32 %v1610, 0.70710677
      %v1711 = vmul.f32 %v1611, 0.70710677
      %v1712 = vmul.f32 %v1612, 0.70710677
      %v1713 = vmul.f32 %v1613, 0.70710677
      %v1714 = vmul.f32 %v1614, 0.70710677
      %v1715 = vmul.f32 %v1615, 0.70710677
      %v1716 = vmul.f32 %v1616, 0.70710677
      %v1717 = vmul.f32 %v1617, 0.70710677
      %v1718 = vmul.f32 %v1618, 0.70710677
      %v1719 = vmul.f32 %v1619, 0.70710677
      %v1720 = vmul.f32 %v1620, 0.70710677
      %v1721 = vmul.f32 %v1621, 0.70710677
      %v1722 = vmul.f32 %v1622, 0.70710677
      %v1723 = vmul.f32 %v1623, 0.70710677
      %v1724 = vmul.f32 %v1624, 0.70710677
      %v1725 = vmul.f32 %v1625, 0.70710677
      %v1726 = vmul.f32 %v1626, 0.70710677
      %v1727 = vmul.f32 %v1627, 0.70710677
      %v1728 = vmul.f32 %v1628, 0.70710677
      %v1729 = vmul.f32 %v1629, 0.70710677
      %v1730 = vmul.f32 %v1630, 0.70710677
      %v1731 = vmul.f32 %v1631, 0.70710677
      %v1732 = vmul.f32 %v1632, 0.70710677
      %v1733 = vmul.f32 %v1633, 0.70710677
      %v1734 = vmul.f32 %v1634, 0.70710677
      %v1735 = vmul.f32 %v1635, 0.70710677
      %v1736 = vmul.f32 %v1636, 0.70710677
      %v1737 = vmul.f32 %v1637, 0.70710677
      %v1738 = vmul.f32 %v1638, 0.70710677
      %v1739 = vmul.f32 %v1639, 0.70710677
      %v1740 = verf.f32.pop %v1690
      %v1741 = verf.f32.pop %v1691
      %v1742 = verf.f32.pop %v1692
      %v1743 = verf.f32.pop %v1693
      %v1744 = verf.f32.pop %v1694
      %v1745 = verf.f32.pop %v1695
      %v1746 = verf.f32.pop %v1696
      %v1747 = verf.f32.pop %v1697
      %v1748 = verf.f32.pop %v1698
      %v1749 = verf.f32.pop %v1699
      %v1750 = verf.f32.pop %v1700
      %v1751 = verf.f32.pop %v1701
      %v1752 = verf.f32.pop %v1702
      %v1753 = verf.f32.pop %v1703
      %v1754 = verf.f32.pop %v1704
      %v1755 = verf.f32.pop %v1705
      %v1756 = verf.f32.pop %v1706
      %v1757 = verf.f32.pop %v1707
      %v1758 = verf.f32.pop %v1708
      %v1759 = verf.f32.pop %v1709
      %v1760 = verf.f32.pop %v1710
      %v1761 = verf.f32.pop %v1711
      %v1762 = verf.f32.pop %v1712
      %v1763 = verf.f32.pop %v1713
      %v1764 = verf.f32.pop %v1714
      %v1765 = verf.f32.pop %v1715
      %v1766 = verf.f32.pop %v1716
      %v1767 = verf.f32.pop %v1717
      %v1768 = verf.f32.pop %v1718
      %v1769 = verf.f32.pop %v1719
      %v1770 = verf.f32.pop %v1720
      %v1771 = verf.f32.pop %v1721
      %v1772 = verf.f32.pop %v1722
      %v1773 = verf.f32.pop %v1723
      %v1774 = verf.f32.pop %v1724
      %v1775 = verf.f32.pop %v1725
      %v1776 = verf.f32.pop %v1726
      %v1777 = verf.f32.pop %v1727
      %v1778 = verf.f32.pop %v1728
      %v1779 = verf.f32.pop %v1729
      %v1780 = verf.f32.pop %v1730
      %v1781 = verf.f32.pop %v1731
      %v1782 = verf.f32.pop %v1732
      %v1783 = verf.f32.pop %v1733
      %v1784 = verf.f32.pop %v1734
      %v1785 = verf.f32.pop %v1735
      %v1786 = verf.f32.pop %v1736
      %v1787 = verf.f32.pop %v1737
      %v1788 = verf.f32.pop %v1738
      %v1789 = verf.f32.pop %v1739
      %v1790 = vadd.f32 %v1740, 1.0
      %v1791 = vadd.f32 %v1741, 1.0
      %v1792 = vadd.f32 %v1742, 1.0
      %v1793 = vadd.f32 %v1743, 1.0
      %v1794 = vadd.f32 %v1744, 1.0
      %v1795 = vadd.f32 %v1745, 1.0
      %v1796 = vadd.f32 %v1746, 1.0
      %v1797 = vadd.f32 %v1747, 1.0
      %v1798 = vadd.f32 %v1748, 1.0
      %v1799 = vadd.f32 %v1749, 1.0
      %v1800 = vadd.f32 %v1750, 1.0
      %v1801 = vadd.f32 %v1751, 1.0
      %v1802 = vadd.f32 %v1752, 1.0
      %v1803 = vadd.f32 %v1753, 1.0
      %v1804 = vadd.f32 %v1754, 1.0
      %v1805 = vadd.f32 %v1755, 1.0
      %v1806 = vadd.f32 %v1756, 1.0
      %v1807 = vadd.f32 %v1757, 1.0
      %v1808 = vadd.f32 %v1758, 1.0
      %v1809 = vadd.f32 %v1759, 1.0
      %v1810 = vadd.f32 %v1760, 1.0
      %v1811 = vadd.f32 %v1761, 1.0
      %v1812 = vadd.f32 %v1762, 1.0
      %v1813 = vadd.f32 %v1763, 1.0
      %v1814 = vadd.f32 %v1764, 1.0
      %v1815 = vadd.f32 %v1765, 1.0
      %v1816 = vadd.f32 %v1766, 1.0
      %v1817 = vadd.f32 %v1767, 1.0
      %v1818 = vadd.f32 %v1768, 1.0
      %v1819 = vadd.f32 %v1769, 1.0
      %v1820 = vadd.f32 %v1770, 1.0
      %v1821 = vadd.f32 %v1771, 1.0
      %v1822 = vadd.f32 %v1772, 1.0
      %v1823 = vadd.f32 %v1773, 1.0
      %v1824 = vadd.f32 %v1774, 1.0
      %v1825 = vadd.f32 %v1775, 1.0
      %v1826 = vadd.f32 %v1776, 1.0
      %v1827 = vadd.f32 %v1777, 1.0
      %v1828 = vadd.f32 %v1778, 1.0
      %v1829 = vadd.f32 %v1779, 1.0
      %v1830 = vadd.f32 %v1780, 1.0
      %v1831 = vadd.f32 %v1781, 1.0
      %v1832 = vadd.f32 %v1782, 1.0
      %v1833 = vadd.f32 %v1783, 1.0
      %v1834 = vadd.f32 %v1784, 1.0
      %v1835 = vadd.f32 %v1785, 1.0
      %v1836 = vadd.f32 %v1786, 1.0
      %v1837 = vadd.f32 %v1787, 1.0
      %v1838 = vadd.f32 %v1788, 1.0
      %v1839 = vadd.f32 %v1789, 1.0
      %v1840 = vmul.f32 %v1640, %v1790
      %v1841 = vmul.f32 %v1641, %v1791
      %v1842 = vmul.f32 %v1642, %v1792
      %v1843 = vmul.f32 %v1643, %v1793
      %v1844 = vmul.f32 %v1644, %v1794
      %v1845 = vmul.f32 %v1645, %v1795
      %v1846 = vmul.f32 %v1646, %v1796
      %v1847 = vmul.f32 %v1647, %v1797
      %v1848 = vmul.f32 %v1648, %v1798
      %v1849 = vmul.f32 %v1649, %v1799
      %v1850 = vmul.f32 %v1650, %v1800
      %v1851 = vmul.f32 %v1651, %v1801
      %v1852 = vmul.f32 %v1652, %v1802
      %v1853 = vmul.f32 %v1653, %v1803
      %v1854 = vmul.f32 %v1654, %v1804
      %v1855 = vmul.f32 %v1655, %v1805
      %v1856 = vmul.f32 %v1656, %v1806
      %v1857 = vmul.f32 %v1657, %v1807
      %v1858 = vmul.f32 %v1658, %v1808
      %v1859 = vmul.f32 %v1659, %v1809
      %v1860 = vmul.f32 %v1660, %v1810
      %v1861 = vmul.f32 %v1661, %v1811
      %v1862 = vmul.f32 %v1662, %v1812
      %v1863 = vmul.f32 %v1663, %v1813
      %v1864 = vmul.f32 %v1664, %v1814
      %v1865 = vmul.f32 %v1665, %v1815
      %v1866 = vmul.f32 %v1666, %v1816
      %v1867 = vmul.f32 %v1667, %v1817
      %v1868 = vmul.f32 %v1668, %v1818
      %v1869 = vmul.f32 %v1669, %v1819
      %v1870 = vmul.f32 %v1670, %v1820
      %v1871 = vmul.f32 %v1671, %v1821
      %v1872 = vmul.f32 %v1672, %v1822
      %v1873 = vmul.f32 %v1673, %v1823
      %v1874 = vmul.f32 %v1674, %v1824
      %v1875 = vmul.f32 %v1675, %v1825
      %v1876 = vmul.f32 %v1676, %v1826
      %v1877 = vmul.f32 %v1677, %v1827
      %v1878 = vmul.f32 %v1678, %v1828
      %v1879 = vmul.f32 %v1679, %v1829
      %v1880 = vmul.f32 %v1680, %v1830
      %v1881 = vmul.f32 %v1681, %v1831
      %v1882 = vmul.f32 %v1682, %v1832
      %v1883 = vmul.f32 %v1683, %v1833
      %v1884 = vmul.f32 %v1684, %v1834
      %v1885 = vmul.f32 %v1685, %v1835
      %v1886 = vmul.f32 %v1686, %v1836
      %v1887 = vmul.f32 %v1687, %v1837
      %v1888 = vmul.f32 %v1688, %v1838
      %v1889 = vmul.f32 %v1689, %v1839
      %1890 = vst.msk [vmem:[#allocation2] sm:$0xff] %vm1159, %v1840
      %1891 = vst.msk [vmem:[#allocation2 + $0x8] sm:$0xff] %vm1159, %v1841
      %1892 = vst.msk [vmem:[#allocation2 + $0x10] sm:$0xff] %vm1159, %v1842
      %1893 = vst.msk [vmem:[#allocation2 + $0x18] sm:$0xff] %vm1159, %v1843
      %1894 = vst.msk [vmem:[#allocation2 + $0x20] sm:$0xff] %vm1159, %v1844
      %1895 = vst.msk [vmem:[#allocation2 + $0x28] sm:$0xff] %vm1159, %v1845
      %1896 = vst.msk [vmem:[#allocation2 + $0x30] sm:$0xff] %vm1159, %v1846
      %1897 = vst.msk [vmem:[#allocation2 + $0x38] sm:$0xff] %vm1159, %v1847
      %1898 = vst.msk [vmem:[#allocation2 + $0x40] sm:$0xff] %vm1159, %v1848
      %1899 = vst.msk [vmem:[#allocation2 + $0x48] sm:$0xff] %vm1159, %v1849
      %1900 = vst.msk [vmem:[#allocation2 + $0x50] sm:$0xff] %vm1159, %v1850
      %1901 = vst.msk [vmem:[#allocation2 + $0x58] sm:$0xff] %vm1159, %v1851
      %1902 = vst.msk [vmem:[#allocation2 + $0x60] sm:$0xff] %vm1159, %v1852
      %1903 = vst.msk [vmem:[#allocation2 + $0x68] sm:$0xff] %vm1159, %v1853
      %1904 = vst.msk [vmem:[#allocation2 + $0x70] sm:$0xff] %vm1159, %v1854
      %1905 = vst.msk [vmem:[#allocation2 + $0x78] sm:$0xff] %vm1159, %v1855
      %1906 = vst.msk [vmem:[#allocation2 + $0x80] sm:$0xff] %vm1159, %v1856
      %1907 = vst.msk [vmem:[#allocation2 + $0x88] sm:$0xff] %vm1159, %v1857
      %1908 = vst.msk [vmem:[#allocation2 + $0x90] sm:$0xff] %vm1159, %v1858
      %1909 = vst.msk [vmem:[#allocation2 + $0x98] sm:$0xff] %vm1159, %v1859
      %1910 = vst.msk [vmem:[#allocation2 + $0xa0] sm:$0xff] %vm1159, %v1860
      %1911 = vst.msk [vmem:[#allocation2 + $0xa8] sm:$0xff] %vm1159, %v1861
      %1912 = vst.msk [vmem:[#allocation2 + $0xb0] sm:$0xff] %vm1159, %v1862
      %1913 = vst.msk [vmem:[#allocation2 + $0xb8] sm:$0xff] %vm1159, %v1863
      %1914 = vst.msk [vmem:[#allocation2 + $0xc0] sm:$0xff] %vm1159, %v1864
      %1915 = vst.msk [vmem:[#allocation2 + $0xc8] sm:$0xff] %vm1159, %v1865
      %1916 = vst.msk [vmem:[#allocation2 + $0xd0] sm:$0xff] %vm1159, %v1866
      %1917 = vst.msk [vmem:[#allocation2 + $0xd8] sm:$0xff] %vm1159, %v1867
      %1918 = vst.msk [vmem:[#allocation2 + $0xe0] sm:$0xff] %vm1159, %v1868
      %1919 = vst.msk [vmem:[#allocation2 + $0xe8] sm:$0xff] %vm1159, %v1869
      %1920 = vst.msk [vmem:[#allocation2 + $0xf0] sm:$0xff] %vm1159, %v1870
      %1921 = vst.msk [vmem:[#allocation2 + $0xf8] sm:$0xff] %vm1159, %v1871
      %1922 = vst.msk [vmem:[#allocation2 + $0x100] sm:$0xff] %vm1159, %v1872
      %1923 = vst.msk [vmem:[#allocation2 + $0x108] sm:$0xff] %vm1159, %v1873
      %1924 = vst.msk [vmem:[#allocation2 + $0x110] sm:$0xff] %vm1159, %v1874
      %1925 = vst.msk [vmem:[#allocation2 + $0x118] sm:$0xff] %vm1159, %v1875
      %1926 = vst.msk [vmem:[#allocation2 + $0x120] sm:$0xff] %vm1159, %v1876
      %1927 = vst.msk [vmem:[#allocation2 + $0x128] sm:$0xff] %vm1159, %v1877
      %1928 = vst.msk [vmem:[#allocation2 + $0x130] sm:$0xff] %vm1159, %v1878
      %1929 = vst.msk [vmem:[#allocation2 + $0x138] sm:$0xff] %vm1159, %v1879
      %1930 = vst.msk [vmem:[#allocation2 + $0x140] sm:$0xff] %vm1159, %v1880
      %1931 = vst.msk [vmem:[#allocation2 + $0x148] sm:$0xff] %vm1159, %v1881
      %1932 = vst.msk [vmem:[#allocation2 + $0x150] sm:$0xff] %vm1159, %v1882
      %1933 = vst.msk [vmem:[#allocation2 + $0x158] sm:$0xff] %vm1159, %v1883
      %1934 = vst.msk [vmem:[#allocation2 + $0x160] sm:$0xff] %vm1159, %v1884
      %1935 = vst.msk [vmem:[#allocation2 + $0x168] sm:$0xff] %vm1159, %v1885
      %1936 = vst.msk [vmem:[#allocation2 + $0x170] sm:$0xff] %vm1159, %v1886
      %1937 = vst.msk [vmem:[#allocation2 + $0x178] sm:$0xff] %vm1159, %v1887
      %1938 = vst.msk [vmem:[#allocation2 + $0x180] sm:$0xff] %vm1159, %v1888
      %1939 = vst.msk [vmem:[#allocation2 + $0x188] sm:$0x7f] %vm1257, %v1889
      %v1940 = vld [vmem:[#allocation2] ss:$2 sm:$0xff]
      %s1941 = scalar_lea.vmem [#allocation2], 16
      %v1942 = vld [vmem:[%s1941] ss:$2 sm:$0xff]
      %s1943 = scalar_lea.vmem [#allocation2], 32
      %v1944 = vld [vmem:[%s1943] ss:$2 sm:$0xff]
      %s1945 = scalar_lea.vmem [#allocation2], 48
      %v1946 = vld [vmem:[%s1945] ss:$2 sm:$0xff]
      %s1947 = scalar_lea.vmem [#allocation2], 64
      %v1948 = vld [vmem:[%s1947] ss:$2 sm:$0xff]
      %s1949 = scalar_lea.vmem [#allocation2], 80
      %v1950 = vld [vmem:[%s1949] ss:$2 sm:$0xff]
      %s1951 = scalar_lea.vmem [#allocation2], 96
      %v1952 = vld [vmem:[%s1951] ss:$2 sm:$0xff]
      %s1953 = scalar_lea.vmem [#allocation2], 112
      %v1954 = vld [vmem:[%s1953] ss:$2 sm:$0xff]
      %s1955 = scalar_lea.vmem [#allocation2], 128
      %v1956 = vld [vmem:[%s1955] ss:$2 sm:$0xff]
      %s1957 = scalar_lea.vmem [#allocation2], 144
      %v1958 = vld [vmem:[%s1957] ss:$2 sm:$0xff]
      %s1959 = scalar_lea.vmem [#allocation2], 160
      %v1960 = vld [vmem:[%s1959] ss:$2 sm:$0xff]
      %s1961 = scalar_lea.vmem [#allocation2], 176
      %v1962 = vld [vmem:[%s1961] ss:$2 sm:$0xff]
      %s1963 = scalar_lea.vmem [#allocation2], 192
      %v1964 = vld [vmem:[%s1963] ss:$2 sm:$0xff]
      %s1965 = scalar_lea.vmem [#allocation2], 208
      %v1966 = vld [vmem:[%s1965] ss:$2 sm:$0xff]
      %s1967 = scalar_lea.vmem [#allocation2], 224
      %v1968 = vld [vmem:[%s1967] ss:$2 sm:$0xff]
      %s1969 = scalar_lea.vmem [#allocation2], 240
      %v1970 = vld [vmem:[%s1969] ss:$2 sm:$0xff]
      %s1971 = scalar_lea.vmem [#allocation2], 256
      %v1972 = vld [vmem:[%s1971] ss:$2 sm:$0xff]
      %s1973 = scalar_lea.vmem [#allocation2], 272
      %v1974 = vld [vmem:[%s1973] ss:$2 sm:$0xff]
      %s1975 = scalar_lea.vmem [#allocation2], 288
      %v1976 = vld [vmem:[%s1975] ss:$2 sm:$0xff]
      %s1977 = scalar_lea.vmem [#allocation2], 304
      %v1978 = vld [vmem:[%s1977] ss:$2 sm:$0xff]
      %s1979 = scalar_lea.vmem [#allocation2], 320
      %v1980 = vld [vmem:[%s1979] ss:$2 sm:$0xff]
      %s1981 = scalar_lea.vmem [#allocation2], 336
      %v1982 = vld [vmem:[%s1981] ss:$2 sm:$0xff]
      %s1983 = scalar_lea.vmem [#allocation2], 352
      %v1984 = vld [vmem:[%s1983] ss:$2 sm:$0xff]
      %s1985 = scalar_lea.vmem [#allocation2], 368
      %v1986 = vld [vmem:[%s1985] ss:$2 sm:$0xff]
      %s1987 = scalar_lea.vmem [#allocation2], 384
      %v1988 = vld [vmem:[%s1987] ss:$2 sm:$0x7f]
      %s1989 = scalar_lea.vmem [#allocation2], 1
      %v1990 = vld [vmem:[%s1989] ss:$2 sm:$0xff]
      %s1991 = scalar_lea.vmem [#allocation2], 17
      %v1992 = vld [vmem:[%s1991] ss:$2 sm:$0xff]
      %s1993 = scalar_lea.vmem [#allocation2], 33
      %v1994 = vld [vmem:[%s1993] ss:$2 sm:$0xff]
      %s1995 = scalar_lea.vmem [#allocation2], 49
      %v1996 = vld [vmem:[%s1995] ss:$2 sm:$0xff]
      %s1997 = scalar_lea.vmem [#allocation2], 65
      %v1998 = vld [vmem:[%s1997] ss:$2 sm:$0xff]
      %s1999 = scalar_lea.vmem [#allocation2], 81
      %v2000 = vld [vmem:[%s1999] ss:$2 sm:$0xff]
      %s2001 = scalar_lea.vmem [#allocation2], 97
      %v2002 = vld [vmem:[%s2001] ss:$2 sm:$0xff]
      %s2003 = scalar_lea.vmem [#allocation2], 113
      %v2004 = vld [vmem:[%s2003] ss:$2 sm:$0xff]
      %s2005 = scalar_lea.vmem [#allocation2], 129
      %v2006 = vld [vmem:[%s2005] ss:$2 sm:$0xff]
      %s2007 = scalar_lea.vmem [#allocation2], 145
      %v2008 = vld [vmem:[%s2007] ss:$2 sm:$0xff]
      %s2009 = scalar_lea.vmem [#allocation2], 161
      %v2010 = vld [vmem:[%s2009] ss:$2 sm:$0xff]
      %s2011 = scalar_lea.vmem [#allocation2], 177
      %v2012 = vld [vmem:[%s2011] ss:$2 sm:$0xff]
      %s2013 = scalar_lea.vmem [#allocation2], 193
      %v2014 = vld [vmem:[%s2013] ss:$2 sm:$0xff]
      %s2015 = scalar_lea.vmem [#allocation2], 209
      %v2016 = vld [vmem:[%s2015] ss:$2 sm:$0xff]
      %s2017 = scalar_lea.vmem [#allocation2], 225
      %v2018 = vld [vmem:[%s2017] ss:$2 sm:$0xff]
      %s2019 = scalar_lea.vmem [#allocation2], 241
      %v2020 = vld [vmem:[%s2019] ss:$2 sm:$0xff]
      %s2021 = scalar_lea.vmem [#allocation2], 257
      %v2022 = vld [vmem:[%s2021] ss:$2 sm:$0xff]
      %s2023 = scalar_lea.vmem [#allocation2], 273
      %v2024 = vld [vmem:[%s2023] ss:$2 sm:$0xff]
      %s2025 = scalar_lea.vmem [#allocation2], 289
      %v2026 = vld [vmem:[%s2025] ss:$2 sm:$0xff]
      %s2027 = scalar_lea.vmem [#allocation2], 305
      %v2028 = vld [vmem:[%s2027] ss:$2 sm:$0xff]
      %s2029 = scalar_lea.vmem [#allocation2], 321
      %v2030 = vld [vmem:[%s2029] ss:$2 sm:$0xff]
      %s2031 = scalar_lea.vmem [#allocation2], 337
      %v2032 = vld [vmem:[%s2031] ss:$2 sm:$0xff]
      %s2033 = scalar_lea.vmem [#allocation2], 353
      %v2034 = vld [vmem:[%s2033] ss:$2 sm:$0xff]
      %s2035 = scalar_lea.vmem [#allocation2], 369
      %v2036 = vld [vmem:[%s2035] ss:$2 sm:$0xff]
      %s2037 = scalar_lea.vmem [#allocation2], 385
      %v2038 = vld [vmem:[%s2037] ss:$2 sm:$0x7f]
      %s2039 = scalar_lea.vmem [#allocation2], 2
      %v2040 = vld [vmem:[%s2039] ss:$2 sm:$0xff]
      %s2041 = scalar_lea.vmem [#allocation2], 18
      %v2042 = vld [vmem:[%s2041] ss:$2 sm:$0xff]
      %s2043 = scalar_lea.vmem [#allocation2], 34
      %v2044 = vld [vmem:[%s2043] ss:$2 sm:$0xff]
      %s2045 = scalar_lea.vmem [#allocation2], 50
      %v2046 = vld [vmem:[%s2045] ss:$2 sm:$0xff]
      %s2047 = scalar_lea.vmem [#allocation2], 66
      %v2048 = vld [vmem:[%s2047] ss:$2 sm:$0xff]
      %s2049 = scalar_lea.vmem [#allocation2], 82
      %v2050 = vld [vmem:[%s2049] ss:$2 sm:$0xff]
      %s2051 = scalar_lea.vmem [#allocation2], 98
      %v2052 = vld [vmem:[%s2051] ss:$2 sm:$0xff]
      %s2053 = scalar_lea.vmem [#allocation2], 114
      %v2054 = vld [vmem:[%s2053] ss:$2 sm:$0xff]
      %s2055 = scalar_lea.vmem [#allocation2], 130
      %v2056 = vld [vmem:[%s2055] ss:$2 sm:$0xff]
      %s2057 = scalar_lea.vmem [#allocation2], 146
      %v2058 = vld [vmem:[%s2057] ss:$2 sm:$0xff]
      %s2059 = scalar_lea.vmem [#allocation2], 162
      %v2060 = vld [vmem:[%s2059] ss:$2 sm:$0xff]
      %s2061 = scalar_lea.vmem [#allocation2], 178
      %v2062 = vld [vmem:[%s2061] ss:$2 sm:$0xff]
      %s2063 = scalar_lea.vmem [#allocation2], 194
      %v2064 = vld [vmem:[%s2063] ss:$2 sm:$0xff]
      %s2065 = scalar_lea.vmem [#allocation2], 210
      %v2066 = vld [vmem:[%s2065] ss:$2 sm:$0xff]
      %s2067 = scalar_lea.vmem [#allocation2], 226
      %v2068 = vld [vmem:[%s2067] ss:$2 sm:$0xff]
      %s2069 = scalar_lea.vmem [#allocation2], 242
      %v2070 = vld [vmem:[%s2069] ss:$2 sm:$0xff]
      %s2071 = scalar_lea.vmem [#allocation2], 258
      %v2072 = vld [vmem:[%s2071] ss:$2 sm:$0xff]
      %s2073 = scalar_lea.vmem [#allocation2], 274
      %v2074 = vld [vmem:[%s2073] ss:$2 sm:$0xff]
      %s2075 = scalar_lea.vmem [#allocation2], 290
      %v2076 = vld [vmem:[%s2075] ss:$2 sm:$0xff]
      %s2077 = scalar_lea.vmem [#allocation2], 306
      %v2078 = vld [vmem:[%s2077] ss:$2 sm:$0xff]
      %s2079 = scalar_lea.vmem [#allocation2], 322
      %v2080 = vld [vmem:[%s2079] ss:$2 sm:$0xff]
      %s2081 = scalar_lea.vmem [#allocation2], 338
      %v2082 = vld [vmem:[%s2081] ss:$2 sm:$0xff]
      %s2083 = scalar_lea.vmem [#allocation2], 354
      %v2084 = vld [vmem:[%s2083] ss:$2 sm:$0xff]
      %s2085 = scalar_lea.vmem [#allocation2], 370
      %v2086 = vld [vmem:[%s2085] ss:$2 sm:$0xff]
      %s2087 = scalar_lea.vmem [#allocation2], 386
      %v2088 = vld [vmem:[%s2087] ss:$2 sm:$0x7f]
      %2114 = vrot.lane.b32.xlu0 %v1990, 64
      %v2115 = vpop.permute.xlu0 %2114
      %2116 = vrot.lane.b32.xlu0 %v1992, 64
      %v2117 = vpop.permute.xlu0 %2116
      %2118 = vrot.lane.b32.xlu0 %v1994, 64
      %v2119 = vpop.permute.xlu0 %2118
      %2120 = vrot.lane.b32.xlu0 %v1996, 64
      %v2121 = vpop.permute.xlu0 %2120
      %2122 = vrot.lane.b32.xlu0 %v1998, 64
      %v2123 = vpop.permute.xlu0 %2122
      %2124 = vrot.lane.b32.xlu0 %v2000, 64
      %v2125 = vpop.permute.xlu0 %2124
      %2126 = vrot.lane.b32.xlu0 %v2002, 64
      %v2127 = vpop.permute.xlu0 %2126
      %2128 = vrot.lane.b32.xlu0 %v2004, 64
      %v2129 = vpop.permute.xlu0 %2128
      %2130 = vrot.lane.b32.xlu0 %v2006, 64
      %v2131 = vpop.permute.xlu0 %2130
      %2132 = vrot.lane.b32.xlu0 %v2008, 64
      %v2133 = vpop.permute.xlu0 %2132
      %2134 = vrot.lane.b32.xlu0 %v2010, 64
      %v2135 = vpop.permute.xlu0 %2134
      %2136 = vrot.lane.b32.xlu0 %v2012, 64
      %v2137 = vpop.permute.xlu0 %2136
      %2138 = vrot.lane.b32.xlu0 %v2014, 64
      %v2139 = vpop.permute.xlu0 %2138
      %2140 = vrot.lane.b32.xlu0 %v2016, 64
      %v2141 = vpop.permute.xlu0 %2140
      %2142 = vrot.lane.b32.xlu0 %v2018, 64
      %v2143 = vpop.permute.xlu0 %2142
      %2144 = vrot.lane.b32.xlu0 %v2020, 64
      %v2145 = vpop.permute.xlu0 %2144
      %2146 = vrot.lane.b32.xlu0 %v2022, 64
      %v2147 = vpop.permute.xlu0 %2146
      %2148 = vrot.lane.b32.xlu0 %v2024, 64
      %v2149 = vpop.permute.xlu0 %2148
      %2150 = vrot.lane.b32.xlu0 %v2026, 64
      %v2151 = vpop.permute.xlu0 %2150
      %2152 = vrot.lane.b32.xlu0 %v2028, 64
      %v2153 = vpop.permute.xlu0 %2152
      %2154 = vrot.lane.b32.xlu0 %v2030, 64
      %v2155 = vpop.permute.xlu0 %2154
      %2156 = vrot.lane.b32.xlu0 %v2032, 64
      %v2157 = vpop.permute.xlu0 %2156
      %2158 = vrot.lane.b32.xlu0 %v2034, 64
      %v2159 = vpop.permute.xlu0 %2158
      %2160 = vrot.lane.b32.xlu0 %v2036, 64
      %v2161 = vpop.permute.xlu0 %2160
      %2162 = vrot.lane.b32.xlu0 %v2038, 64
      %v2163 = vpop.permute.xlu0 %2162
      %v2189 = vsel %vm1159, %v1940, %v2115
      %v2190 = vsel %vm1159, %v1942, %v2117
      %v2191 = vsel %vm1159, %v1944, %v2119
      %v2192 = vsel %vm1159, %v1946, %v2121
      %v2193 = vsel %vm1159, %v1948, %v2123
      %v2194 = vsel %vm1159, %v1950, %v2125
      %v2195 = vsel %vm1159, %v1952, %v2127
      %v2196 = vsel %vm1159, %v1954, %v2129
      %v2197 = vsel %vm1159, %v1956, %v2131
      %v2198 = vsel %vm1159, %v1958, %v2133
      %v2199 = vsel %vm1159, %v1960, %v2135
      %v2200 = vsel %vm1159, %v1962, %v2137
      %v2201 = vsel %vm1159, %v1964, %v2139
      %v2202 = vsel %vm1159, %v1966, %v2141
      %v2203 = vsel %vm1159, %v1968, %v2143
      %v2204 = vsel %vm1159, %v1970, %v2145
      %v2205 = vsel %vm1159, %v1972, %v2147
      %v2206 = vsel %vm1159, %v1974, %v2149
      %v2207 = vsel %vm1159, %v1976, %v2151
      %v2208 = vsel %vm1159, %v1978, %v2153
      %v2209 = vsel %vm1159, %v1980, %v2155
      %v2210 = vsel %vm1159, %v1982, %v2157
      %v2211 = vsel %vm1159, %v1984, %v2159
      %v2212 = vsel %vm1159, %v1986, %v2161
      %v2213 = vsel %vm1159, %v1988, %v2163
      %v2214 = vpack.c.bf16 %v2190, %v2189
      %v2215 = vpack.c.bf16 %v2042, %v2040
      %v2216 = vpack.c.bf16 %v2192, %v2191
      %v2217 = vpack.c.bf16 %v2046, %v2044
      %v2218 = vpack.c.bf16 %v2194, %v2193
      %v2219 = vpack.c.bf16 %v2050, %v2048
      %v2220 = vpack.c.bf16 %v2196, %v2195
      %v2221 = vpack.c.bf16 %v2054, %v2052
      %v2222 = vpack.c.bf16 %v2198, %v2197
      %v2223 = vpack.c.bf16 %v2058, %v2056
      %v2224 = vpack.c.bf16 %v2200, %v2199
      %v2225 = vpack.c.bf16 %v2062, %v2060
      %v2226 = vpack.c.bf16 %v2202, %v2201
      %v2227 = vpack.c.bf16 %v2066, %v2064
      %v2228 = vpack.c.bf16 %v2204, %v2203
      %v2229 = vpack.c.bf16 %v2070, %v2068
      %v2230 = vpack.c.bf16 %v2206, %v2205
      %v2231 = vpack.c.bf16 %v2074, %v2072
      %v2232 = vpack.c.bf16 %v2208, %v2207
      %v2233 = vpack.c.bf16 %v2078, %v2076
      %v2234 = vpack.c.bf16 %v2210, %v2209
      %v2235 = vpack.c.bf16 %v2082, %v2080
      %v2236 = vpack.c.bf16 %v2212, %v2211
      %v2237 = vpack.c.bf16 %v2086, %v2084
      %v2238 = vpack.c.bf16 %v2213, %v2213
      %v2239 = vpack.c.bf16 %v2088, %v2088
      %v2240 = vld [vmem:[%s4] sm:$0xf]
      %v2241 = vld [vmem:[%s4 + $0x4] sm:$0xf]
      %v2242 = vld [vmem:[%s4 + $0x8] sm:$0xf]
      %v2243 = vld [vmem:[%s4 + $0xc] sm:$0xf]
      %v2244 = vld [vmem:[%s4 + $0x10] sm:$0xf]
      %v2245 = vld [vmem:[%s4 + $0x14] sm:$0xf]
      %v2246 = vld [vmem:[%s4 + $0x18] sm:$0xf]
      %v2247 = vld [vmem:[%s4 + $0x1c] sm:$0xf]
      %v2248 = vld [vmem:[%s4 + $0x20] sm:$0xf]
      %v2249 = vld [vmem:[%s4 + $0x24] sm:$0xf]
      %v2250 = vld [vmem:[%s4 + $0x28] sm:$0xf]
      %v2251 = vld [vmem:[%s4 + $0x2c] sm:$0xf]
      %v2252 = vld [vmem:[%s4 + $0x30] sm:$0xf]
      %v2253 = vld [vmem:[%s4 + $0x34] sm:$0xf]
      %v2254 = vld [vmem:[%s4 + $0x38] sm:$0xf]
      %v2255 = vld [vmem:[%s4 + $0x3c] sm:$0xf]
      %v2256 = vld [vmem:[%s4 + $0x40] sm:$0xf]
      %v2257 = vld [vmem:[%s4 + $0x44] sm:$0xf]
      %v2258 = vld [vmem:[%s4 + $0x48] sm:$0xf]
      %v2259 = vld [vmem:[%s4 + $0x4c] sm:$0xf]
      %v2260 = vld [vmem:[%s4 + $0x50] sm:$0xf]
      %v2261 = vld [vmem:[%s4 + $0x54] sm:$0xf]
      %v2262 = vld [vmem:[%s4 + $0x58] sm:$0xf]
      %v2263 = vld [vmem:[%s4 + $0x5c] sm:$0xf]
      %v2288 = vunpack.c.l.b16 %v2240
      %v2289 = vunpack.c.l.b16 %v2241
      %v2290 = vunpack.c.l.b16 %v2242
      %v2291 = vunpack.c.l.b16 %v2243
      %v2292 = vunpack.c.l.b16 %v2244
      %v2293 = vunpack.c.l.b16 %v2245
      %v2294 = vunpack.c.l.b16 %v2246
      %v2295 = vunpack.c.l.b16 %v2247
      %v2296 = vunpack.c.l.b16 %v2248
      %v2297 = vunpack.c.l.b16 %v2249
      %v2298 = vunpack.c.l.b16 %v2250
      %v2299 = vunpack.c.l.b16 %v2251
      %v2300 = vunpack.c.l.b16 %v2252
      %v2301 = vunpack.c.l.b16 %v2253
      %v2302 = vunpack.c.l.b16 %v2254
      %v2303 = vunpack.c.l.b16 %v2255
      %v2304 = vunpack.c.l.b16 %v2256
      %v2305 = vunpack.c.l.b16 %v2257
      %v2306 = vunpack.c.l.b16 %v2258
      %v2307 = vunpack.c.l.b16 %v2259
      %v2308 = vunpack.c.l.b16 %v2260
      %v2309 = vunpack.c.l.b16 %v2261
      %v2310 = vunpack.c.l.b16 %v2262
      %v2311 = vunpack.c.l.b16 %v2263
      %v2312 = vpack.c.b16 %v2289, %v2288
      %v2313 = vpack.c.b16 %v2291, %v2290
      %v2314 = vpack.c.b16 %v2293, %v2292
      %v2315 = vpack.c.b16 %v2295, %v2294
      %v2316 = vpack.c.b16 %v2297, %v2296
      %v2317 = vpack.c.b16 %v2299, %v2298
      %v2318 = vpack.c.b16 %v2301, %v2300
      %v2319 = vpack.c.b16 %v2303, %v2302
      %v2320 = vpack.c.b16 %v2305, %v2304
      %v2321 = vpack.c.b16 %v2307, %v2306
      %v2322 = vpack.c.b16 %v2309, %v2308
      %v2323 = vpack.c.b16 %v2311, %v2310
      %v2337 = vsel %vm1159, %v2215, 0
      %v2340 = vsel %vm1159, %v2217, 0
      %v2343 = vsel %vm1159, %v2219, 0
      %v2346 = vsel %vm1159, %v2221, 0
      %v2349 = vsel %vm1159, %v2223, 0
      %v2352 = vsel %vm1159, %v2225, 0
      %v2355 = vsel %vm1159, %v2227, 0
      %v2358 = vsel %vm1159, %v2229, 0
      %v2361 = vsel %vm1159, %v2231, 0
      %v2364 = vsel %vm1159, %v2233, 0
      %v2367 = vsel %vm1159, %v2235, 0
      %v2370 = vsel %vm1159, %v2237, 0
      %v2373 = vsel %vm1159, %v2239, 0
      %2375 = vmatprep.subr.bf16.mxu0 0
      %2376 = vmatpush1.bf16.msra.mxu0 %v2319
      %2377 = vmatprep.subr.bf16.mxu0 0
      %2378 = vmatpush1.bf16.msra.mxu0 %v2318
      %2379 = vmatprep.subr.bf16.mxu0 0
      %2380 = vmatpush1.bf16.msra.mxu0 %v2317
      %2381 = vmatprep.subr.bf16.mxu0 0
      %2382 = vmatpush1.bf16.msra.mxu0 %v2316
      %2383 = vmatprep.subr.bf16.mxu0 0
      %2384 = vmatpush1.bf16.msra.mxu0 %v2315
      %2385 = vmatprep.subr.bf16.mxu0 0
      %2386 = vmatpush1.bf16.msra.mxu0 %v2314
      %2387 = vmatprep.subr.bf16.mxu0 0
      %2388 = vmatpush1.bf16.msra.mxu0 %v2313
      %2389 = vmatprep.subr.bf16.mxu0 0
      %2390 = vmatpush1.bf16.msra.mxu0 %v2312
      %2391 = vmatprep.subr.bf16.mxu0 0
      %2392 = vmatpush2.bf16.msra.mxu0 0
      %2393 = vmatprep.subr.bf16.mxu0 0
      %2394 = vmatpush2.bf16.msra.mxu0 0
      %2395 = vmatprep.subr.bf16.mxu0 0
      %2396 = vmatpush2.bf16.msra.mxu0 0
      %2397 = vmatprep.subr.bf16.mxu0 0
      %2398 = vmatpush2.bf16.msra.mxu0 0
      %2399 = vmatprep.subr.bf16.mxu0 0
      %2400 = vmatpush2.bf16.msra.mxu0 %v2323
      %2401 = vmatprep.subr.bf16.mxu0 0
      %2402 = vmatpush2.bf16.msra.mxu0 %v2322
      %2403 = vmatprep.subr.bf16.mxu0 0
      %2404 = vmatpush2.bf16.msra.mxu0 %v2321
      %2405 = vmatprep.subr.bf16.mxu0 0
      %2406 = vmatpush2.bf16.msra.mxu0 %v2320
      %2407 = vmatprep.mubr.bf16.mxu0 %v2337
      %2408 = vmatmul.mubr.bf16.gmra.mxu0 %v2214
      %v2409 = vpop.f32.mrf.mxu0
      %v2410 = vadd.f32 0.0, %v2409
      %v2411 = vpop.f32.mrf.mxu0
      %v2412 = vpop.f32.mrf.mxu0
      %v2413 = vadd.f32 0.0, %v2412
      %v2414 = vpop.f32.mrf.mxu0
      %2415 = vmatprep.mubr.bf16.mxu0 %v2340
      %2416 = vmatmul.mubr.bf16.gmra.mxu0 %v2216
      %v2417 = vpop.f32.mrf.mxu0
      %v2418 = vadd.f32 0.0, %v2417
      %v2419 = vpop.f32.mrf.mxu0
      %v2420 = vpop.f32.mrf.mxu0
      %v2421 = vadd.f32 0.0, %v2420
      %v2422 = vpop.f32.mrf.mxu0
      %2423 = vmatprep.mubr.bf16.mxu0 %v2343
      %2424 = vmatmul.mubr.bf16.gmra.mxu0 %v2218
      %v2425 = vpop.f32.mrf.mxu0
      %v2426 = vadd.f32 0.0, %v2425
      %v2427 = vpop.f32.mrf.mxu0
      %v2428 = vpop.f32.mrf.mxu0
      %v2429 = vadd.f32 0.0, %v2428
      %v2430 = vpop.f32.mrf.mxu0
      %2431 = vmatprep.mubr.bf16.mxu0 %v2346
      %2432 = vmatmul.mubr.bf16.gmra.mxu0 %v2220
      %v2433 = vpop.f32.mrf.mxu0
      %v2434 = vadd.f32 0.0, %v2433
      %v2435 = vpop.f32.mrf.mxu0
      %v2436 = vpop.f32.mrf.mxu0
      %v2437 = vadd.f32 0.0, %v2436
      %v2438 = vpop.f32.mrf.mxu0
      %2439 = vmatprep.mubr.bf16.mxu0 %v2349
      %2440 = vmatmul.mubr.bf16.gmra.mxu0 %v2222
      %v2441 = vpop.f32.mrf.mxu0
      %v2442 = vadd.f32 0.0, %v2441
      %v2443 = vpop.f32.mrf.mxu0
      %v2444 = vpop.f32.mrf.mxu0
      %v2445 = vadd.f32 0.0, %v2444
      %v2446 = vpop.f32.mrf.mxu0
      %2447 = vmatprep.mubr.bf16.mxu0 %v2352
      %2448 = vmatmul.mubr.bf16.gmra.mxu0 %v2224
      %v2449 = vpop.f32.mrf.mxu0
      %v2450 = vadd.f32 0.0, %v2449
      %v2451 = vpop.f32.mrf.mxu0
      %v2452 = vpop.f32.mrf.mxu0
      %v2453 = vadd.f32 0.0, %v2452
      %v2454 = vpop.f32.mrf.mxu0
      %2455 = vmatprep.mubr.bf16.mxu0 %v2355
      %2456 = vmatmul.mubr.bf16.gmra.mxu0 %v2226
      %v2457 = vpop.f32.mrf.mxu0
      %v2458 = vadd.f32 0.0, %v2457
      %v2459 = vpop.f32.mrf.mxu0
      %v2460 = vpop.f32.mrf.mxu0
      %v2461 = vadd.f32 0.0, %v2460
      %v2462 = vpop.f32.mrf.mxu0
      %2463 = vmatprep.mubr.bf16.mxu0 %v2358
      %2464 = vmatmul.mubr.bf16.gmra.mxu0 %v2228
      %v2465 = vpop.f32.mrf.mxu0
      %v2466 = vadd.f32 0.0, %v2465
      %v2467 = vpop.f32.mrf.mxu0
      %v2468 = vpop.f32.mrf.mxu0
      %v2469 = vadd.f32 0.0, %v2468
      %v2470 = vpop.f32.mrf.mxu0
      %2471 = vmatprep.mubr.bf16.mxu0 %v2361
      %2472 = vmatmul.mubr.bf16.gmra.mxu0 %v2230
      %v2473 = vpop.f32.mrf.mxu0
      %v2474 = vadd.f32 0.0, %v2473
      %v2475 = vpop.f32.mrf.mxu0
      %v2476 = vpop.f32.mrf.mxu0
      %v2477 = vadd.f32 0.0, %v2476
      %v2478 = vpop.f32.mrf.mxu0
      %2479 = vmatprep.mubr.bf16.mxu0 %v2364
      %2480 = vmatmul.mubr.bf16.gmra.mxu0 %v2232
      %v2481 = vpop.f32.mrf.mxu0
      %v2482 = vadd.f32 0.0, %v2481
      %v2483 = vpop.f32.mrf.mxu0
      %v2484 = vpop.f32.mrf.mxu0
      %v2485 = vadd.f32 0.0, %v2484
      %v2486 = vpop.f32.mrf.mxu0
      %2487 = vmatprep.mubr.bf16.mxu0 %v2367
      %2488 = vmatmul.mubr.bf16.gmra.mxu0 %v2234
      %v2489 = vpop.f32.mrf.mxu0
      %v2490 = vadd.f32 0.0, %v2489
      %v2491 = vpop.f32.mrf.mxu0
      %v2492 = vpop.f32.mrf.mxu0
      %v2493 = vadd.f32 0.0, %v2492
      %v2494 = vpop.f32.mrf.mxu0
      %2495 = vmatprep.mubr.bf16.mxu0 %v2370
      %2496 = vmatmul.mubr.bf16.gmra.mxu0 %v2236
      %v2497 = vpop.f32.mrf.mxu0
      %v2498 = vadd.f32 0.0, %v2497
      %v2499 = vpop.f32.mrf.mxu0
      %v2500 = vpop.f32.mrf.mxu0
      %v2501 = vadd.f32 0.0, %v2500
      %v2502 = vpop.f32.mrf.mxu0
      %2503 = vmatprep.mubr.bf16.mxu0 %v2373
      %2504 = vmatmul.mubr.bf16.gmra.mxu0 %v2238
      %v2505 = vpop.f32.mrf.mxu0
      %v2506 = vadd.f32 0.0, %v2505
      %v2507 = vpop.f32.mrf.mxu0
      %v2508 = vpop.f32.mrf.mxu0
      %v2509 = vpop.f32.mrf.mxu0
      %2510 = vdwg.mxu0
      %v2511 = vmul.f32 %v2410, 0.5
      %v2512 = vmul.f32 %v2413, 0.5
      %v2513 = vmul.f32 %v2418, 0.5
      %v2514 = vmul.f32 %v2421, 0.5
      %v2515 = vmul.f32 %v2426, 0.5
      %v2516 = vmul.f32 %v2429, 0.5
      %v2517 = vmul.f32 %v2434, 0.5
      %v2518 = vmul.f32 %v2437, 0.5
      %v2519 = vmul.f32 %v2442, 0.5
      %v2520 = vmul.f32 %v2445, 0.5
      %v2521 = vmul.f32 %v2450, 0.5
      %v2522 = vmul.f32 %v2453, 0.5
      %v2523 = vmul.f32 %v2458, 0.5
      %v2524 = vmul.f32 %v2461, 0.5
      %v2525 = vmul.f32 %v2466, 0.5
      %v2526 = vmul.f32 %v2469, 0.5
      %v2527 = vmul.f32 %v2474, 0.5
      %v2528 = vmul.f32 %v2477, 0.5
      %v2529 = vmul.f32 %v2482, 0.5
      %v2530 = vmul.f32 %v2485, 0.5
      %v2531 = vmul.f32 %v2490, 0.5
      %v2532 = vmul.f32 %v2493, 0.5
      %v2533 = vmul.f32 %v2498, 0.5
      %v2534 = vmul.f32 %v2501, 0.5
      %v2535 = vmul.f32 %v2506, 0.5
      %v2536 = vmul.f32 %v2410, 0.70710677
      %v2537 = vmul.f32 %v2413, 0.70710677
      %v2538 = vmul.f32 %v2418, 0.70710677
      %v2539 = vmul.f32 %v2421, 0.70710677
      %v2540 = vmul.f32 %v2426, 0.70710677
      %v2541 = vmul.f32 %v2429, 0.70710677
      %v2542 = vmul.f32 %v2434, 0.70710677
      %v2543 = vmul.f32 %v2437, 0.70710677
      %v2544 = vmul.f32 %v2442, 0.70710677
      %v2545 = vmul.f32 %v2445, 0.70710677
      %v2546 = vmul.f32 %v2450, 0.70710677
      %v2547 = vmul.f32 %v2453, 0.70710677
      %v2548 = vmul.f32 %v2458, 0.70710677
      %v2549 = vmul.f32 %v2461, 0.70710677
      %v2550 = vmul.f32 %v2466, 0.70710677
      %v2551 = vmul.f32 %v2469, 0.70710677
      %v2552 = vmul.f32 %v2474, 0.70710677
      %v2553 = vmul.f32 %v2477, 0.70710677
      %v2554 = vmul.f32 %v2482, 0.70710677
      %v2555 = vmul.f32 %v2485, 0.70710677
      %v2556 = vmul.f32 %v2490, 0.70710677
      %v2557 = vmul.f32 %v2493, 0.70710677
      %v2558 = vmul.f32 %v2498, 0.70710677
      %v2559 = vmul.f32 %v2501, 0.70710677
      %v2560 = vmul.f32 %v2506, 0.70710677
      %v2561 = verf.f32.pop %v2536
      %v2562 = verf.f32.pop %v2537
      %v2563 = verf.f32.pop %v2538
      %v2564 = verf.f32.pop %v2539
      %v2565 = verf.f32.pop %v2540
      %v2566 = verf.f32.pop %v2541
      %v2567 = verf.f32.pop %v2542
      %v2568 = verf.f32.pop %v2543
      %v2569 = verf.f32.pop %v2544
      %v2570 = verf.f32.pop %v2545
      %v2571 = verf.f32.pop %v2546
      %v2572 = verf.f32.pop %v2547
      %v2573 = verf.f32.pop %v2548
      %v2574 = verf.f32.pop %v2549
      %v2575 = verf.f32.pop %v2550
      %v2576 = verf.f32.pop %v2551
      %v2577 = verf.f32.pop %v2552
      %v2578 = verf.f32.pop %v2553
      %v2579 = verf.f32.pop %v2554
      %v2580 = verf.f32.pop %v2555
      %v2581 = verf.f32.pop %v2556
      %v2582 = verf.f32.pop %v2557
      %v2583 = verf.f32.pop %v2558
      %v2584 = verf.f32.pop %v2559
      %v2585 = verf.f32.pop %v2560
      %v2586 = vadd.f32 %v2561, 1.0
      %v2587 = vadd.f32 %v2562, 1.0
      %v2588 = vadd.f32 %v2563, 1.0
      %v2589 = vadd.f32 %v2564, 1.0
      %v2590 = vadd.f32 %v2565, 1.0
      %v2591 = vadd.f32 %v2566, 1.0
      %v2592 = vadd.f32 %v2567, 1.0
      %v2593 = vadd.f32 %v2568, 1.0
      %v2594 = vadd.f32 %v2569, 1.0
      %v2595 = vadd.f32 %v2570, 1.0
      %v2596 = vadd.f32 %v2571, 1.0
      %v2597 = vadd.f32 %v2572, 1.0
      %v2598 = vadd.f32 %v2573, 1.0
      %v2599 = vadd.f32 %v2574, 1.0
      %v2600 = vadd.f32 %v2575, 1.0
      %v2601 = vadd.f32 %v2576, 1.0
      %v2602 = vadd.f32 %v2577, 1.0
      %v2603 = vadd.f32 %v2578, 1.0
      %v2604 = vadd.f32 %v2579, 1.0
      %v2605 = vadd.f32 %v2580, 1.0
      %v2606 = vadd.f32 %v2581, 1.0
      %v2607 = vadd.f32 %v2582, 1.0
      %v2608 = vadd.f32 %v2583, 1.0
      %v2609 = vadd.f32 %v2584, 1.0
      %v2610 = vadd.f32 %v2585, 1.0
      %v2611 = vmul.f32 %v2511, %v2586
      %v2612 = vmul.f32 %v2512, %v2587
      %v2613 = vmul.f32 %v2513, %v2588
      %v2614 = vmul.f32 %v2514, %v2589
      %v2615 = vmul.f32 %v2515, %v2590
      %v2616 = vmul.f32 %v2516, %v2591
      %v2617 = vmul.f32 %v2517, %v2592
      %v2618 = vmul.f32 %v2518, %v2593
      %v2619 = vmul.f32 %v2519, %v2594
      %v2620 = vmul.f32 %v2520, %v2595
      %v2621 = vmul.f32 %v2521, %v2596
      %v2622 = vmul.f32 %v2522, %v2597
      %v2623 = vmul.f32 %v2523, %v2598
      %v2624 = vmul.f32 %v2524, %v2599
      %v2625 = vmul.f32 %v2525, %v2600
      %v2626 = vmul.f32 %v2526, %v2601
      %v2627 = vmul.f32 %v2527, %v2602
      %v2628 = vmul.f32 %v2528, %v2603
      %v2629 = vmul.f32 %v2529, %v2604
      %v2630 = vmul.f32 %v2530, %v2605
      %v2631 = vmul.f32 %v2531, %v2606
      %v2632 = vmul.f32 %v2532, %v2607
      %v2633 = vmul.f32 %v2533, %v2608
      %v2634 = vmul.f32 %v2534, %v2609
      %v2635 = vmul.f32 %v2535, %v2610
      %2636 = vst.msk [vmem:[#allocation3] sm:$0xff] %vm1159, %v2611
      %2637 = vst.msk [vmem:[#allocation3 + $0x8] sm:$0xff] %vm1159, %v2612
      %2638 = vst.msk [vmem:[#allocation3 + $0x10] sm:$0xff] %vm1159, %v2613
      %2639 = vst.msk [vmem:[#allocation3 + $0x18] sm:$0xff] %vm1159, %v2614
      %2640 = vst.msk [vmem:[#allocation3 + $0x20] sm:$0xff] %vm1159, %v2615
      %2641 = vst.msk [vmem:[#allocation3 + $0x28] sm:$0xff] %vm1159, %v2616
      %2642 = vst.msk [vmem:[#allocation3 + $0x30] sm:$0xff] %vm1159, %v2617
      %2643 = vst.msk [vmem:[#allocation3 + $0x38] sm:$0xff] %vm1159, %v2618
      %2644 = vst.msk [vmem:[#allocation3 + $0x40] sm:$0xff] %vm1159, %v2619
      %2645 = vst.msk [vmem:[#allocation3 + $0x48] sm:$0xff] %vm1159, %v2620
      %2646 = vst.msk [vmem:[#allocation3 + $0x50] sm:$0xff] %vm1159, %v2621
      %2647 = vst.msk [vmem:[#allocation3 + $0x58] sm:$0xff] %vm1159, %v2622
      %2648 = vst.msk [vmem:[#allocation3 + $0x60] sm:$0xff] %vm1159, %v2623
      %2649 = vst.msk [vmem:[#allocation3 + $0x68] sm:$0xff] %vm1159, %v2624
      %2650 = vst.msk [vmem:[#allocation3 + $0x70] sm:$0xff] %vm1159, %v2625
      %2651 = vst.msk [vmem:[#allocation3 + $0x78] sm:$0xff] %vm1159, %v2626
      %2652 = vst.msk [vmem:[#allocation3 + $0x80] sm:$0xff] %vm1159, %v2627
      %2653 = vst.msk [vmem:[#allocation3 + $0x88] sm:$0xff] %vm1159, %v2628
      %2654 = vst.msk [vmem:[#allocation3 + $0x90] sm:$0xff] %vm1159, %v2629
      %2655 = vst.msk [vmem:[#allocation3 + $0x98] sm:$0xff] %vm1159, %v2630
      %2656 = vst.msk [vmem:[#allocation3 + $0xa0] sm:$0xff] %vm1159, %v2631
      %2657 = vst.msk [vmem:[#allocation3 + $0xa8] sm:$0xff] %vm1159, %v2632
      %2658 = vst.msk [vmem:[#allocation3 + $0xb0] sm:$0xff] %vm1159, %v2633
      %2659 = vst.msk [vmem:[#allocation3 + $0xb8] sm:$0xff] %vm1159, %v2634
      %2660 = vst.msk [vmem:[#allocation3 + $0xc0] sm:$0x7f] %vm1257, %v2635
      %v2661 = vld [vmem:[#allocation3] ss:$2 sm:$0xff]
      %s2662 = scalar_lea.vmem [#allocation3], 16
      %v2663 = vld [vmem:[%s2662] ss:$2 sm:$0xff]
      %s2664 = scalar_lea.vmem [#allocation3], 32
      %v2665 = vld [vmem:[%s2664] ss:$2 sm:$0xff]
      %s2666 = scalar_lea.vmem [#allocation3], 48
      %v2667 = vld [vmem:[%s2666] ss:$2 sm:$0xff]
      %s2668 = scalar_lea.vmem [#allocation3], 64
      %v2669 = vld [vmem:[%s2668] ss:$2 sm:$0xff]
      %s2670 = scalar_lea.vmem [#allocation3], 80
      %v2671 = vld [vmem:[%s2670] ss:$2 sm:$0xff]
      %s2672 = scalar_lea.vmem [#allocation3], 96
      %v2673 = vld [vmem:[%s2672] ss:$2 sm:$0xff]
      %s2674 = scalar_lea.vmem [#allocation3], 112
      %v2675 = vld [vmem:[%s2674] ss:$2 sm:$0xff]
      %s2676 = scalar_lea.vmem [#allocation3], 128
      %v2677 = vld [vmem:[%s2676] ss:$2 sm:$0xff]
      %s2678 = scalar_lea.vmem [#allocation3], 144
      %v2679 = vld [vmem:[%s2678] ss:$2 sm:$0xff]
      %s2680 = scalar_lea.vmem [#allocation3], 160
      %v2681 = vld [vmem:[%s2680] ss:$2 sm:$0xff]
      %s2682 = scalar_lea.vmem [#allocation3], 176
      %v2683 = vld [vmem:[%s2682] ss:$2 sm:$0xff]
      %s2684 = scalar_lea.vmem [#allocation3], 192
      %v2685 = vld [vmem:[%s2684] ss:$2 sm:$0x7]
      %s2686 = scalar_lea.vmem [#allocation3], 1
      %v2687 = vld [vmem:[%s2686] ss:$2 sm:$0xff]
      %s2688 = scalar_lea.vmem [#allocation3], 17
      %v2689 = vld [vmem:[%s2688] ss:$2 sm:$0xff]
      %s2690 = scalar_lea.vmem [#allocation3], 33
      %v2691 = vld [vmem:[%s2690] ss:$2 sm:$0xff]
      %s2692 = scalar_lea.vmem [#allocation3], 49
      %v2693 = vld [vmem:[%s2692] ss:$2 sm:$0xff]
      %s2694 = scalar_lea.vmem [#allocation3], 65
      %v2695 = vld [vmem:[%s2694] ss:$2 sm:$0xff]
      %s2696 = scalar_lea.vmem [#allocation3], 81
      %v2697 = vld [vmem:[%s2696] ss:$2 sm:$0xff]
      %s2698 = scalar_lea.vmem [#allocation3], 97
      %v2699 = vld [vmem:[%s2698] ss:$2 sm:$0xff]
      %s2700 = scalar_lea.vmem [#allocation3], 113
      %v2701 = vld [vmem:[%s2700] ss:$2 sm:$0xff]
      %s2702 = scalar_lea.vmem [#allocation3], 129
      %v2703 = vld [vmem:[%s2702] ss:$2 sm:$0xff]
      %s2704 = scalar_lea.vmem [#allocation3], 145
      %v2705 = vld [vmem:[%s2704] ss:$2 sm:$0xff]
      %s2706 = scalar_lea.vmem [#allocation3], 161
      %v2707 = vld [vmem:[%s2706] ss:$2 sm:$0xff]
      %s2708 = scalar_lea.vmem [#allocation3], 177
      %v2709 = vld [vmem:[%s2708] ss:$2 sm:$0xff]
      %s2710 = scalar_lea.vmem [#allocation3], 193
      %v2711 = vld [vmem:[%s2710] ss:$2 sm:$0x7]
      %s2712 = scalar_lea.vmem [#allocation3], 2
      %v2713 = vld [vmem:[%s2712] ss:$2 sm:$0xff]
      %s2714 = scalar_lea.vmem [#allocation3], 18
      %v2715 = vld [vmem:[%s2714] ss:$2 sm:$0xff]
      %s2716 = scalar_lea.vmem [#allocation3], 34
      %v2717 = vld [vmem:[%s2716] ss:$2 sm:$0xff]
      %s2718 = scalar_lea.vmem [#allocation3], 50
      %v2719 = vld [vmem:[%s2718] ss:$2 sm:$0xff]
      %s2720 = scalar_lea.vmem [#allocation3], 66
      %v2721 = vld [vmem:[%s2720] ss:$2 sm:$0xff]
      %s2722 = scalar_lea.vmem [#allocation3], 82
      %v2723 = vld [vmem:[%s2722] ss:$2 sm:$0xff]
      %s2724 = scalar_lea.vmem [#allocation3], 98
      %v2725 = vld [vmem:[%s2724] ss:$2 sm:$0xff]
      %s2726 = scalar_lea.vmem [#allocation3], 114
      %v2727 = vld [vmem:[%s2726] ss:$2 sm:$0xff]
      %s2728 = scalar_lea.vmem [#allocation3], 130
      %v2729 = vld [vmem:[%s2728] ss:$2 sm:$0xff]
      %s2730 = scalar_lea.vmem [#allocation3], 146
      %v2731 = vld [vmem:[%s2730] ss:$2 sm:$0xff]
      %s2732 = scalar_lea.vmem [#allocation3], 162
      %v2733 = vld [vmem:[%s2732] ss:$2 sm:$0xff]
      %s2734 = scalar_lea.vmem [#allocation3], 178
      %v2735 = vld [vmem:[%s2734] ss:$2 sm:$0xff]
      %s2736 = scalar_lea.vmem [#allocation3], 194
      %v2737 = vld [vmem:[%s2736] ss:$2 sm:$0x7]
      %2751 = vrot.lane.b32.xlu0 %v2687, 64
      %v2752 = vpop.permute.xlu0 %2751
      %2753 = vrot.lane.b32.xlu0 %v2689, 64
      %v2754 = vpop.permute.xlu0 %2753
      %2755 = vrot.lane.b32.xlu0 %v2691, 64
      %v2756 = vpop.permute.xlu0 %2755
      %2757 = vrot.lane.b32.xlu0 %v2693, 64
      %v2758 = vpop.permute.xlu0 %2757
      %2759 = vrot.lane.b32.xlu0 %v2695, 64
      %v2760 = vpop.permute.xlu0 %2759
      %2761 = vrot.lane.b32.xlu0 %v2697, 64
      %v2762 = vpop.permute.xlu0 %2761
      %2763 = vrot.lane.b32.xlu0 %v2699, 64
      %v2764 = vpop.permute.xlu0 %2763
      %2765 = vrot.lane.b32.xlu0 %v2701, 64
      %v2766 = vpop.permute.xlu0 %2765
      %2767 = vrot.lane.b32.xlu0 %v2703, 64
      %v2768 = vpop.permute.xlu0 %2767
      %2769 = vrot.lane.b32.xlu0 %v2705, 64
      %v2770 = vpop.permute.xlu0 %2769
      %2771 = vrot.lane.b32.xlu0 %v2707, 64
      %v2772 = vpop.permute.xlu0 %2771
      %2773 = vrot.lane.b32.xlu0 %v2709, 64
      %v2774 = vpop.permute.xlu0 %2773
      %2775 = vrot.lane.b32.xlu0 %v2711, 64
      %v2776 = vpop.permute.xlu0 %2775
      %v2790 = vsel %vm1159, %v2661, %v2752
      %v2791 = vsel %vm1159, %v2663, %v2754
      %v2792 = vsel %vm1159, %v2665, %v2756
      %v2793 = vsel %vm1159, %v2667, %v2758
      %v2794 = vsel %vm1159, %v2669, %v2760
      %v2795 = vsel %vm1159, %v2671, %v2762
      %v2796 = vsel %vm1159, %v2673, %v2764
      %v2797 = vsel %vm1159, %v2675, %v2766
      %v2798 = vsel %vm1159, %v2677, %v2768
      %v2799 = vsel %vm1159, %v2679, %v2770
      %v2800 = vsel %vm1159, %v2681, %v2772
      %v2801 = vsel %vm1159, %v2683, %v2774
      %v2802 = vsel %vm1159, %v2685, %v2776
      %v2803 = vpack.c.bf16 %v2791, %v2790
      %v2804 = vpack.c.bf16 %v2715, %v2713
      %v2805 = vpack.c.bf16 %v2793, %v2792
      %v2806 = vpack.c.bf16 %v2719, %v2717
      %v2807 = vpack.c.bf16 %v2795, %v2794
      %v2808 = vpack.c.bf16 %v2723, %v2721
      %v2809 = vpack.c.bf16 %v2797, %v2796
      %v2810 = vpack.c.bf16 %v2727, %v2725
      %v2811 = vpack.c.bf16 %v2799, %v2798
      %v2812 = vpack.c.bf16 %v2731, %v2729
      %v2813 = vpack.c.bf16 %v2801, %v2800
      %v2814 = vpack.c.bf16 %v2735, %v2733
      %v2815 = vpack.c.bf16 %v2802, %v2802
      %v2816 = vpack.c.bf16 %v2737, %v2737
      %v2817 = vld [vmem:[%s5] sm:$0xf]
      %v2818 = vld [vmem:[%s5 + $0x4] sm:$0xf]
      %v2819 = vld [vmem:[%s5 + $0x8] sm:$0xf]
      %v2820 = vld [vmem:[%s5 + $0xc] sm:$0xf]
      %v2821 = vld [vmem:[%s5 + $0x10] sm:$0xf]
      %v2822 = vld [vmem:[%s5 + $0x14] sm:$0xf]
      %v2823 = vld [vmem:[%s5 + $0x18] sm:$0xf]
      %v2824 = vld [vmem:[%s5 + $0x1c] sm:$0xf]
      %v2825 = vld [vmem:[%s5 + $0x20] sm:$0xf]
      %v2826 = vld [vmem:[%s5 + $0x24] sm:$0xf]
      %v2827 = vld [vmem:[%s5 + $0x28] sm:$0xf]
      %v2828 = vld [vmem:[%s5 + $0x2c] sm:$0xf]
      %v2829 = vld [vmem:[%s5 + $0x30] sm:$0xf]
      %v2830 = vld [vmem:[%s5 + $0x34] sm:$0xf]
      %v2831 = vld [vmem:[%s5 + $0x38] sm:$0xf]
      %v2832 = vld [vmem:[%s5 + $0x3c] sm:$0xf]
      %v2833 = vld [vmem:[%s5 + $0x40] sm:$0xf]
      %v2834 = vld [vmem:[%s5 + $0x44] sm:$0xf]
      %v2835 = vld [vmem:[%s5 + $0x48] sm:$0xf]
      %v2836 = vld [vmem:[%s5 + $0x4c] sm:$0xf]
      %v2837 = vld [vmem:[%s5 + $0x50] sm:$0xf]
      %v2838 = vld [vmem:[%s5 + $0x54] sm:$0xf]
      %v2839 = vld [vmem:[%s5 + $0x58] sm:$0xf]
      %v2840 = vld [vmem:[%s5 + $0x5c] sm:$0xf]
      %v2865 = vunpack.c.l.b16 %v2817
      %v2866 = vunpack.c.l.b16 %v2818
      %v2867 = vunpack.c.l.b16 %v2819
      %v2868 = vunpack.c.l.b16 %v2820
      %v2869 = vunpack.c.l.b16 %v2821
      %v2870 = vunpack.c.l.b16 %v2822
      %v2871 = vunpack.c.l.b16 %v2823
      %v2872 = vunpack.c.l.b16 %v2824
      %v2873 = vunpack.c.l.b16 %v2825
      %v2874 = vunpack.c.l.b16 %v2826
      %v2875 = vunpack.c.l.b16 %v2827
      %v2876 = vunpack.c.l.b16 %v2828
      %v2877 = vunpack.c.l.b16 %v2829
      %v2878 = vunpack.c.l.b16 %v2830
      %v2879 = vunpack.c.l.b16 %v2831
      %v2880 = vunpack.c.l.b16 %v2832
      %v2881 = vunpack.c.l.b16 %v2833
      %v2882 = vunpack.c.l.b16 %v2834
      %v2883 = vunpack.c.l.b16 %v2835
      %v2884 = vunpack.c.l.b16 %v2836
      %v2885 = vunpack.c.l.b16 %v2837
      %v2886 = vunpack.c.l.b16 %v2838
      %v2887 = vunpack.c.l.b16 %v2839
      %v2888 = vunpack.c.l.b16 %v2840
      %v2889 = vpack.c.b16 %v2866, %v2865
      %v2890 = vpack.c.b16 %v2868, %v2867
      %v2891 = vpack.c.b16 %v2870, %v2869
      %v2892 = vpack.c.b16 %v2872, %v2871
      %v2893 = vpack.c.b16 %v2874, %v2873
      %v2894 = vpack.c.b16 %v2876, %v2875
      %v2895 = vpack.c.b16 %v2878, %v2877
      %v2896 = vpack.c.b16 %v2880, %v2879
      %v2897 = vpack.c.b16 %v2882, %v2881
      %v2898 = vpack.c.b16 %v2884, %v2883
      %v2899 = vpack.c.b16 %v2886, %v2885
      %v2900 = vpack.c.b16 %v2888, %v2887
      %v2914 = vsel %vm1159, %v2804, 0
      %v2917 = vsel %vm1159, %v2806, 0
      %v2920 = vsel %vm1159, %v2808, 0
      %v2923 = vsel %vm1159, %v2810, 0
      %v2926 = vsel %vm1159, %v2812, 0
      %v2929 = vsel %vm1159, %v2814, 0
      %v2932 = vsel %vm1159, %v2816, 0
      %2934 = vmatprep.subr.bf16.mxu0 0
      %2935 = vmatpush1.bf16.msra.mxu0 %v2896
      %2936 = vmatprep.subr.bf16.mxu0 0
      %2937 = vmatpush1.bf16.msra.mxu0 %v2895
      %2938 = vmatprep.subr.bf16.mxu0 0
      %2939 = vmatpush1.bf16.msra.mxu0 %v2894
      %2940 = vmatprep.subr.bf16.mxu0 0
      %2941 = vmatpush1.bf16.msra.mxu0 %v2893
      %2942 = vmatprep.subr.bf16.mxu0 0
      %2943 = vmatpush1.bf16.msra.mxu0 %v2892
      %2944 = vmatprep.subr.bf16.mxu0 0
      %2945 = vmatpush1.bf16.msra.mxu0 %v2891
      %2946 = vmatprep.subr.bf16.mxu0 0
      %2947 = vmatpush1.bf16.msra.mxu0 %v2890
      %2948 = vmatprep.subr.bf16.mxu0 0
      %2949 = vmatpush1.bf16.msra.mxu0 %v2889
      %2950 = vmatprep.subr.bf16.mxu0 0
      %2951 = vmatpush2.bf16.msra.mxu0 0
      %2952 = vmatprep.subr.bf16.mxu0 0
      %2953 = vmatpush2.bf16.msra.mxu0 0
      %2954 = vmatprep.subr.bf16.mxu0 0
      %2955 = vmatpush2.bf16.msra.mxu0 0
      %2956 = vmatprep.subr.bf16.mxu0 0
      %2957 = vmatpush2.bf16.msra.mxu0 0
      %2958 = vmatprep.subr.bf16.mxu0 0
      %2959 = vmatpush2.bf16.msra.mxu0 %v2900
      %2960 = vmatprep.subr.bf16.mxu0 0
      %2961 = vmatpush2.bf16.msra.mxu0 %v2899
      %2962 = vmatprep.subr.bf16.mxu0 0
      %2963 = vmatpush2.bf16.msra.mxu0 %v2898
      %2964 = vmatprep.subr.bf16.mxu0 0
      %2965 = vmatpush2.bf16.msra.mxu0 %v2897
      %2966 = vmatprep.mubr.bf16.mxu0 %v2914
      %2967 = vmatmul.mubr.bf16.gmra.mxu0 %v2803
      %v2968 = vpop.f32.mrf.mxu0
      %v2969 = vadd.f32 0.0, %v2968
      %v2970 = vpop.f32.mrf.mxu0
      %v2971 = vpop.f32.mrf.mxu0
      %v2972 = vadd.f32 0.0, %v2971
      %v2973 = vpop.f32.mrf.mxu0
      %2974 = vmatprep.mubr.bf16.mxu0 %v2917
      %2975 = vmatmul.mubr.bf16.gmra.mxu0 %v2805
      %v2976 = vpop.f32.mrf.mxu0
      %v2977 = vadd.f32 0.0, %v2976
      %v2978 = vpop.f32.mrf.mxu0
      %v2979 = vpop.f32.mrf.mxu0
      %v2980 = vadd.f32 0.0, %v2979
      %v2981 = vpop.f32.mrf.mxu0
      %2982 = vmatprep.mubr.bf16.mxu0 %v2920
      %2983 = vmatmul.mubr.bf16.gmra.mxu0 %v2807
      %v2984 = vpop.f32.mrf.mxu0
      %v2985 = vadd.f32 0.0, %v2984
      %v2986 = vpop.f32.mrf.mxu0
      %v2987 = vpop.f32.mrf.mxu0
      %v2988 = vadd.f32 0.0, %v2987
      %v2989 = vpop.f32.mrf.mxu0
      %2990 = vmatprep.mubr.bf16.mxu0 %v2923
      %2991 = vmatmul.mubr.bf16.gmra.mxu0 %v2809
      %v2992 = vpop.f32.mrf.mxu0
      %v2993 = vadd.f32 0.0, %v2992
      %v2994 = vpop.f32.mrf.mxu0
      %v2995 = vpop.f32.mrf.mxu0
      %v2996 = vadd.f32 0.0, %v2995
      %v2997 = vpop.f32.mrf.mxu0
      %2998 = vmatprep.mubr.bf16.mxu0 %v2926
      %2999 = vmatmul.mubr.bf16.gmra.mxu0 %v2811
      %v3000 = vpop.f32.mrf.mxu0
      %v3001 = vadd.f32 0.0, %v3000
      %v3002 = vpop.f32.mrf.mxu0
      %v3003 = vpop.f32.mrf.mxu0
      %v3004 = vadd.f32 0.0, %v3003
      %v3005 = vpop.f32.mrf.mxu0
      %3006 = vmatprep.mubr.bf16.mxu0 %v2929
      %3007 = vmatmul.mubr.bf16.gmra.mxu0 %v2813
      %v3008 = vpop.f32.mrf.mxu0
      %v3009 = vadd.f32 0.0, %v3008
      %v3010 = vpop.f32.mrf.mxu0
      %v3011 = vpop.f32.mrf.mxu0
      %v3012 = vadd.f32 0.0, %v3011
      %v3013 = vpop.f32.mrf.mxu0
      %3014 = vmatprep.mubr.bf16.mxu0 %v2932
      %3015 = vmatmul.mubr.bf16.gmra.mxu0 %v2815
      %v3016 = vpop.f32.mrf.mxu0
      %v3017 = vadd.f32 0.0, %v3016
      %v3018 = vpop.f32.mrf.mxu0
      %v3019 = vpop.f32.mrf.mxu0
      %v3020 = vpop.f32.mrf.mxu0
      %3021 = vdwg.mxu0
      %v3022 = vmul.f32 %v2969, 0.5
      %v3023 = vmul.f32 %v2972, 0.5
      %v3024 = vmul.f32 %v2977, 0.5
      %v3025 = vmul.f32 %v2980, 0.5
      %v3026 = vmul.f32 %v2985, 0.5
      %v3027 = vmul.f32 %v2988, 0.5
      %v3028 = vmul.f32 %v2993, 0.5
      %v3029 = vmul.f32 %v2996, 0.5
      %v3030 = vmul.f32 %v3001, 0.5
      %v3031 = vmul.f32 %v3004, 0.5
      %v3032 = vmul.f32 %v3009, 0.5
      %v3033 = vmul.f32 %v3012, 0.5
      %v3034 = vmul.f32 %v3017, 0.5
      %v3035 = vmul.f32 %v2969, 0.70710677
      %v3036 = vmul.f32 %v2972, 0.70710677
      %v3037 = vmul.f32 %v2977, 0.70710677
      %v3038 = vmul.f32 %v2980, 0.70710677
      %v3039 = vmul.f32 %v2985, 0.70710677
      %v3040 = vmul.f32 %v2988, 0.70710677
      %v3041 = vmul.f32 %v2993, 0.70710677
      %v3042 = vmul.f32 %v2996, 0.70710677
      %v3043 = vmul.f32 %v3001, 0.70710677
      %v3044 = vmul.f32 %v3004, 0.70710677
      %v3045 = vmul.f32 %v3009, 0.70710677
      %v3046 = vmul.f32 %v3012, 0.70710677
      %v3047 = vmul.f32 %v3017, 0.70710677
      %v3048 = verf.f32.pop %v3035
      %v3049 = verf.f32.pop %v3036
      %v3050 = verf.f32.pop %v3037
      %v3051 = verf.f32.pop %v3038
      %v3052 = verf.f32.pop %v3039
      %v3053 = verf.f32.pop %v3040
      %v3054 = verf.f32.pop %v3041
      %v3055 = verf.f32.pop %v3042
      %v3056 = verf.f32.pop %v3043
      %v3057 = verf.f32.pop %v3044
      %v3058 = verf.f32.pop %v3045
      %v3059 = verf.f32.pop %v3046
      %v3060 = verf.f32.pop %v3047
      %v3061 = vadd.f32 %v3048, 1.0
      %v3062 = vadd.f32 %v3049, 1.0
      %v3063 = vadd.f32 %v3050, 1.0
      %v3064 = vadd.f32 %v3051, 1.0
      %v3065 = vadd.f32 %v3052, 1.0
      %v3066 = vadd.f32 %v3053, 1.0
      %v3067 = vadd.f32 %v3054, 1.0
      %v3068 = vadd.f32 %v3055, 1.0
      %v3069 = vadd.f32 %v3056, 1.0
      %v3070 = vadd.f32 %v3057, 1.0
      %v3071 = vadd.f32 %v3058, 1.0
      %v3072 = vadd.f32 %v3059, 1.0
      %v3073 = vadd.f32 %v3060, 1.0
      %v3074 = vmul.f32 %v3022, %v3061
      %v3075 = vmul.f32 %v3023, %v3062
      %v3076 = vmul.f32 %v3024, %v3063
      %v3077 = vmul.f32 %v3025, %v3064
      %v3078 = vmul.f32 %v3026, %v3065
      %v3079 = vmul.f32 %v3027, %v3066
      %v3080 = vmul.f32 %v3028, %v3067
      %v3081 = vmul.f32 %v3029, %v3068
      %v3082 = vmul.f32 %v3030, %v3069
      %v3083 = vmul.f32 %v3031, %v3070
      %v3084 = vmul.f32 %v3032, %v3071
      %v3085 = vmul.f32 %v3033, %v3072
      %v3086 = vmul.f32 %v3034, %v3073
      %3087 = vst.msk [vmem:[#allocation2] sm:$0xff] %vm1159, %v3074
      %3088 = vst.msk [vmem:[#allocation2 + $0x8] sm:$0xff] %vm1159, %v3075
      %3089 = vst.msk [vmem:[#allocation2 + $0x10] sm:$0xff] %vm1159, %v3076
      %3090 = vst.msk [vmem:[#allocation2 + $0x18] sm:$0xff] %vm1159, %v3077
      %3091 = vst.msk [vmem:[#allocation2 + $0x20] sm:$0xff] %vm1159, %v3078
      %3092 = vst.msk [vmem:[#allocation2 + $0x28] sm:$0xff] %vm1159, %v3079
      %3093 = vst.msk [vmem:[#allocation2 + $0x30] sm:$0xff] %vm1159, %v3080
      %3094 = vst.msk [vmem:[#allocation2 + $0x38] sm:$0xff] %vm1159, %v3081
      %3095 = vst.msk [vmem:[#allocation2 + $0x40] sm:$0xff] %vm1159, %v3082
      %3096 = vst.msk [vmem:[#allocation2 + $0x48] sm:$0xff] %vm1159, %v3083
      %3097 = vst.msk [vmem:[#allocation2 + $0x50] sm:$0xff] %vm1159, %v3084
      %3098 = vst.msk [vmem:[#allocation2 + $0x58] sm:$0xff] %vm1159, %v3085
      %vm3099 = vcmask 518144
      %3100 = vst.msk [vmem:[#allocation2 + $0x60] sm:$0x7] %vm3099, %v3086
      %v3101 = vld [vmem:[#allocation2] ss:$2 sm:$0xff]
      %v3102 = vld [vmem:[%s1941] ss:$2 sm:$0xff]
      %v3103 = vld [vmem:[%s1943] ss:$2 sm:$0xff]
      %v3104 = vld [vmem:[%s1945] ss:$2 sm:$0xff]
      %v3105 = vld [vmem:[%s1947] ss:$2 sm:$0xff]
      %v3106 = vld [vmem:[%s1949] ss:$2 sm:$0xff]
      %v3107 = vld [vmem:[%s1951] ss:$2 sm:$0x1]
      %v3108 = vld [vmem:[%s1989] ss:$2 sm:$0xff]
      %v3109 = vld [vmem:[%s1991] ss:$2 sm:$0xff]
      %v3110 = vld [vmem:[%s1993] ss:$2 sm:$0xff]
      %v3111 = vld [vmem:[%s1995] ss:$2 sm:$0xff]
      %v3112 = vld [vmem:[%s1997] ss:$2 sm:$0xff]
      %v3113 = vld [vmem:[%s1999] ss:$2 sm:$0xff]
      %v3114 = vld [vmem:[%s2001] ss:$2 sm:$0x1]
      %v3115 = vld [vmem:[%s2039] ss:$2 sm:$0xff]
      %v3116 = vld [vmem:[%s2041] ss:$2 sm:$0xff]
      %v3117 = vld [vmem:[%s2043] ss:$2 sm:$0xff]
      %v3118 = vld [vmem:[%s2045] ss:$2 sm:$0xff]
      %v3119 = vld [vmem:[%s2047] ss:$2 sm:$0xff]
      %v3120 = vld [vmem:[%s2049] ss:$2 sm:$0xff]
      %v3121 = vld [vmem:[%s2051] ss:$2 sm:$0x1]
      %3129 = vrot.lane.b32.xlu0 %v3108, 64
      %v3130 = vpop.permute.xlu0 %3129
      %3131 = vrot.lane.b32.xlu0 %v3109, 64
      %v3132 = vpop.permute.xlu0 %3131
      %3133 = vrot.lane.b32.xlu0 %v3110, 64
      %v3134 = vpop.permute.xlu0 %3133
      %3135 = vrot.lane.b32.xlu0 %v3111, 64
      %v3136 = vpop.permute.xlu0 %3135
      %3137 = vrot.lane.b32.xlu0 %v3112, 64
      %v3138 = vpop.permute.xlu0 %3137
      %3139 = vrot.lane.b32.xlu0 %v3113, 64
      %v3140 = vpop.permute.xlu0 %3139
      %3141 = vrot.lane.b32.xlu0 %v3114, 64
      %v3142 = vpop.permute.xlu0 %3141
      %v3150 = vsel %vm1159, %v3101, %v3130
      %v3151 = vsel %vm1159, %v3102, %v3132
      %v3152 = vsel %vm1159, %v3103, %v3134
      %v3153 = vsel %vm1159, %v3104, %v3136
      %v3154 = vsel %vm1159, %v3105, %v3138
      %v3155 = vsel %vm1159, %v3106, %v3140
      %v3156 = vsel %vm1159, %v3107, %v3142
      %v3157 = vpack.c.bf16 %v3151, %v3150
      %v3158 = vpack.c.bf16 %v3116, %v3115
      %v3159 = vpack.c.bf16 %v3153, %v3152
      %v3160 = vpack.c.bf16 %v3118, %v3117
      %v3161 = vpack.c.bf16 %v3155, %v3154
      %v3162 = vpack.c.bf16 %v3120, %v3119
      %v3163 = vpack.c.bf16 %v3156, %v3156
      %v3164 = vpack.c.bf16 %v3121, %v3121
      %v3165 = vld [vmem:[%s6] sm:$0xf]
      %v3166 = vld [vmem:[%s6 + $0x4] sm:$0xf]
      %v3167 = vld [vmem:[%s6 + $0x8] sm:$0xf]
      %v3168 = vld [vmem:[%s6 + $0xc] sm:$0xf]
      %v3169 = vld [vmem:[%s6 + $0x10] sm:$0xf]
      %v3170 = vld [vmem:[%s6 + $0x14] sm:$0xf]
      %v3171 = vld [vmem:[%s6 + $0x18] sm:$0xf]
      %v3172 = vld [vmem:[%s6 + $0x1c] sm:$0xf]
      %v3173 = vld [vmem:[%s6 + $0x20] sm:$0xf]
      %v3174 = vld [vmem:[%s6 + $0x24] sm:$0xf]
      %v3175 = vld [vmem:[%s6 + $0x28] sm:$0xf]
      %v3176 = vld [vmem:[%s6 + $0x2c] sm:$0xf]
      %v3177 = vld [vmem:[%s6 + $0x30] sm:$0xf]
      %v3178 = vld [vmem:[%s6 + $0x34] sm:$0xf]
      %v3179 = vld [vmem:[%s6 + $0x38] sm:$0xf]
      %v3180 = vld [vmem:[%s6 + $0x3c] sm:$0xf]
      %v3181 = vld [vmem:[%s6 + $0x40] sm:$0xf]
      %v3182 = vld [vmem:[%s6 + $0x44] sm:$0xf]
      %v3183 = vld [vmem:[%s6 + $0x48] sm:$0xf]
      %v3184 = vld [vmem:[%s6 + $0x4c] sm:$0xf]
      %v3185 = vld [vmem:[%s6 + $0x50] sm:$0xf]
      %v3186 = vld [vmem:[%s6 + $0x54] sm:$0xf]
      %v3187 = vld [vmem:[%s6 + $0x58] sm:$0xf]
      %v3188 = vld [vmem:[%s6 + $0x5c] sm:$0xf]
      %v3213 = vunpack.c.l.b16 %v3165
      %v3214 = vunpack.c.l.b16 %v3166
      %v3215 = vunpack.c.l.b16 %v3167
      %v3216 = vunpack.c.l.b16 %v3168
      %v3217 = vunpack.c.l.b16 %v3169
      %v3218 = vunpack.c.l.b16 %v3170
      %v3219 = vunpack.c.l.b16 %v3171
      %v3220 = vunpack.c.l.b16 %v3172
      %v3221 = vunpack.c.l.b16 %v3173
      %v3222 = vunpack.c.l.b16 %v3174
      %v3223 = vunpack.c.l.b16 %v3175
      %v3224 = vunpack.c.l.b16 %v3176
      %v3225 = vunpack.c.l.b16 %v3177
      %v3226 = vunpack.c.l.b16 %v3178
      %v3227 = vunpack.c.l.b16 %v3179
      %v3228 = vunpack.c.l.b16 %v3180
      %v3229 = vunpack.c.l.b16 %v3181
      %v3230 = vunpack.c.l.b16 %v3182
      %v3231 = vunpack.c.l.b16 %v3183
      %v3232 = vunpack.c.l.b16 %v3184
      %v3233 = vunpack.c.l.b16 %v3185
      %v3234 = vunpack.c.l.b16 %v3186
      %v3235 = vunpack.c.l.b16 %v3187
      %v3236 = vunpack.c.l.b16 %v3188
      %v3237 = vpack.c.b16 %v3214, %v3213
      %v3238 = vpack.c.b16 %v3216, %v3215
      %v3239 = vpack.c.b16 %v3218, %v3217
      %v3240 = vpack.c.b16 %v3220, %v3219
      %v3241 = vpack.c.b16 %v3222, %v3221
      %v3242 = vpack.c.b16 %v3224, %v3223
      %v3243 = vpack.c.b16 %v3226, %v3225
      %v3244 = vpack.c.b16 %v3228, %v3227
      %v3245 = vpack.c.b16 %v3230, %v3229
      %v3246 = vpack.c.b16 %v3232, %v3231
      %v3247 = vpack.c.b16 %v3234, %v3233
      %v3248 = vpack.c.b16 %v3236, %v3235
      %v3262 = vsel %vm1159, %v3158, 0
      %v3265 = vsel %vm1159, %v3160, 0
      %v3268 = vsel %vm1159, %v3162, 0
      %v3271 = vsel %vm1159, %v3164, 0
      %3273 = vmatprep.subr.bf16.mxu0 0
      %3274 = vmatpush1.bf16.msra.mxu0 %v3244
      %3275 = vmatprep.subr.bf16.mxu0 0
      %3276 = vmatpush1.bf16.msra.mxu0 %v3243
      %3277 = vmatprep.subr.bf16.mxu0 0
      %3278 = vmatpush1.bf16.msra.mxu0 %v3242
      %3279 = vmatprep.subr.bf16.mxu0 0
      %3280 = vmatpush1.bf16.msra.mxu0 %v3241
      %3281 = vmatprep.subr.bf16.mxu0 0
      %3282 = vmatpush1.bf16.msra.mxu0 %v3240
      %3283 = vmatprep.subr.bf16.mxu0 0
      %3284 = vmatpush1.bf16.msra.mxu0 %v3239
      %3285 = vmatprep.subr.bf16.mxu0 0
      %3286 = vmatpush1.bf16.msra.mxu0 %v3238
      %3287 = vmatprep.subr.bf16.mxu0 0
      %3288 = vmatpush1.bf16.msra.mxu0 %v3237
      %3289 = vmatprep.subr.bf16.mxu0 0
      %3290 = vmatpush2.bf16.msra.mxu0 0
      %3291 = vmatprep.subr.bf16.mxu0 0
      %3292 = vmatpush2.bf16.msra.mxu0 0
      %3293 = vmatprep.subr.bf16.mxu0 0
      %3294 = vmatpush2.bf16.msra.mxu0 0
      %3295 = vmatprep.subr.bf16.mxu0 0
      %3296 = vmatpush2.bf16.msra.mxu0 0
      %3297 = vmatprep.subr.bf16.mxu0 0
      %3298 = vmatpush2.bf16.msra.mxu0 %v3248
      %3299 = vmatprep.subr.bf16.mxu0 0
      %3300 = vmatpush2.bf16.msra.mxu0 %v3247
      %3301 = vmatprep.subr.bf16.mxu0 0
      %3302 = vmatpush2.bf16.msra.mxu0 %v3246
      %3303 = vmatprep.subr.bf16.mxu0 0
      %3304 = vmatpush2.bf16.msra.mxu0 %v3245
      %3305 = vmatprep.mubr.bf16.mxu0 %v3262
      %3306 = vmatmul.mubr.bf16.gmra.mxu0 %v3157
      %v3307 = vpop.f32.mrf.mxu0
      %v3308 = vadd.f32 0.0, %v3307
      %v3309 = vpop.f32.mrf.mxu0
      %v3310 = vpop.f32.mrf.mxu0
      %v3311 = vadd.f32 0.0, %v3310
      %v3312 = vpop.f32.mrf.mxu0
      %3313 = vmatprep.mubr.bf16.mxu0 %v3265
      %3314 = vmatmul.mubr.bf16.gmra.mxu0 %v3159
      %v3315 = vpop.f32.mrf.mxu0
      %v3316 = vadd.f32 0.0, %v3315
      %v3317 = vpop.f32.mrf.mxu0
      %v3318 = vpop.f32.mrf.mxu0
      %v3319 = vadd.f32 0.0, %v3318
      %v3320 = vpop.f32.mrf.mxu0
      %3321 = vmatprep.mubr.bf16.mxu0 %v3268
      %3322 = vmatmul.mubr.bf16.gmra.mxu0 %v3161
      %v3323 = vpop.f32.mrf.mxu0
      %v3324 = vadd.f32 0.0, %v3323
      %v3325 = vpop.f32.mrf.mxu0
      %v3326 = vpop.f32.mrf.mxu0
      %v3327 = vadd.f32 0.0, %v3326
      %v3328 = vpop.f32.mrf.mxu0
      %3329 = vmatprep.mubr.bf16.mxu0 %v3271
      %3330 = vmatmul.mubr.bf16.gmra.mxu0 %v3163
      %v3331 = vpop.f32.mrf.mxu0
      %v3332 = vadd.f32 0.0, %v3331
      %v3333 = vpop.f32.mrf.mxu0
      %v3334 = vpop.f32.mrf.mxu0
      %v3335 = vpop.f32.mrf.mxu0
      %3336 = vdwg.mxu0
      %v3337 = vmul.f32 %v3308, 0.5
      %v3338 = vmul.f32 %v3311, 0.5
      %v3339 = vmul.f32 %v3316, 0.5
      %v3340 = vmul.f32 %v3319, 0.5
      %v3341 = vmul.f32 %v3324, 0.5
      %v3342 = vmul.f32 %v3327, 0.5
      %v3343 = vmul.f32 %v3332, 0.5
      %v3344 = vmul.f32 %v3308, 0.70710677
      %v3345 = vmul.f32 %v3311, 0.70710677
      %v3346 = vmul.f32 %v3316, 0.70710677
      %v3347 = vmul.f32 %v3319, 0.70710677
      %v3348 = vmul.f32 %v3324, 0.70710677
      %v3349 = vmul.f32 %v3327, 0.70710677
      %v3350 = vmul.f32 %v3332, 0.70710677
      %v3351 = verf.f32.pop %v3344
      %v3352 = verf.f32.pop %v3345
      %v3353 = verf.f32.pop %v3346
      %v3354 = verf.f32.pop %v3347
      %v3355 = verf.f32.pop %v3348
      %v3356 = verf.f32.pop %v3349
      %v3357 = verf.f32.pop %v3350
      %v3358 = vadd.f32 %v3351, 1.0
      %v3359 = vadd.f32 %v3352, 1.0
      %v3360 = vadd.f32 %v3353, 1.0
      %v3361 = vadd.f32 %v3354, 1.0
      %v3362 = vadd.f32 %v3355, 1.0
      %v3363 = vadd.f32 %v3356, 1.0
      %v3364 = vadd.f32 %v3357, 1.0
      %v3365 = vmul.f32 %v3337, %v3358
      %v3366 = vmul.f32 %v3338, %v3359
      %v3367 = vmul.f32 %v3339, %v3360
      %v3368 = vmul.f32 %v3340, %v3361
      %v3369 = vmul.f32 %v3341, %v3362
      %v3370 = vmul.f32 %v3342, %v3363
      %v3371 = vmul.f32 %v3343, %v3364
      %3372 = vst.msk [vmem:[#allocation3] sm:$0xff] %vm1159, %v3365
      %3373 = vst.msk [vmem:[#allocation3 + $0x8] sm:$0xff] %vm1159, %v3366
      %3374 = vst.msk [vmem:[#allocation3 + $0x10] sm:$0xff] %vm1159, %v3367
      %3375 = vst.msk [vmem:[#allocation3 + $0x18] sm:$0xff] %vm1159, %v3368
      %3376 = vst.msk [vmem:[#allocation3 + $0x20] sm:$0xff] %vm1159, %v3369
      %3377 = vst.msk [vmem:[#allocation3 + $0x28] sm:$0xff] %vm1159, %v3370
      %vm3378 = vcmask 516096
      %3379 = vst.msk [vmem:[#allocation3 + $0x30] sm:$0x1] %vm3378, %v3371
      %v3380 = vld [vmem:[#allocation3] ss:$2 sm:$0xff]
      %v3381 = vld [vmem:[%s2662] ss:$2 sm:$0xff]
      %v3382 = vld [vmem:[%s2664] ss:$2 sm:$0xff]
      %v3383 = vld [vmem:[%s2686] ss:$2 sm:$0xff]
      %v3384 = vld [vmem:[%s2688] ss:$2 sm:$0xff]
      %v3385 = vld [vmem:[%s2690] ss:$2 sm:$0xff]
      %v3386 = vld [vmem:[%s2712] ss:$2 sm:$0xff]
      %v3387 = vld [vmem:[%s2714] ss:$2 sm:$0xff]
      %v3388 = vld [vmem:[%s2716] ss:$2 sm:$0xff]
      %3392 = vrot.lane.b32.xlu0 %v3383, 64
      %v3393 = vpop.permute.xlu0 %3392
      %3394 = vrot.lane.b32.xlu0 %v3384, 64
      %v3395 = vpop.permute.xlu0 %3394
      %3396 = vrot.lane.b32.xlu0 %v3385, 64
      %v3397 = vpop.permute.xlu0 %3396
      %v3401 = vsel %vm1159, %v3380, %v3393
      %v3402 = vsel %vm1159, %v3381, %v3395
      %v3403 = vsel %vm1159, %v3382, %v3397
      %v3404 = vpack.c.bf16 %v3402, %v3401
      %v3405 = vpack.c.bf16 %v3387, %v3386
      %v3406 = vpack.c.bf16 %v3403, %v3403
      %v3407 = vpack.c.bf16 %v3388, %v3388
      %v3408 = vld [vmem:[%s7] sm:$0xf]
      %v3409 = vld [vmem:[%s7 + $0x4] sm:$0xf]
      %v3410 = vld [vmem:[%s7 + $0x8] sm:$0xf]
      %v3411 = vld [vmem:[%s7 + $0xc] sm:$0xf]
      %v3412 = vld [vmem:[%s7 + $0x10] sm:$0xf]
      %v3413 = vld [vmem:[%s7 + $0x14] sm:$0xf]
      %v3414 = vld [vmem:[%s7 + $0x18] sm:$0xf]
      %v3415 = vld [vmem:[%s7 + $0x1c] sm:$0xf]
      %v3416 = vld [vmem:[%s7 + $0x20] sm:$0xf]
      %v3417 = vld [vmem:[%s7 + $0x24] sm:$0xf]
      %v3418 = vld [vmem:[%s7 + $0x28] sm:$0xf]
      %v3419 = vld [vmem:[%s7 + $0x2c] sm:$0xf]
      %v3420 = vld [vmem:[%s7 + $0x30] sm:$0xf]
      %v3421 = vld [vmem:[%s7 + $0x34] sm:$0xf]
      %v3422 = vld [vmem:[%s7 + $0x38] sm:$0xf]
      %v3423 = vld [vmem:[%s7 + $0x3c] sm:$0xf]
      %v3424 = vld [vmem:[%s7 + $0x40] sm:$0xf]
      %v3425 = vld [vmem:[%s7 + $0x44] sm:$0xf]
      %v3426 = vld [vmem:[%s7 + $0x48] sm:$0xf]
      %v3427 = vld [vmem:[%s7 + $0x4c] sm:$0xf]
      %v3428 = vld [vmem:[%s7 + $0x50] sm:$0xf]
      %v3429 = vld [vmem:[%s7 + $0x54] sm:$0xf]
      %v3430 = vld [vmem:[%s7 + $0x58] sm:$0xf]
      %v3431 = vld [vmem:[%s7 + $0x5c] sm:$0xf]
      %v3456 = vunpack.c.l.b16 %v3408
      %v3457 = vunpack.c.l.b16 %v3409
      %v3458 = vunpack.c.l.b16 %v3410
      %v3459 = vunpack.c.l.b16 %v3411
      %v3460 = vunpack.c.l.b16 %v3412
      %v3461 = vunpack.c.l.b16 %v3413
      %v3462 = vunpack.c.l.b16 %v3414
      %v3463 = vunpack.c.l.b16 %v3415
      %v3464 = vunpack.c.l.b16 %v3416
      %v3465 = vunpack.c.l.b16 %v3417
      %v3466 = vunpack.c.l.b16 %v3418
      %v3467 = vunpack.c.l.b16 %v3419
      %v3468 = vunpack.c.l.b16 %v3420
      %v3469 = vunpack.c.l.b16 %v3421
      %v3470 = vunpack.c.l.b16 %v3422
      %v3471 = vunpack.c.l.b16 %v3423
      %v3472 = vunpack.c.l.b16 %v3424
      %v3473 = vunpack.c.l.b16 %v3425
      %v3474 = vunpack.c.l.b16 %v3426
      %v3475 = vunpack.c.l.b16 %v3427
      %v3476 = vunpack.c.l.b16 %v3428
      %v3477 = vunpack.c.l.b16 %v3429
      %v3478 = vunpack.c.l.b16 %v3430
      %v3479 = vunpack.c.l.b16 %v3431
      %v3480 = vpack.c.b16 %v3457, %v3456
      %v3481 = vpack.c.b16 %v3459, %v3458
      %v3482 = vpack.c.b16 %v3461, %v3460
      %v3483 = vpack.c.b16 %v3463, %v3462
      %v3484 = vpack.c.b16 %v3465, %v3464
      %v3485 = vpack.c.b16 %v3467, %v3466
      %v3486 = vpack.c.b16 %v3469, %v3468
      %v3487 = vpack.c.b16 %v3471, %v3470
      %v3488 = vpack.c.b16 %v3473, %v3472
      %v3489 = vpack.c.b16 %v3475, %v3474
      %v3490 = vpack.c.b16 %v3477, %v3476
      %v3491 = vpack.c.b16 %v3479, %v3478
      %v3505 = vsel %vm1159, %v3405, 0
      %v3508 = vsel %vm1159, %v3407, 0
      %3510 = vmatprep.subr.bf16.mxu0 0
      %3511 = vmatpush1.bf16.msra.mxu0 %v3487
      %3512 = vmatprep.subr.bf16.mxu0 0
      %3513 = vmatpush1.bf16.msra.mxu0 %v3486
      %3514 = vmatprep.subr.bf16.mxu0 0
      %3515 = vmatpush1.bf16.msra.mxu0 %v3485
      %3516 = vmatprep.subr.bf16.mxu0 0
      %3517 = vmatpush1.bf16.msra.mxu0 %v3484
      %3518 = vmatprep.subr.bf16.mxu0 0
      %3519 = vmatpush1.bf16.msra.mxu0 %v3483
      %3520 = vmatprep.subr.bf16.mxu0 0
      %3521 = vmatpush1.bf16.msra.mxu0 %v3482
      %3522 = vmatprep.subr.bf16.mxu0 0
      %3523 = vmatpush1.bf16.msra.mxu0 %v3481
      %3524 = vmatprep.subr.bf16.mxu0 0
      %3525 = vmatpush1.bf16.msra.mxu0 %v3480
      %3526 = vmatprep.subr.bf16.mxu0 0
      %3527 = vmatpush2.bf16.msra.mxu0 0
      %3528 = vmatprep.subr.bf16.mxu0 0
      %3529 = vmatpush2.bf16.msra.mxu0 0
      %3530 = vmatprep.subr.bf16.mxu0 0
      %3531 = vmatpush2.bf16.msra.mxu0 0
      %3532 = vmatprep.subr.bf16.mxu0 0
      %3533 = vmatpush2.bf16.msra.mxu0 0
      %3534 = vmatprep.subr.bf16.mxu0 0
      %3535 = vmatpush2.bf16.msra.mxu0 %v3491
      %3536 = vmatprep.subr.bf16.mxu0 0
      %3537 = vmatpush2.bf16.msra.mxu0 %v3490
      %3538 = vmatprep.subr.bf16.mxu0 0
      %3539 = vmatpush2.bf16.msra.mxu0 %v3489
      %3540 = vmatprep.subr.bf16.mxu0 0
      %3541 = vmatpush2.bf16.msra.mxu0 %v3488
      %3542 = vmatprep.mubr.bf16.mxu0 %v3505
      %3543 = vmatmul.mubr.bf16.gmra.mxu0 %v3404
      %v3544 = vpop.f32.mrf.mxu0
      %v3545 = vadd.f32 0.0, %v3544
      %v3546 = vpop.f32.mrf.mxu0
      %v3547 = vpop.f32.mrf.mxu0
      %v3548 = vadd.f32 0.0, %v3547
      %v3549 = vpop.f32.mrf.mxu0
      %3550 = vmatprep.mubr.bf16.mxu0 %v3508
      %3551 = vmatmul.mubr.bf16.gmra.mxu0 %v3406
      %v3552 = vpop.f32.mrf.mxu0
      %v3553 = vadd.f32 0.0, %v3552
      %v3554 = vpop.f32.mrf.mxu0
      %v3555 = vpop.f32.mrf.mxu0
      %v3556 = vpop.f32.mrf.mxu0
      %3557 = vdwg.mxu0
      %v3558 = vmul.f32 %v3545, 0.5
      %v3559 = vmul.f32 %v3548, 0.5
      %v3560 = vmul.f32 %v3553, 0.5
      %v3561 = vmul.f32 %v3545, 0.70710677
      %v3562 = vmul.f32 %v3548, 0.70710677
      %v3563 = vmul.f32 %v3553, 0.70710677
      %v3564 = verf.f32.pop %v3561
      %v3565 = verf.f32.pop %v3562
      %v3566 = verf.f32.pop %v3563
      %v3567 = vadd.f32 %v3564, 1.0
      %v3568 = vadd.f32 %v3565, 1.0
      %v3569 = vadd.f32 %v3566, 1.0
      %v3570 = vmul.f32 %v3558, %v3567
      %v3571 = vmul.f32 %v3559, %v3568
      %v3572 = vmul.f32 %v3560, %v3569
      %3573 = vst.msk [vmem:[#allocation2] sm:$0xff] %vm1159, %v3570
      %3574 = vst.msk [vmem:[#allocation2 + $0x8] sm:$0xff] %vm1159, %v3571
      %3575 = vst.msk [vmem:[#allocation2 + $0x10] sm:$0xff] %vm1159, %v3572
      %v3576 = vld [vmem:[#allocation2] ss:$2 sm:$0xff]
      %v3577 = vld [vmem:[%s1941] ss:$2 sm:$0xf]
      %v3578 = vld [vmem:[%s1989] ss:$2 sm:$0xff]
      %v3579 = vld [vmem:[%s1991] ss:$2 sm:$0xf]
      %3582 = vrot.lane.b32.xlu0 %v3578, 64
      %v3583 = vpop.permute.xlu0 %3582
      %3584 = vrot.lane.b32.xlu0 %v3579, 64
      %v3585 = vpop.permute.xlu0 %3584
      %v3588 = vsel %vm1159, %v3576, %v3583
      %v3589 = vsel %vm1159, %v3577, %v3585
      %v3590 = vpack.c.bf16 %v3589, %v3588
      %v3591 = vld [vmem:[%s8] sm:$0xf]
      %v3592 = vld [vmem:[%s8 + $0x4] sm:$0xf]
      %v3593 = vld [vmem:[%s8 + $0x8] sm:$0xf]
      %v3594 = vld [vmem:[%s8 + $0xc] sm:$0xf]
      %v3595 = vld [vmem:[%s8 + $0x10] sm:$0xf]
      %v3596 = vld [vmem:[%s8 + $0x14] sm:$0xf]
      %v3597 = vld [vmem:[%s8 + $0x18] sm:$0xf]
      %v3598 = vld [vmem:[%s8 + $0x1c] sm:$0xf]
      %v3599 = vld [vmem:[%s8 + $0x20] sm:$0xf]
      %v3600 = vld [vmem:[%s8 + $0x24] sm:$0xf]
      %v3601 = vld [vmem:[%s8 + $0x28] sm:$0xf]
      %v3602 = vld [vmem:[%s8 + $0x2c] sm:$0xf]
      %v3603 = vld [vmem:[%s8 + $0x30] sm:$0xf]
      %v3604 = vld [vmem:[%s8 + $0x34] sm:$0xf]
      %v3605 = vld [vmem:[%s8 + $0x38] sm:$0xf]
      %v3606 = vld [vmem:[%s8 + $0x3c] sm:$0xf]
      %v3623 = vunpack.c.l.b16 %v3591
      %v3624 = vunpack.c.l.b16 %v3592
      %v3625 = vunpack.c.l.b16 %v3593
      %v3626 = vunpack.c.l.b16 %v3594
      %v3627 = vunpack.c.l.b16 %v3595
      %v3628 = vunpack.c.l.b16 %v3596
      %v3629 = vunpack.c.l.b16 %v3597
      %v3630 = vunpack.c.l.b16 %v3598
      %v3631 = vunpack.c.l.b16 %v3599
      %v3632 = vunpack.c.l.b16 %v3600
      %v3633 = vunpack.c.l.b16 %v3601
      %v3634 = vunpack.c.l.b16 %v3602
      %v3635 = vunpack.c.l.b16 %v3603
      %v3636 = vunpack.c.l.b16 %v3604
      %v3637 = vunpack.c.l.b16 %v3605
      %v3638 = vunpack.c.l.b16 %v3606
      %v3639 = vpack.c.b16 %v3624, %v3623
      %v3640 = vpack.c.b16 %v3626, %v3625
      %v3641 = vpack.c.b16 %v3628, %v3627
      %v3642 = vpack.c.b16 %v3630, %v3629
      %v3643 = vpack.c.b16 %v3632, %v3631
      %v3644 = vpack.c.b16 %v3634, %v3633
      %v3645 = vpack.c.b16 %v3636, %v3635
      %v3646 = vpack.c.b16 %v3638, %v3637
      %3655 = vmatprep.subr.bf16.mxu0 0
      %3656 = vmatpush1.bf16.msra.mxu0 %v3646
      %3657 = vmatprep.subr.bf16.mxu0 0
      %3658 = vmatpush1.bf16.msra.mxu0 %v3645
      %3659 = vmatprep.subr.bf16.mxu0 0
      %3660 = vmatpush1.bf16.msra.mxu0 %v3644
      %3661 = vmatprep.subr.bf16.mxu0 0
      %3662 = vmatpush1.bf16.msra.mxu0 %v3643
      %3663 = vmatprep.subr.bf16.mxu0 0
      %3664 = vmatpush1.bf16.msra.mxu0 %v3642
      %3665 = vmatprep.subr.bf16.mxu0 0
      %3666 = vmatpush1.bf16.msra.mxu0 %v3641
      %3667 = vmatprep.subr.bf16.mxu0 0
      %3668 = vmatpush1.bf16.msra.mxu0 %v3640
      %3669 = vmatprep.subr.bf16.mxu0 0
      %3670 = vmatpush1.bf16.msra.mxu0 %v3639
      %3671 = vmatprep.subr.bf16.mxu0 0
      %3672 = vmatpush2.bf16.msra.mxu0 0
      %3673 = vmatprep.subr.bf16.mxu0 0
      %3674 = vmatpush2.bf16.msra.mxu0 0
      %3675 = vmatprep.subr.bf16.mxu0 0
      %3676 = vmatpush2.bf16.msra.mxu0 0
      %3677 = vmatprep.subr.bf16.mxu0 0
      %3678 = vmatpush2.bf16.msra.mxu0 0
      %3679 = vmatprep.subr.bf16.mxu0 0
      %3680 = vmatpush2.bf16.msra.mxu0 0
      %3681 = vmatprep.subr.bf16.mxu0 0
      %3682 = vmatpush2.bf16.msra.mxu0 0
      %3683 = vmatprep.subr.bf16.mxu0 0
      %3684 = vmatpush2.bf16.msra.mxu0 0
      %3685 = vmatprep.subr.bf16.mxu0 0
      %3686 = vmatpush2.bf16.msra.mxu0 0
      %3687 = vmatprep.mubr.bf16.mxu0 0
      %3688 = vmatmul.mubr.bf16.gmra.mxu0 %v3590
      %v3689 = vpop.f32.mrf.mxu0
      %v3690 = vadd.f32 0.0, %v3689
      %v3691 = vpop.f32.mrf.mxu0
      %v3692 = vpop.f32.mrf.mxu0
      %v3693 = vadd.f32 0.0, %v3692
      %v3694 = vpop.f32.mrf.mxu0
      %3695 = vdwg.mxu0
      %v3696 = vmul.f32 %v3690, 0.5
      %v3697 = vmul.f32 %v3693, 0.5
      %v3698 = vmul.f32 %v3690, 0.70710677
      %v3699 = vmul.f32 %v3693, 0.70710677
      %v3700 = verf.f32.pop %v3698
      %v3701 = verf.f32.pop %v3699
      %v3702 = vadd.f32 %v3700, 1.0
      %v3703 = vadd.f32 %v3701, 1.0
      %v3704 = vmul.f32 %v3696, %v3702
      %v3705 = vmul.f32 %v3697, %v3703
      %3706 = vst.msk [vmem:[#allocation3] sm:$0xff] %vm1159, %v3704
      %vm3707 = vcmask 519168
      %3708 = vst.msk [vmem:[#allocation3 + $0x8] sm:$0xf] %vm3707, %v3705
      %v3709 = vld [vmem:[#allocation3] ss:$2 sm:$0x3f]
      %v3710 = vld [vmem:[%s2686] ss:$2 sm:$0x3f]
      %3712 = vrot.lane.b32.xlu0 %v3710, 64
      %v3713 = vpop.permute.xlu0 %3712
      %v3715 = vsel %vm1159, %v3709, %v3713
      %v3716 = vpack.c.bf16 %v3715, %v3715
      %v3717 = vld [vmem:[%s9] sm:$0xf]
      %v3718 = vld [vmem:[%s9 + $0x4] sm:$0xf]
      %v3719 = vld [vmem:[%s9 + $0x8] sm:$0xf]
      %v3720 = vld [vmem:[%s9 + $0xc] sm:$0xf]
      %v3721 = vld [vmem:[%s9 + $0x10] sm:$0xf]
      %v3722 = vld [vmem:[%s9 + $0x14] sm:$0xf]
      %v3723 = vld [vmem:[%s9 + $0x18] sm:$0xf]
      %v3724 = vld [vmem:[%s9 + $0x1c] sm:$0xf]
      %v3725 = vld [vmem:[%s9 + $0x20] sm:$0xf]
      %v3726 = vld [vmem:[%s9 + $0x24] sm:$0xf]
      %v3727 = vld [vmem:[%s9 + $0x28] sm:$0xf]
      %v3728 = vld [vmem:[%s9 + $0x2c] sm:$0xf]
      %v3729 = vld [vmem:[%s9 + $0x30] sm:$0xf]
      %v3730 = vld [vmem:[%s9 + $0x34] sm:$0xf]
      %v3731 = vld [vmem:[%s9 + $0x38] sm:$0xf]
      %v3732 = vld [vmem:[%s9 + $0x3c] sm:$0xf]
      %v3749 = vunpack.c.l.b16 %v3717
      %v3750 = vunpack.c.l.b16 %v3718
      %v3751 = vunpack.c.l.b16 %v3719
      %v3752 = vunpack.c.l.b16 %v3720
      %v3753 = vunpack.c.l.b16 %v3721
      %v3754 = vunpack.c.l.b16 %v3722
      %v3755 = vunpack.c.l.b16 %v3723
      %v3756 = vunpack.c.l.b16 %v3724
      %v3757 = vunpack.c.l.b16 %v3725
      %v3758 = vunpack.c.l.b16 %v3726
      %v3759 = vunpack.c.l.b16 %v3727
      %v3760 = vunpack.c.l.b16 %v3728
      %v3761 = vunpack.c.l.b16 %v3729
      %v3762 = vunpack.c.l.b16 %v3730
      %v3763 = vunpack.c.l.b16 %v3731
      %v3764 = vunpack.c.l.b16 %v3732
      %v3765 = vpack.c.b16 %v3750, %v3749
      %v3766 = vpack.c.b16 %v3752, %v3751
      %v3767 = vpack.c.b16 %v3754, %v3753
      %v3768 = vpack.c.b16 %v3756, %v3755
      %v3769 = vpack.c.b16 %v3758, %v3757
      %v3770 = vpack.c.b16 %v3760, %v3759
      %v3771 = vpack.c.b16 %v3762, %v3761
      %v3772 = vpack.c.b16 %v3764, %v3763
      %3781 = vmatprep.subr.bf16.mxu0 0
      %3782 = vmatpush1.bf16.msra.mxu0 %v3772
      %3783 = vmatprep.subr.bf16.mxu0 0
      %3784 = vmatpush1.bf16.msra.mxu0 %v3771
      %3785 = vmatprep.subr.bf16.mxu0 0
      %3786 = vmatpush1.bf16.msra.mxu0 %v3770
      %3787 = vmatprep.subr.bf16.mxu0 0
      %3788 = vmatpush1.bf16.msra.mxu0 %v3769
      %3789 = vmatprep.subr.bf16.mxu0 0
      %3790 = vmatpush1.bf16.msra.mxu0 %v3768
      %3791 = vmatprep.subr.bf16.mxu0 0
      %3792 = vmatpush1.bf16.msra.mxu0 %v3767
      %3793 = vmatprep.subr.bf16.mxu0 0
      %3794 = vmatpush1.bf16.msra.mxu0 %v3766
      %3795 = vmatprep.subr.bf16.mxu0 0
      %3796 = vmatpush1.bf16.msra.mxu0 %v3765
      %3797 = vmatprep.subr.bf16.mxu0 0
      %3798 = vmatpush2.bf16.msra.mxu0 0
      %3799 = vmatprep.subr.bf16.mxu0 0
      %3800 = vmatpush2.bf16.msra.mxu0 0
      %3801 = vmatprep.subr.bf16.mxu0 0
      %3802 = vmatpush2.bf16.msra.mxu0 0
      %3803 = vmatprep.subr.bf16.mxu0 0
      %3804 = vmatpush2.bf16.msra.mxu0 0
      %3805 = vmatprep.subr.bf16.mxu0 0
      %3806 = vmatpush2.bf16.msra.mxu0 0
      %3807 = vmatprep.subr.bf16.mxu0 0
      %3808 = vmatpush2.bf16.msra.mxu0 0
      %3809 = vmatprep.subr.bf16.mxu0 0
      %3810 = vmatpush2.bf16.msra.mxu0 0
      %3811 = vmatprep.subr.bf16.mxu0 0
      %3812 = vmatpush2.bf16.msra.mxu0 0
      %3813 = vmatprep.mubr.bf16.mxu0 0
      %3814 = vmatmul.mubr.bf16.gmra.mxu0 %v3716
      %v3815 = vpop.f32.mrf.mxu0
      %v3816 = vadd.f32 0.0, %v3815
      %v3817 = vpop.f32.mrf.mxu0
      %v3818 = vpop.f32.mrf.mxu0
      %v3819 = vpop.f32.mrf.mxu0
      %3820 = vdwg.mxu0
      %v3821 = vmul.f32 %v3816, 0.5
      %v3822 = vmul.f32 %v3816, 0.70710677
      %v3823 = verf.f32.pop %v3822
      %v3824 = vadd.f32 %v3823, 1.0
      %v3825 = vmul.f32 %v3821, %v3824
      %v3826 = vpack.c.bf16 %v3825, %v3825
      %v3827 = vld [vmem:[%s10] sm:$0xf]
      %v3828 = vld [vmem:[%s10 + $0x4] sm:$0xf]
      %v3829 = vld [vmem:[%s10 + $0x8] sm:$0xf]
      %v3830 = vld [vmem:[%s10 + $0xc] sm:$0xf]
      %v3831 = vld [vmem:[%s10 + $0x10] sm:$0xf]
      %v3832 = vld [vmem:[%s10 + $0x14] sm:$0xf]
      %v3833 = vld [vmem:[%s10 + $0x18] sm:$0xf]
      %v3834 = vld [vmem:[%s10 + $0x1c] sm:$0xf]
      %v3835 = vld [vmem:[%s11] sm:$0x1]
      %v3837 = vlaneseq
      %v3838 = vshrl.u32 %v3837, 7
      %v3839 = vsub.s32 0, %v3838
      %v3840 = vrot.slane %v3835, %v3839
      %v3850 = vunpack.c.l.b16 %v3827
      %v3851 = vunpack.c.l.b16 %v3828
      %v3852 = vunpack.c.l.b16 %v3829
      %v3853 = vunpack.c.l.b16 %v3830
      %v3854 = vunpack.c.l.b16 %v3831
      %v3855 = vunpack.c.l.b16 %v3832
      %v3856 = vunpack.c.l.b16 %v3833
      %v3857 = vunpack.c.l.b16 %v3834
      %v3858 = vpack.c.b16 %v3851, %v3850
      %v3859 = vpack.c.b16 %v3853, %v3852
      %v3860 = vpack.c.b16 %v3855, %v3854
      %v3861 = vpack.c.b16 %v3857, %v3856
      %v3867 = vsel %vm1159, %v3826, 0
      %3869 = vmatprep.subr.bf16.mxu0 0
      %3870 = vmatpush1.bf16.msra.mxu0 0
      %3871 = vmatprep.subr.bf16.mxu0 0
      %3872 = vmatpush1.bf16.msra.mxu0 0
      %3873 = vmatprep.subr.bf16.mxu0 0
      %3874 = vmatpush1.bf16.msra.mxu0 0
      %3875 = vmatprep.subr.bf16.mxu0 0
      %3876 = vmatpush1.bf16.msra.mxu0 0
      %3877 = vmatprep.subr.bf16.mxu0 0
      %3878 = vmatpush1.bf16.msra.mxu0 %v3861
      %3879 = vmatprep.subr.bf16.mxu0 0
      %3880 = vmatpush1.bf16.msra.mxu0 %v3860
      %3881 = vmatprep.subr.bf16.mxu0 0
      %3882 = vmatpush1.bf16.msra.mxu0 %v3859
      %3883 = vmatprep.subr.bf16.mxu0 0
      %3884 = vmatpush1.bf16.msra.mxu0 %v3858
      %3885 = vmatprep.subr.bf16.mxu0 0
      %3886 = vmatpush2.bf16.msra.mxu0 0
      %3887 = vmatprep.subr.bf16.mxu0 0
      %3888 = vmatpush2.bf16.msra.mxu0 0
      %3889 = vmatprep.subr.bf16.mxu0 0
      %3890 = vmatpush2.bf16.msra.mxu0 0
      %3891 = vmatprep.subr.bf16.mxu0 0
      %3892 = vmatpush2.bf16.msra.mxu0 0
      %3893 = vmatprep.subr.bf16.mxu0 0
      %3894 = vmatpush2.bf16.msra.mxu0 0
      %3895 = vmatprep.subr.bf16.mxu0 0
      %3896 = vmatpush2.bf16.msra.mxu0 0
      %3897 = vmatprep.subr.bf16.mxu0 0
      %3898 = vmatpush2.bf16.msra.mxu0 0
      %3899 = vmatprep.subr.bf16.mxu0 0
      %3900 = vmatpush2.bf16.msra.mxu0 0
      %3901 = vmatprep.mubr.bf16.mxu0 0
      %3902 = vmatmul.mubr.bf16.gmra.mxu0 %v3867
      %v3903 = vpop.f32.mrf.mxu0
      %v3904 = vadd.f32 %v3840, %v3903
      %v3905 = vpop.f32.mrf.mxu0
      %v3906 = vpop.f32.mrf.mxu0
      %v3907 = vpop.f32.mrf.mxu0
      %3908 = vdwg.mxu0
      %3909 = vst [vmem:[%s411] sm:$0x3f] %v3904
      %p3910 = scmp.lt.s32.totalorder %s23, 1
      %s3911 = scalar_select %p3910, %s23, 1
      %s3912 = smul.addr %s3911, 8
      %s3913 = scalar_lea.vmem %s12, %s3912
      // Predicated region
      $region69: #{wav2vec2_feature_wrapper_forward.1} parent=67 // pred_check
        %p3914 = pneg %p298
      $region70: #{wav2vec2_feature_wrapper_forward.1} parent=67 // pred_check_branch
        %3916 = sbr.rel (%p3914) target = $region72
      $region71: #{wav2vec2_feature_wrapper_forward.1} parent=67 // pred_region
        _
      $region72: #{wav2vec2_feature_wrapper_forward.1} parent=67 // pred_fallthru
        _
    $region68: #{wav2vec2_feature_wrapper_forward.1} parent=5 // pred_fallthru
      _
    %p3917 = scmp.le.s32.totalorder 2, %s18
    // Predicated region
    $region73: #{wav2vec2_feature_wrapper_forward.1} parent=5 // pred_check
      %p3918 = pneg %p3917
    $region74: #{wav2vec2_feature_wrapper_forward.1} parent=5 // pred_check_branch
      %3920 = sbr.rel (%p3918) target = $region76
    $region75: #{wav2vec2_feature_wrapper_forward.1} parent=5 // pred_region
      %s3921 = ssub.s32 %s18, 2
      // Predicated region
      $region77: #{wav2vec2_feature_wrapper_forward.1} parent=75 // pred_check
        %p3922 = pneg %p304
      $region78: #{wav2vec2_feature_wrapper_forward.1} parent=75 // pred_check_branch
        %3924 = sbr.rel (%p3922) target = $region80
      $region79: #{wav2vec2_feature_wrapper_forward.1} parent=75 // pred_region
        %p3925 = scmp.lt.s32.totalorder %s24, 1
        %s3926 = scalar_select %p3925, %s24, 1
        %s3927 = smul.addr %s3926, 8
        %s3928 = scalar_lea.vmem %s12, %s3927
      $region80: #{wav2vec2_feature_wrapper_forward.1} parent=75 // pred_fallthru
        _
    $region76: #{wav2vec2_feature_wrapper_forward.1} parent=5 // pred_fallthru
      _
  $region6: #{wav2vec2_feature_wrapper_forward.1} parent=0 // loop_footer
    %s22 = sadd.s32 1, %s18
  $region7: #{wav2vec2_feature_wrapper_forward.1} parent=0 // loop_footer_branch
    %17 = sbr.rel target = $region3
  $region8: #{wav2vec2_feature_wrapper_forward.1} parent=0 // loop_exit
    _

</llo_original>
